<compile_context>
chip_gen: v6e
topology: v6e:2x2x1
jax: 0.10.0
libtpu: 0.0.40
codegen_flags: <defaults>
</compile_context>

<pallas_src>
import functools

import numpy as np
import jax
import jax.numpy as jnp
from jax.experimental import pallas as pl
from jax.experimental.pallas import tpu as pltpu


# --------------------------------------------------------------------------
# Optional single-buffering of constant-index weight blocks.  Probed once so
# the script still runs cleanly if pl.Buffered(1) is not supported.
# --------------------------------------------------------------------------
_SINGLE_BUF_OK = None


def _single_buffer_supported():
    global _SINGLE_BUF_OK
    if _SINGLE_BUF_OK is None:
        try:
            def _probe(x_ref, o_ref):
                o_ref[...] = x_ref[...] + 1.0

            spec = pl.BlockSpec((8, 128), lambda i: (0, 0),
                                pipeline_mode=pl.Buffered(1))
            out = pl.pallas_call(
                _probe,
                out_shape=jax.ShapeDtypeStruct((8, 128), jnp.float32),
                grid=(1,),
                in_specs=[spec],
                out_specs=pl.BlockSpec((8, 128), lambda i: (0, 0)),
            )(jnp.zeros((8, 128), jnp.float32))
            _SINGLE_BUF_OK = bool(np.allclose(np.asarray(out), 1.0))
        except Exception:
            _SINGLE_BUF_OK = False
    return _SINGLE_BUF_OK


def _const_spec(shape, index_map):
    """Spec for a constant-index weight/bias block (fetched once).

    Double-buffering these only doubles their VMEM footprint, so request a
    single buffer when the runtime supports it (key at ResNet-scale on v7x).
    """
    if _single_buffer_supported():
        return pl.BlockSpec(shape, index_map, pipeline_mode=pl.Buffered(1))
    return pl.BlockSpec(shape, index_map)


# --------------------------------------------------------------------------
# Kernel 1: CNN feature extractor (conv3x3+ReLU+GAP) fused with the layer-1
#           LSTM input projection.  HW-chunked accumulation in VMEM scratch.
# --------------------------------------------------------------------------
def _cnn_proj_kernel(p_ref, w2d_ref, cb_ref, wih_ref, b1_ref, o_ref, acc_scr,
                     *, hw_total):
    # p:   (Ts, Bt, hw_chunk, CKK)  im2col patches (CKK = C*9, un-padded)
    # w2d: (CKK, F)                 conv weight, flattened
    # cb:  (1, F)                   conv bias
    # wih: (F, 4H)                  layer-1 W_ih^T (gate-permuted i,f,o,g)
    # b1:  (1, 4H)                  layer-1 (b_ih + b_hh), gate-permuted
    # o:   (Ts, Bt, 4H)             gates_x for layer 1 (time-major, padded B)
    # acc: (Ts*Bt, F) f32 scratch   post-ReLU partial sums over HW
    h = pl.program_id(2)

    @pl.when(h == 0)
    def _():
        acc_scr[...] = jnp.zeros_like(acc_scr)

    ts, bt, hwc, ckk = p_ref.shape
    p = p_ref[...].reshape(ts * bt, hwc, ckk)
    a = jax.lax.dot_general(
        p, w2d_ref[...],
        dimension_numbers=(((2,), (0,)), ((), ())),
        preferred_element_type=jnp.float32)              # (Ts*Bt, hwc, F)
    a = jnp.maximum(a + cb_ref[...], 0.0)                # conv bias + ReLU
    acc_scr[...] += jnp.sum(a, axis=1)

    @pl.when(h == pl.num_programs(2) - 1)
    def _():
        feats = acc_scr[...] * (1.0 / hw_total)          # global average pool
        g4 = wih_ref.shape[1]
        gates = jnp.dot(feats.astype(wih_ref.dtype), wih_ref[...],
                        preferred_element_type=jnp.float32)
        o_ref[...] = gates.reshape(ts, bt, g4) + b1_ref[...]


def cnn_gates(patches, w2d, conv_b, wih1_t, b1, *, ts, bt, hw_chunk):
    S, Bp, HW, CKK = patches.shape
    F = w2d.shape[1]
    G4 = wih1_t.shape[1]
    kern = functools.partial(_cnn_proj_kernel, hw_total=HW)
    return pl.pallas_call(
        kern,
        out_shape=jax.ShapeDtypeStruct((S, Bp, G4), jnp.float32),
        grid=(S // ts, Bp // bt, HW // hw_chunk),
        in_specs=[
            pl.BlockSpec((ts, bt, hw_chunk, CKK), lambda s, b, h: (s, b, h, 0)),
            _const_spec((CKK, F), lambda s, b, h: (0, 0)),
            _const_spec((1, F), lambda s, b, h: (0, 0)),
            _const_spec((F, G4), lambda s, b, h: (0, 0)),
            _const_spec((1, G4), lambda s, b, h: (0, 0)),
        ],
        out_specs=pl.BlockSpec((ts, bt, G4), lambda s, b, h: (s, b, 0)),
        scratch_shapes=[pltpu.VMEM((ts * bt, F), jnp.float32)],
        compiler_params=pltpu.CompilerParams(
            dimension_semantics=("parallel", "parallel", "arbitrary")),
    )(patches, w2d, conv_b, wih1_t, b1)


# --------------------------------------------------------------------------
# Kernel 2: LSTM layer, batch-tiled ("parallel") x time-chunked ("arbitrary").
#           gates_x precomputed; h/c carried in VMEM scratch per batch tile.
#           Chunk hidden slab is projected with wproj (next layer's W_ih^T or
#           the 128-lane-padded FC weight) before lane-dense writeback.
# --------------------------------------------------------------------------
def _lstm_chunk_kernel(gx_ref, whh_ref, wproj_ref, bproj_ref, o_ref,
                       h_scr, c_scr, hbuf_scr):
    ci = pl.program_id(1)                    # time-chunk index (innermost)

    @pl.when(ci == 0)
    def _():
        h_scr[...] = jnp.zeros_like(h_scr)
        c_scr[...] = jnp.zeros_like(c_scr)

    T = gx_ref.shape[0]
    Hd = whh_ref.shape[0]

    def step(t, carry):
        h, c = carry
        gates = gx_ref[t] + jnp.dot(h, whh_ref[...],
                                    preferred_element_type=jnp.float32)
        # Gate layout permuted to (i, f, o, g): one wide sigmoid + one tanh.
        ifo = jax.nn.sigmoid(gates[:, :3 * Hd])
        g = jnp.tanh(gates[:, 3 * Hd:])
        i = ifo[:, :Hd]
        f = ifo[:, Hd:2 * Hd]
        o = ifo[:, 2 * Hd:3 * Hd]
        c = f * c + i * g
        h = o * jnp.tanh(c)
        hbuf_scr[t] = h
        return (h, c)

    hT, cT = jax.lax.fori_loop(0, T, step, (h_scr[...], c_scr[...]), unroll=True)
    h_scr[...] = hT
    c_scr[...] = cT

    # Chunk-granularity projection of the hidden slab (next-layer gates or FC).
    proj = jax.lax.dot_general(
        hbuf_scr[...].astype(wproj_ref.dtype), wproj_ref[...],
        dimension_numbers=(((2,), (0,)), ((), ())),
        preferred_element_type=jnp.float32)               # (T, Bt, G)
    o_ref[...] = proj + bproj_ref[...]


def lstm_chunk_layer(gx_sbg, whh_t, wproj, bproj, *, time_chunk, bt):
    # gx_sbg: (S, Bp, 4H) time-major precomputed gates; whh_t: (H, 4H) f32
    # wproj: (H, G); bproj: (1, G)  ->  output (S, Bp, G)
    S, Bp, G4 = gx_sbg.shape
    Hd = whh_t.shape[0]
    G = wproj.shape[1]
    T = time_chunk
    return pl.pallas_call(
        _lstm_chunk_kernel,
        out_shape=jax.ShapeDtypeStruct((S, Bp, G), jnp.float32),
        grid=(Bp // bt, S // T),
        in_specs=[
            pl.BlockSpec((T, bt, G4), lambda b, ci: (ci, b, 0)),
            _const_spec((Hd, G4), lambda b, ci: (0, 0)),
            _const_spec((Hd, G), lambda b, ci: (0, 0)),
            _const_spec((1, G), lambda b, ci: (0, 0)),
        ],
        out_specs=pl.BlockSpec((T, bt, G), lambda b, ci: (ci, b, 0)),
        scratch_shapes=[pltpu.VMEM((bt, Hd), jnp.float32),
                        pltpu.VMEM((bt, Hd), jnp.float32),
                        pltpu.VMEM((T, bt, Hd), jnp.float32)],
        compiler_params=pltpu.CompilerParams(
            dimension_semantics=("parallel", "arbitrary")),
    )(gx_sbg, whh_t, wproj, bproj)


# --------------------------------------------------------------------------
# Wrapper glue (plain JAX): im2col, layout, gate permutation, tiling choices.
# --------------------------------------------------------------------------
def im2col_3x3(x_nchw):
    N, C, H, W = x_nchw.shape
    xp = jnp.pad(x_nchw, ((0, 0), (0, 0), (1, 1), (1, 1)))
    cols = []
    for kh in range(3):
        for kw in range(3):
            cols.append(xp[:, :, kh:kh + H, kw:kw + W])
    p = jnp.stack(cols, axis=2)                  # (N, C, 9, H, W)
    p = p.transpose(0, 3, 4, 1, 2)               # (N, H, W, C, 9)
    return p.reshape(N, H * W, C * 9)


def _perm_gates(w, Hd):
    # PyTorch LSTM gate order (i, f, g, o) -> (i, f, o, g) along the 4H axis.
    return jnp.concatenate([w[:2 * Hd], w[3 * Hd:4 * Hd], w[2 * Hd:3 * Hd]],
                           axis=0)


def _pick_divisor(n, cap):
    cap = max(1, min(cap, n))
    for t in range(cap, 0, -1):
        if n % t == 0:
            return t
    return 1


def _batch_tile(bp):
    # bp is a multiple of 8 (>= 8).  Split into >= 2 tiles when possible so
    # the LSTM batch axis can shard across v7x's two TensorCores.
    if bp <= 8:
        return bp
    for t in range(bp // 2, 7, -1):
        if bp % t == 0 and t % 8 == 0:
            return t
    return bp


def _hw_chunk(hw):
    # Largest multiple-of-8 divisor of HW that is <= 32: bounds the
    # (frames, hw_chunk, F) post-conv intermediate.  Fall back to full HW.
    for t in range(min(32, hw), 7, -1):
        if hw % t == 0 and t % 8 == 0:
            return t
    return hw


def forward(params, x, *, time_chunk=None, use_bf16=False):
    conv_w, conv_b, lstm_params, fc_w, fc_b = params
    B, S, C, H, W = x.shape
    F = conv_w.shape[0]
    Hd = lstm_params[0][1].shape[1]              # whh: (4H, H)
    wdt = jnp.bfloat16 if use_bf16 else jnp.float32

    # Time-major, batch padded to a multiple of 8 sublanes BEFORE the CNN so
    # kernel 1 writes gates directly in the layout kernel 2 consumes (no XLA
    # transpose/pad round trip of the gates tensor).  Padded rows are
    # independent and sliced off at the end.
    Bp = max(8, ((B + 7) // 8) * 8)
    xt = jnp.transpose(x, (1, 0, 2, 3, 4))                       # (S, B, C, H, W)
    xt = jnp.pad(xt, ((0, 0), (0, Bp - B), (0, 0), (0, 0), (0, 0)))
    patches = im2col_3x3(xt.reshape(S * Bp, C, H, W))            # (S*Bp, HW, C*9)
    HWn, CKK = patches.shape[1], patches.shape[2]
    # NOTE: no 36 -> 128 contraction-dim pad; CKK rides as a full-extent dim.
    patches = patches.reshape(S, Bp, HWn, CKK).astype(wdt)

    w2d = conv_w.reshape(F, -1).T.astype(wdt)                    # (C*9, F)

    wih1, _, bih1, bhh1 = lstm_params[0]
    wih1_p = _perm_gates(wih1, Hd)                               # (4H, F), i,f,o,g
    b1 = _perm_gates(bih1 + bhh1, Hd).reshape(1, -1)

    bt = _batch_tile(Bp)
    ts = _pick_divisor(S, cap=max(1, 256 // bt))                 # ~256 frames/tile
    hw_chunk = _hw_chunk(HWn)

    # CNN + fused layer-1 input projection (hoisted out of the recurrence).
    gx = cnn_gates(patches, w2d, conv_b.reshape(1, F),
                   wih1_p.T.astype(wdt), b1,
                   ts=ts, bt=bt, hw_chunk=hw_chunk)              # (S, Bp, 4H)

    # Large time chunks: fewer sequential grid steps, fatter end-of-chunk matmul.
    T = time_chunk if time_chunk is not None else _pick_divisor(S, cap=64)
    T = max(1, min(T, S))
    while S % T != 0:
        T -= 1

    # FC weight padded to 128 output lanes (lane-dense writeback, fused below).
    wfc_pad = jnp.zeros((Hd, 128), jnp.float32).at[:, 0].set(fc_w.reshape(-1))
    bfc_pad = jnp.zeros((1, 128), jnp.float32).at[0, 0].set(fc_b[0])

    nlayers = len(lstm_params)
    for li in range(nlayers):
        _, whh, _, _ = lstm_params[li]
        whh_p = _perm_gates(whh, Hd)                             # stays f32
        if li + 1 < nlayers:
            wih_n, _, bih_n, bhh_n = lstm_params[li + 1]
            wproj = _perm_gates(wih_n, Hd).T.astype(wdt)         # next W_ih^T
            bproj = _perm_gates(bih_n + bhh_n, Hd).reshape(1, -1)
        else:
            wproj = wfc_pad.astype(wdt)                          # fused Linear(H->1)
            bproj = bfc_pad
        gx = lstm_chunk_layer(gx, whh_p.T, wproj, bproj, time_chunk=T, bt=bt)

    logits = gx[:, :B, :1]                                       # drop batch/lane pad
    return jnp.transpose(logits, (1, 0, 2))                      # (B, S, 1)


# --------------------------------------------------------------------------
# Pure-JAX reference for correctness check (standard PyTorch gate order).
# --------------------------------------------------------------------------
def reference_forward(params, x):
    conv_w, conv_b, lstm_params, fc_w, fc_b = params
    B, S, C, H, W = x.shape
    xf = x.reshape(B * S, C, H, W)
    y = jax.lax.conv_general_dilated(xf, conv_w, (1, 1), "SAME",
                                     dimension_numbers=("NCHW", "OIHW", "NCHW"))
    y = jnp.maximum(y + conv_b[None, :, None, None], 0.0)
    out = y.mean(axis=(2, 3)).reshape(B, S, -1)
    for (wih, whh, bih, bhh) in lstm_params:
        Hd = whh.shape[1]

        def step(carry, x_t):
            h, c = carry
            gates = x_t @ wih.T + h @ whh.T + bih + bhh
            i, f, g, o = jnp.split(gates, 4, axis=-1)
            i, f, o = jax.nn.sigmoid(i), jax.nn.sigmoid(f), jax.nn.sigmoid(o)
            g = jnp.tanh(g)
            c = f * c + i * g
            h = o * jnp.tanh(c)
            return (h, c), h

        init = (jnp.zeros((B, Hd), jnp.float32), jnp.zeros((B, Hd), jnp.float32))
        _, outs = jax.lax.scan(step, init, out.transpose(1, 0, 2))
        out = outs.transpose(1, 0, 2)
    return out @ fc_w.T + fc_b


if __name__ == "__main__":
    # Small synthetic shapes consistent with the module's forward.
    B, S, C, H, W = 2, 4, 4, 8, 8
    F, HID, LAYERS = 256, 128, 2          # (PyTorch module: 2048 / 512 / 2)

    key = jax.random.PRNGKey(0)
    ks = jax.random.split(key, 16)

    def rnd(k, shape, scale):
        return scale * jax.random.normal(k, shape, jnp.float32)

    conv_w = rnd(ks[0], (F, C, 3, 3), 0.1)
    conv_b = rnd(ks[1], (F,), 0.1)
    lstm_params = []
    in_dim, idx = F, 2
    for _ in range(LAYERS):
        wih = rnd(ks[idx], (4 * HID, in_dim), 0.05); idx += 1
        whh = rnd(ks[idx], (4 * HID, HID), 0.05); idx += 1
        bih = rnd(ks[idx], (4 * HID,), 0.05); idx += 1
        bhh = rnd(ks[idx], (4 * HID,), 0.05); idx += 1
        lstm_params.append((wih, whh, bih, bhh))
        in_dim = HID
    fc_w = rnd(ks[idx], (1, HID), 0.05); idx += 1
    fc_b = rnd(ks[idx], (1,), 0.05); idx += 1
    params = (conv_w, conv_b, lstm_params, fc_w, fc_b)

    x = jax.random.normal(ks[idx], (B, S, C, H, W), jnp.float32)

    ref = jax.block_until_ready(reference_forward(params, x))

    # f32 path: tight check against the reference.
    out = jax.block_until_ready(forward(params, x))
    assert out.shape == (B, S, 1) and out.dtype == jnp.float32
    np.testing.assert_allclose(np.asarray(out), np.asarray(ref), rtol=2e-4, atol=2e-4)

    # bf16 feed-forward-weight path (v6e/v7x MXU-native): W_hh / recurrent h
    # stay f32 so drift is bounded; loose check only (bf16 input rounding).
    out_bf16 = jax.block_until_ready(forward(params, x, use_bf16=True))
    np.testing.assert_allclose(np.asarray(out_bf16), np.asarray(ref), rtol=1e-1, atol=1e-1)

    print("KERNEL_OK")
</pallas_src>

<mosaic_0001>
module attributes {stable_mosaic.version = 11 : i64} {
  func.func @_probe(%arg0: i32, %arg1: memref<8x128xf32, #tpu.memory_space<vmem>>, %arg2: memref<8x128xf32, #tpu.memory_space<vmem>>) attributes {dimension_semantics = [#tpu.dimension_semantics<arbitrary>], iteration_bounds = array<i64: 1>, scalar_prefetch = 0 : i64, scratch_operands = 0 : i64, tpu.core_type = #tpu.core_type<tc>, window_params = [{pipeline_mode = #tpu.pipeline_mode<synchronous>, transform_indices = @transform_0, window_bounds = array<i64: 8, 128>}, {pipeline_mode = #tpu.pipeline_mode<synchronous>, transform_indices = @transform_1, window_bounds = array<i64: 8, 128>}]} {
    %c0 = arith.constant 0 : index
    %c0_0 = arith.constant 0 : index
    %0 = vector.load %arg1[%c0, %c0_0] : memref<8x128xf32, #tpu.memory_space<vmem>>, vector<8x128xf32>
    %cst = arith.constant 1.000000e+00 : f32
    %1 = vector.broadcast %cst : f32 to vector<8x128xf32>
    %2 = arith.addf %0, %1 : vector<8x128xf32>
    %c0_1 = arith.constant 0 : index
    %c0_2 = arith.constant 0 : index
    %3 = vector.load %arg2[%c0_1, %c0_2] : memref<8x128xf32, #tpu.memory_space<vmem>>, vector<8x128xf32>
    tpu.vector_store %arg2[%c0_1, %c0_2], %2 {strides = array<i32>} : memref<8x128xf32, #tpu.memory_space<vmem>>, vector<8x128xf32>,
    return
  }
  func.func @transform_0(%arg0: i32) -> (i32, i32) {
    %c0_i32 = arith.constant 0 : i32
    %c0_i32_0 = arith.constant 0 : i32
    %c0_i32_1 = arith.constant 0 : i32
    return %c0_i32, %c0_i32_0 : i32, i32
  }
  func.func @transform_1(%arg0: i32) -> (i32, i32) {
    %c0_i32 = arith.constant 0 : i32
    %c0_i32_0 = arith.constant 0 : i32
    %c0_i32_1 = arith.constant 0 : i32
    return %c0_i32, %c0_i32_0 : i32, i32
  }
}

module attributes {stable_mosaic.version = 11 : i64} {
  func.func @_cnn_proj_kernel(%arg0: i32, %arg1: i32, %arg2: i32, %arg3: memref<4x8x32x36xf32, #tpu.memory_space<vmem>>, %arg4: memref<36x256xf32, #tpu.memory_space<vmem>>, %arg5: memref<1x256xf32, #tpu.memory_space<vmem>>, %arg6: memref<256x512xf32, #tpu.memory_space<vmem>>, %arg7: memref<1x512xf32, #tpu.memory_space<vmem>>, %arg8: memref<4x8x512xf32, #tpu.memory_space<vmem>>, %arg9: memref<32x256xf32, #tpu.memory_space<vmem>>) attributes {dimension_semantics = [#tpu.dimension_semantics<parallel>, #tpu.dimension_semantics<parallel>, #tpu.dimension_semantics<arbitrary>], iteration_bounds = array<i64: 1, 1, 2>, scalar_prefetch = 0 : i64, scratch_operands = 1 : i64, tpu.core_type = #tpu.core_type<tc>, window_params = [{transform_indices = @transform_0, window_bounds = array<i64: 4, 8, 32, 36>}, {pipeline_mode = #tpu.pipeline_mode<synchronous>, transform_indices = @transform_1, window_bounds = array<i64: 36, 256>}, {pipeline_mode = #tpu.pipeline_mode<synchronous>, transform_indices = @transform_2, window_bounds = array<i64: 1, 256>}, {pipeline_mode = #tpu.pipeline_mode<synchronous>, transform_indices = @transform_3, window_bounds = array<i64: 256, 512>}, {pipeline_mode = #tpu.pipeline_mode<synchronous>, transform_indices = @transform_4, window_bounds = array<i64: 1, 512>}, {transform_indices = @transform_5, window_bounds = array<i64: 4, 8, 512>}]} {
    %c0_i32 = arith.constant 0 : i32
    %0 = arith.cmpi eq, %arg2, %c0_i32 : i32
    %1 = arith.extui %0 : i1 to i32
    %c0_i32_0 = arith.constant 0 : i32
    %2 = arith.cmpi ne, %1, %c0_i32_0 : i32
    scf.if %2 {
      %cst_15 = arith.constant 0.000000e+00 : f32
      %20 = vector.broadcast %cst_15 : f32 to vector<32x256xf32>
      %c0_16 = arith.constant 0 : index
      %c0_17 = arith.constant 0 : index
      %21 = vector.load %arg9[%c0_16, %c0_17] : memref<32x256xf32, #tpu.memory_space<vmem>>, vector<32x256xf32>
      tpu.vector_store %arg9[%c0_16, %c0_17], %20 {strides = array<i32>} : memref<32x256xf32, #tpu.memory_space<vmem>>, vector<32x256xf32>,
    } else {
    }
    %c0 = arith.constant 0 : index
    %c0_1 = arith.constant 0 : index
    %c0_2 = arith.constant 0 : index
    %c0_3 = arith.constant 0 : index
    %3 = vector.load %arg3[%c0, %c0_1, %c0_2, %c0_3] : memref<4x8x32x36xf32, #tpu.memory_space<vmem>>, vector<4x8x32x36xf32>
    %4 = vector.shape_cast %3 : vector<4x8x32x36xf32> to vector<32x32x36xf32>
    %c0_4 = arith.constant 0 : index
    %c0_5 = arith.constant 0 : index
    %5 = vector.load %arg4[%c0_4, %c0_5] : memref<36x256xf32, #tpu.memory_space<vmem>>, vector<36x256xf32>
    %cst = arith.constant dense<0.000000e+00> : vector<32x32x256xf32>
    %6 = tpu.matmul %4, %5, %cst {dimension_numbers = #tpu.dot_dimension_numbers<[2], [0], [0, 1], [1], [0, 0, 0, 1, 1, 1], [], []>} : vector<32x32x36xf32>, vector<36x256xf32>, vector<32x32x256xf32> -> vector<32x32x256xf32>
    %c0_6 = arith.constant 0 : index
    %c0_7 = arith.constant 0 : index
    %7 = vector.load %arg5[%c0_6, %c0_7] : memref<1x256xf32, #tpu.memory_space<vmem>>, vector<1x256xf32>
    %8 = vector.shape_cast %7 : vector<1x256xf32> to vector<1x1x256xf32>
    %9 = vector.broadcast %8 : vector<1x1x256xf32> to vector<32x32x256xf32>
    %10 = arith.addf %6, %9 : vector<32x32x256xf32>
    %cst_8 = arith.constant 0.000000e+00 : f32
    %11 = vector.broadcast %cst_8 : f32 to vector<32x32x256xf32>
    %12 = arith.maximumf %10, %11 : vector<32x32x256xf32>
    %c0_9 = arith.constant 0 : index
    %c0_10 = arith.constant 0 : index
    %13 = vector.load %arg9[%c0_9, %c0_10] : memref<32x256xf32, #tpu.memory_space<vmem>>, vector<32x256xf32>
    %cst_11 = arith.constant dense<0.000000e+00> : vector<32x256xf32>
    %14 = vector.multi_reduction <add>, %12, %cst_11 [1] : vector<32x32x256xf32> to vector<32x256xf32>
    %15 = arith.addf %13, %14 : vector<32x256xf32>
    %c0_12 = arith.constant 0 : index
    %c0_13 = arith.constant 0 : index
    %16 = vector.load %arg9[%c0_12, %c0_13] : memref<32x256xf32, #tpu.memory_space<vmem>>, vector<32x256xf32>
    tpu.vector_store %arg9[%c0_12, %c0_13], %15 {strides = array<i32>} : memref<32x256xf32, #tpu.memory_space<vmem>>, vector<32x256xf32>,
    %c1_i32 = arith.constant 1 : i32
    %17 = arith.cmpi eq, %arg2, %c1_i32 : i32
    %18 = arith.extui %17 : i1 to i32
    %c0_i32_14 = arith.constant 0 : i32
    %19 = arith.cmpi ne, %18, %c0_i32_14 : i32
    scf.if %19 {
      %c0_15 = arith.constant 0 : index
      %c0_16 = arith.constant 0 : index
      %20 = vector.load %arg9[%c0_15, %c0_16] : memref<32x256xf32, #tpu.memory_space<vmem>>, vector<32x256xf32>
      %cst_17 = arith.constant 1.562500e-02 : f32
      %21 = vector.broadcast %cst_17 : f32 to vector<32x256xf32>
      %22 = arith.mulf %20, %21 : vector<32x256xf32>
      %c0_18 = arith.constant 0 : index
      %c0_19 = arith.constant 0 : index
      %23 = vector.load %arg6[%c0_18, %c0_19] : memref<256x512xf32, #tpu.memory_space<vmem>>, vector<256x512xf32>
      %cst_20 = arith.constant dense<0.000000e+00> : vector<32x512xf32>
      %24 = tpu.matmul %22, %23, %cst_20 {dimension_numbers = #tpu.dot_dimension_numbers<[1], [0], [0], [1], [0, 0, 1, 1], [], []>} : vector<32x256xf32>, vector<256x512xf32>, vector<32x512xf32> -> vector<32x512xf32>
      %25 = vector.shape_cast %24 : vector<32x512xf32> to vector<4x8x512xf32>
      %c0_21 = arith.constant 0 : index
      %c0_22 = arith.constant 0 : index
      %26 = vector.load %arg7[%c0_21, %c0_22] : memref<1x512xf32, #tpu.memory_space<vmem>>, vector<1x512xf32>
      %27 = vector.shape_cast %26 : vector<1x512xf32> to vector<1x1x512xf32>
      %28 = vector.broadcast %27 : vector<1x1x512xf32> to vector<4x8x512xf32>
      %29 = arith.addf %25, %28 : vector<4x8x512xf32>
      %c0_23 = arith.constant 0 : index
      %c0_24 = arith.constant 0 : index
      %c0_25 = arith.constant 0 : index
      %30 = vector.load %arg8[%c0_23, %c0_24, %c0_25] : memref<4x8x512xf32, #tpu.memory_space<vmem>>, vector<4x8x512xf32>
      tpu.vector_store %arg8[%c0_23, %c0_24, %c0_25], %29 {strides = array<i32>} : memref<4x8x512xf32, #tpu.memory_space<vmem>>, vector<4x8x512xf32>,
    } else {
    }
    return
  }
  func.func @transform_0(%arg0: i32, %arg1: i32, %arg2: i32) -> (i32, i32, i32, i32) {
    %c0_i32 = arith.constant 0 : i32
    %c0_i32_0 = arith.constant 0 : i32
    return %arg0, %arg1, %arg2, %c0_i32 : i32, i32, i32, i32
  }
  func.func @transform_1(%arg0: i32, %arg1: i32, %arg2: i32) -> (i32, i32) {
    %c0_i32 = arith.constant 0 : i32
    %c0_i32_0 = arith.constant 0 : i32
    %c0_i32_1 = arith.constant 0 : i32
    return %c0_i32, %c0_i32_0 : i32, i32
  }
  func.func @transform_2(%arg0: i32, %arg1: i32, %arg2: i32) -> (i32, i32) {
    %c0_i32 = arith.constant 0 : i32
    %c0_i32_0 = arith.constant 0 : i32
    %c0_i32_1 = arith.constant 0 : i32
    return %c0_i32, %c0_i32_0 : i32, i32
  }
  func.func @transform_3(%arg0: i32, %arg1: i32, %arg2: i32) -> (i32, i32) {
    %c0_i32 = arith.constant 0 : i32
    %c0_i32_0 = arith.constant 0 : i32
    %c0_i32_1 = arith.constant 0 : i32
    return %c0_i32, %c0_i32_0 : i32, i32
  }
  func.func @transform_4(%arg0: i32, %arg1: i32, %arg2: i32) -> (i32, i32) {
    %c0_i32 = arith.constant 0 : i32
    %c0_i32_0 = arith.constant 0 : i32
    %c0_i32_1 = arith.constant 0 : i32
    return %c0_i32, %c0_i32_0 : i32, i32
  }
  func.func @transform_5(%arg0: i32, %arg1: i32, %arg2: i32) -> (i32, i32, i32) {
    %c0_i32 = arith.constant 0 : i32
    %c0_i32_0 = arith.constant 0 : i32
    return %arg0, %arg1, %c0_i32 : i32, i32, i32
  }
}

</mosaic_0001>

<llo_original>
// kernel: tpu_custom_call.1
$region0: #{tpu_custom_call.1}
  #allocation0 [shape = 'u32[]', space=smem, size = 0x4, offset = 0x4, fixed_abs, tag = 'smem constant byte address 0x4 - core index']
  #allocation1 [shape = 'u32[144,128]{1,0:T(1,128)}', space=vmem, size = 0x12000, scoped, tag = 'internal scratch']
  %s0 = inlined_call_operand.hbm [shape: f32[8,128], index: 0, kind: input, shape index: {}]
  %s1 = inlined_call_operand.hbm [shape: f32[8,128], index: 1, kind: output, shape index: {}]
  %s2 = sld [smem:[#allocation0]]
  $region18: #{tpu_custom_call.1} parent=0
    _
  %s4 = ssub.s32 1, %s2
  %s5 = scalar_select 0, %s4, %s2
  $region1: #{tpu_custom_call.1} parent=0
    #allocation2 [shape = 'u8[4096]{0}', space=vmem, size = 0x1000, scoped, tag = 'input window, operand 0, single buffered']
    #allocation3 [shape = 's32[1]{0}', space=sflag, size = 0x4, scoped, tag = 'scoped memory for tpu_custom_call.1']
    #allocation4 [shape = 's32[1]{0}', space=sflag, size = 0x4, scoped, tag = 'scoped memory for tpu_custom_call.1']
    #allocation5 [shape = 'u8[4096]{0}', space=vmem, size = 0x1000, scoped, tag = 'output window, operand 0, single buffered']
    %6 = vsyncpa [#allocation3], 0
    %7 = vsyncpa [#allocation4], 0
    // Predicated region
    $region2: #{tpu_custom_call.1} parent=1 // pred_check
      _
    $region3: #{tpu_custom_call.1} parent=1 // pred_check_branch
      %9 = sbr.rel (0) target = $region5
    $region4: #{tpu_custom_call.1} parent=1 // pred_region
      %s11 = ssub.s32 128, 128
      %12 = vsyncadd [#allocation3], %s11
      %s14 = sshll.u32 [#allocation2], 4
      %s15 = int_to_ptr.vmem [resolvable:$true] %s14
      %17 = dma.hbm_to_vmem [thread:$0]  %s0, 128, %s15, [#allocation3]
    $region5: #{tpu_custom_call.1} parent=1 // pred_fallthru
      _
    // Predicated region
    $region6: #{tpu_custom_call.1} parent=1 // pred_check
      _
    $region7: #{tpu_custom_call.1} parent=1 // pred_check_branch
      %19 = sbr.rel (0) target = $region9
    $region8: #{tpu_custom_call.1} parent=1 // pred_region
      %20 = dma.done [#allocation3], 128
    $region9: #{tpu_custom_call.1} parent=1 // pred_fallthru
      _
    %v21 = vld [vmem:[#allocation2] sm:$0xff]
    %v22 = vadd.f32 %v21, 1.0
    %23 = vst [vmem:[#allocation5] sm:$0xff] %v22
    // Predicated region
    $region10: #{tpu_custom_call.1} parent=1 // pred_check
      _
    $region11: #{tpu_custom_call.1} parent=1 // pred_check_branch
      %25 = sbr.rel (0) target = $region13
    $region12: #{tpu_custom_call.1} parent=1 // pred_region
      %s27 = ssub.s32 128, 128
      %28 = vsyncadd [#allocation4], %s27
      %s30 = sshll.u32 [#allocation5], 4
      %s31 = int_to_ptr.vmem [resolvable:$true] %s30
      %33 = dma.vmem_to_hbm [thread:$0]  %s31, 128, %s1, [#allocation4]
    $region13: #{tpu_custom_call.1} parent=1 // pred_fallthru
      _
    // Predicated region
    $region14: #{tpu_custom_call.1} parent=1 // pred_check
      _
    $region15: #{tpu_custom_call.1} parent=1 // pred_check_branch
      %35 = sbr.rel (0) target = $region17
    $region16: #{tpu_custom_call.1} parent=1 // pred_region
      %36 = dma.done [#allocation4], 128
    $region17: #{tpu_custom_call.1} parent=1 // pred_fallthru
      _
    %37 = vsyncpa [#allocation3], 1
    %38 = vsyncpa [#allocation4], 1

// kernel: tpu_custom_call.1
$region0: #{tpu_custom_call.1}
  #allocation0 [shape = 'u32[]', space=smem, size = 0x4, offset = 0x4, fixed_abs, tag = 'smem constant byte address 0x4 - core index']
  #allocation1 [shape = 'u32[144,128]{1,0:T(1,128)}', space=vmem, size = 0x12000, scoped, tag = 'internal scratch']
  #allocation2 [shape = 'f32[32,256]{1,0:T(8,128)}', space=vmem, size = 0x8000, scoped, tag = 'scratch operand']
  %s0 = inlined_call_operand.vmem [shape: f32[4,8,64,36], index: 0, kind: input, shape index: {}]
  %s1 = inlined_call_operand.vmem [shape: f32[36,256], index: 1, kind: input, shape index: {}]
  %s2 = inlined_call_operand.vmem [shape: f32[1,256], index: 2, kind: input, shape index: {}]
  %s3 = inlined_call_operand.vmem [shape: f32[256,512], index: 3, kind: input, shape index: {}]
  %s4 = inlined_call_operand.vmem [shape: f32[1,512], index: 4, kind: input, shape index: {}]
  %s5 = inlined_call_operand.hbm [shape: f32[4,8,512], index: 5, kind: output, shape index: {}]
  %s6 = sld [smem:[#allocation0]]
  $region99: #{tpu_custom_call.1} parent=0
    _
  %s8 = ssub.s32 1, %s6
  %s9 = scalar_select 0, %s8, %s6
  $region1: #{tpu_custom_call.1} parent=0
    #allocation3 [shape = 'u8[1048576]{0}', space=vmem, size = 0x100000, scoped, tag = 'input window, operand 0']
    #allocation4 [shape = 'u8[65536]{0}', space=vmem, size = 0x10000, scoped, tag = 'output window, operand 0, single buffered']
    #allocation5 [shape = 's32[2]{0}', space=sflag, size = 0x8, scoped, tag = 'scoped memory for tpu_custom_call.1']
    %10 = vsyncpa [#allocation5], 0
    loop: start=0, step=1, limit=4
    $region2: #{tpu_custom_call.1} parent=1 // loop_pre_header
      _
    $region3: #{tpu_custom_call.1} parent=1 // loop_header
      %s12 = sphi 0, %s16
      %p13 = scmp.ge.s32.totalorder %s12, 4
      %s19 = sphi 0, %s38
      %s20 = sphi 0, %s34
      %s21 = sphi 0, %s30
      %s22 = sphi 0, %s19
      %s23 = sphi 0, %s20
      %s24 = sphi 0, %s21
      %s25 = sphi 0, %s22
      %s26 = sphi 0, %s23
      %s27 = sphi 0, %s24
      %s45 = sphi 0, %s47
      %s48 = sphi 0, %s45
      %s49 = sphi 0, %s48
      %s65 = sphi 0, %s49
      %s69 = sphi 0, %s69
      %s71 = sphi 0, %s69
      %s72 = sphi 0, %s71
      %s86 = sphi 0, %s72
      %s90 = sphi 0, %s90
      %s92 = sphi 0, %s90
      %s93 = sphi 0, %s92
      %s107 = sphi 0, %s93
      %s111 = sphi 0, %s111
      %s113 = sphi 0, %s111
      %s114 = sphi 0, %s113
      %s128 = sphi 0, %s114
      %s132 = sphi 0, %s132
      %s134 = sphi 0, %s132
      %s135 = sphi 0, %s134
      %s149 = sphi 0, %s135
      %s157 = sphi 0, %s159
      %s160 = sphi 0, %s157
      %s161 = sphi 0, %s160
      %s177 = sphi 0, %s161
    $region4: #{tpu_custom_call.1} parent=1 // loop_header_branch
      %15 = sbr.rel (%p13) target = $region8
    $region5: #{tpu_custom_call.1} parent=1 // loop_body
      %s17 = ssub.s32 %s12, 1
      %s18 = ssub.s32 %s12, 2
      %s28 = sadd.s32 1, %s21
      %p29 = scmp.ge.s32.totalorder %s28, 2
      %s30 = scalar_select %p29, 0, %s28
      %s31 = sadd.s32 1, %s20
      %s32 = scalar_select %p29, %s31, %s20
      %p33 = scmp.ge.s32.totalorder %s32, 1
      %s34 = scalar_select %p33, 0, %s32
      %s35 = sadd.s32 1, %s19
      %s36 = scalar_select %p33, %s35, %s19
      %p37 = scmp.ge.s32.totalorder %s36, 1
      %s38 = scalar_select %p37, 0, %s36
      %s39 = ssub.s32 %s19, %s38
      %s40 = ssub.s32 %s20, %s34
      %s41 = sor.u32 %s39, %s40
      %s42 = ssub.s32 %s21, %s30
      %s43 = sor.u32 %s41, %s42
      %p44 = scmp.eq.s32.totalorder %s43, 0
      %s46 = sadd.s32 %s45, 1
      %s47 = scalar_select %p44, %s45, %s46
      %p50 = pneg %p44
      %p51 = scmp.eq.s32.totalorder %s12, 1
      %p52 = por %p50, %p51
      %p53 = scmp.ne.s32.totalorder %s45, %s48
      %p54 = scmp.eq.s32.totalorder %s12, 0
      %p55 = por %p53, %p54
      %p56 = scmp.ne.s32.totalorder %s45, %s48
      %p57 = scmp.eq.s32.totalorder %s17, 1
      %p58 = por %p56, %p57
      %p59 = scmp.ne.s32.totalorder %s48, %s49
      %p60 = scmp.eq.s32.totalorder %s17, 0
      %p61 = por %p59, %p60
      %p62 = scmp.ne.s32.totalorder %s48, %s49
      %p63 = scmp.eq.s32.totalorder %s18, 1
      %p64 = por %p62, %p63
      %p66 = scmp.ne.s32.totalorder %s49, %s65
      %p67 = scmp.eq.s32.totalorder %s18, 0
      %p68 = por %p66, %p67
      %s70 = sadd.s32 %s69, 1
      %p73 = scmp.eq.s32.totalorder %s12, 1
      %p74 = scmp.ne.s32.totalorder %s69, %s71
      %p75 = scmp.eq.s32.totalorder %s12, 0
      %p76 = por %p74, %p75
      %p77 = scmp.ne.s32.totalorder %s69, %s71
      %p78 = scmp.eq.s32.totalorder %s17, 1
      %p79 = por %p77, %p78
      %p80 = scmp.ne.s32.totalorder %s71, %s72
      %p81 = scmp.eq.s32.totalorder %s17, 0
      %p82 = por %p80, %p81
      %p83 = scmp.ne.s32.totalorder %s71, %s72
      %p84 = scmp.eq.s32.totalorder %s18, 1
      %p85 = por %p83, %p84
      %p87 = scmp.ne.s32.totalorder %s72, %s86
      %p88 = scmp.eq.s32.totalorder %s18, 0
      %p89 = por %p87, %p88
      %s91 = sadd.s32 %s90, 1
      %p94 = scmp.eq.s32.totalorder %s12, 1
      %p95 = scmp.ne.s32.totalorder %s90, %s92
      %p96 = scmp.eq.s32.totalorder %s12, 0
      %p97 = por %p95, %p96
      %p98 = scmp.ne.s32.totalorder %s90, %s92
      %p99 = scmp.eq.s32.totalorder %s17, 1
      %p100 = por %p98, %p99
      %p101 = scmp.ne.s32.totalorder %s92, %s93
      %p102 = scmp.eq.s32.totalorder %s17, 0
      %p103 = por %p101, %p102
      %p104 = scmp.ne.s32.totalorder %s92, %s93
      %p105 = scmp.eq.s32.totalorder %s18, 1
      %p106 = por %p104, %p105
      %p108 = scmp.ne.s32.totalorder %s93, %s107
      %p109 = scmp.eq.s32.totalorder %s18, 0
      %p110 = por %p108, %p109
      %s112 = sadd.s32 %s111, 1
      %p115 = scmp.eq.s32.totalorder %s12, 1
      %p116 = scmp.ne.s32.totalorder %s111, %s113
      %p117 = scmp.eq.s32.totalorder %s12, 0
      %p118 = por %p116, %p117
      %p119 = scmp.ne.s32.totalorder %s111, %s113
      %p120 = scmp.eq.s32.totalorder %s17, 1
      %p121 = por %p119, %p120
      %p122 = scmp.ne.s32.totalorder %s113, %s114
      %p123 = scmp.eq.s32.totalorder %s17, 0
      %p124 = por %p122, %p123
      %p125 = scmp.ne.s32.totalorder %s113, %s114
      %p126 = scmp.eq.s32.totalorder %s18, 1
      %p127 = por %p125, %p126
      %p129 = scmp.ne.s32.totalorder %s114, %s128
      %p130 = scmp.eq.s32.totalorder %s18, 0
      %p131 = por %p129, %p130
      %s133 = sadd.s32 %s132, 1
      %p136 = scmp.eq.s32.totalorder %s12, 1
      %p137 = scmp.ne.s32.totalorder %s132, %s134
      %p138 = scmp.eq.s32.totalorder %s12, 0
      %p139 = por %p137, %p138
      %p140 = scmp.ne.s32.totalorder %s132, %s134
      %p141 = scmp.eq.s32.totalorder %s17, 1
      %p142 = por %p140, %p141
      %p143 = scmp.ne.s32.totalorder %s134, %s135
      %p144 = scmp.eq.s32.totalorder %s17, 0
      %p145 = por %p143, %p144
      %p146 = scmp.ne.s32.totalorder %s134, %s135
      %p147 = scmp.eq.s32.totalorder %s18, 1
      %p148 = por %p146, %p147
      %p150 = scmp.ne.s32.totalorder %s135, %s149
      %p151 = scmp.eq.s32.totalorder %s18, 0
      %p152 = por %p150, %p151
      %s153 = ssub.s32 %s19, %s38
      %s154 = ssub.s32 %s20, %s34
      %s155 = sor.u32 %s153, %s154
      %p156 = scmp.eq.s32.totalorder %s155, 0
      %s158 = sadd.s32 %s157, 1
      %s159 = scalar_select %p156, %s157, %s158
      %p162 = pneg %p156
      %p163 = scmp.eq.s32.totalorder %s12, 1
      %p164 = por %p162, %p163
      %p165 = scmp.ne.s32.totalorder %s157, %s160
      %p166 = scmp.eq.s32.totalorder %s12, 0
      %p167 = por %p165, %p166
      %p168 = scmp.ne.s32.totalorder %s157, %s160
      %p169 = scmp.eq.s32.totalorder %s17, 1
      %p170 = por %p168, %p169
      %p171 = scmp.ne.s32.totalorder %s160, %s161
      %p172 = scmp.eq.s32.totalorder %s17, 0
      %p173 = por %p171, %p172
      %p174 = scmp.ne.s32.totalorder %s160, %s161
      %p175 = scmp.eq.s32.totalorder %s18, 1
      %p176 = por %p174, %p175
      %p178 = scmp.ne.s32.totalorder %s161, %s177
      %p179 = scmp.eq.s32.totalorder %s18, 0
      %p180 = por %p178, %p179
      %p181 = scmp.le.s32.totalorder 1, %s12
      %p182 = scmp.lt.s32.totalorder %s12, 3
      %p183 = pnand %p181, %p182
      %p184 = pneg %p183
      // Predicated region
      $region9: #{tpu_custom_call.1} parent=5 // pred_check
        _
      $region10: #{tpu_custom_call.1} parent=5 // pred_check_branch
        %186 = sbr.rel (%p183) target = $region12
      $region11: #{tpu_custom_call.1} parent=5 // pred_region
        %s187 = ssub.s32 %s12, 1
        // Predicated region
        $region13: #{tpu_custom_call.1} parent=11 // pred_check
          %p188 = pneg %p82
        $region14: #{tpu_custom_call.1} parent=11 // pred_check_branch
          %190 = sbr.rel (%p188) target = $region16
        $region15: #{tpu_custom_call.1} parent=11 // pred_region
          _
        $region16: #{tpu_custom_call.1} parent=11 // pred_fallthru
          _
        // Predicated region
        $region17: #{tpu_custom_call.1} parent=11 // pred_check
          %p191 = pneg %p103
        $region18: #{tpu_custom_call.1} parent=11 // pred_check_branch
          %193 = sbr.rel (%p191) target = $region20
        $region19: #{tpu_custom_call.1} parent=11 // pred_region
          _
        $region20: #{tpu_custom_call.1} parent=11 // pred_fallthru
          _
        // Predicated region
        $region21: #{tpu_custom_call.1} parent=11 // pred_check
          %p194 = pneg %p124
        $region22: #{tpu_custom_call.1} parent=11 // pred_check_branch
          %196 = sbr.rel (%p194) target = $region24
        $region23: #{tpu_custom_call.1} parent=11 // pred_region
          _
        $region24: #{tpu_custom_call.1} parent=11 // pred_fallthru
          _
        // Predicated region
        $region25: #{tpu_custom_call.1} parent=11 // pred_check
          %p197 = pneg %p145
        $region26: #{tpu_custom_call.1} parent=11 // pred_check_branch
          %199 = sbr.rel (%p197) target = $region28
        $region27: #{tpu_custom_call.1} parent=11 // pred_region
          _
        $region28: #{tpu_custom_call.1} parent=11 // pred_fallthru
          _
      $region12: #{tpu_custom_call.1} parent=5 // pred_fallthru
        _
      %p200 = scmp.lt.s32.totalorder %s12, 2
      // Predicated region
      $region29: #{tpu_custom_call.1} parent=5 // pred_check
        %p201 = pneg %p200
      $region30: #{tpu_custom_call.1} parent=5 // pred_check_branch
        %203 = sbr.rel (%p201) target = $region32
      $region31: #{tpu_custom_call.1} parent=5 // pred_region
        // Predicated region
        $region33: #{tpu_custom_call.1} parent=31 // pred_check
          %p204 = pneg %p55
        $region34: #{tpu_custom_call.1} parent=31 // pred_check_branch
          %206 = sbr.rel (%p204) target = $region36
        $region35: #{tpu_custom_call.1} parent=31 // pred_region
          %s207 = sand.u32 %s45, 1
          %s208 = sand.u32 %s45, 1
          %s209 = smul.addr %s208, 1024
          %s210 = scalar_lea.vmem [#allocation3], %s209
          %s211 = smul.u32 4, %s19
          %s212 = smul.u32 8, %s20
          %s213 = smul.u32 4, %s21
          %s214 = smul.addr %s212, 8
          %s215 = sadd.s32 %s213, %s214
          %s216 = smul.addr %s211, 64
          %s217 = sadd.s32 %s215, %s216
          %s218 = smul.addr %s217, 8
          %s219 = scalar_lea.vmem %s0, %s218
          // Predicated region
          $region37: #{tpu_custom_call.1} parent=35 // pred_check
            _
          $region38: #{tpu_custom_call.1} parent=35 // pred_check_branch
            %221 = sbr.rel (0) target = $region40
          $region39: #{tpu_custom_call.1} parent=35 // pred_region
            // Predicated region
            $region41: #{tpu_custom_call.1} parent=39 // pred_check
              _
            $region42: #{tpu_custom_call.1} parent=39 // pred_check_branch
              %223 = sbr.rel (0) target = $region44
            $region43: #{tpu_custom_call.1} parent=39 // pred_region
              // Predicated region
              $region56: #{tpu_custom_call.1} parent=43 // pred_check
                _
              $region57: #{tpu_custom_call.1} parent=43 // pred_check_branch
                %493 = sbr.rel (0) target = $region59
              $region58: #{tpu_custom_call.1} parent=43 // pred_region
                loop: start=0, step=1, limit=1
                $region60: #{tpu_custom_call.1} parent=58 // loop_pre_header
                  _
                $region61: #{tpu_custom_call.1} parent=58 // loop_header
                  %s495 = sphi 0, %s499
                  %p496 = scmp.ge.s32.totalorder %s495, 1
                  %s500 = sphi %s219, %s219
                  %s501 = sphi %s210, %s210
                $region62: #{tpu_custom_call.1} parent=58 // loop_header_branch
                  %498 = sbr.rel (%p496) target = $region66
                $region63: #{tpu_custom_call.1} parent=58 // loop_body
                  %v502 = vld [vmem:[%s500] sm:$0xff]
                  %503 = vst [vmem:[%s501] sm:$0xff] %v502
                  %v504 = vld [vmem:[%s500 + $0x8] sm:$0xff]
                  %505 = vst [vmem:[%s501 + $0x8] sm:$0xff] %v504
                  %v506 = vld [vmem:[%s500 + $0x10] sm:$0xff]
                  %507 = vst [vmem:[%s501 + $0x10] sm:$0xff] %v506
                  %v508 = vld [vmem:[%s500 + $0x18] sm:$0xff]
                  %509 = vst [vmem:[%s501 + $0x18] sm:$0xff] %v508
                  %v510 = vld [vmem:[%s500 + $0x40] sm:$0xff]
                  %511 = vst [vmem:[%s501 + $0x20] sm:$0xff] %v510
                  %v512 = vld [vmem:[%s500 + $0x48] sm:$0xff]
                  %513 = vst [vmem:[%s501 + $0x28] sm:$0xff] %v512
                  %v514 = vld [vmem:[%s500 + $0x50] sm:$0xff]
                  %515 = vst [vmem:[%s501 + $0x30] sm:$0xff] %v514
                  %v516 = vld [vmem:[%s500 + $0x58] sm:$0xff]
                  %517 = vst [vmem:[%s501 + $0x38] sm:$0xff] %v516
                  %v518 = vld [vmem:[%s500 + $0x80] sm:$0xff]
                  %519 = vst [vmem:[%s501 + $0x40] sm:$0xff] %v518
                  %v520 = vld [vmem:[%s500 + $0x88] sm:$0xff]
                  %521 = vst [vmem:[%s501 + $0x48] sm:$0xff] %v520
                  %v522 = vld [vmem:[%s500 + $0x90] sm:$0xff]
                  %523 = vst [vmem:[%s501 + $0x50] sm:$0xff] %v522
                  %v524 = vld [vmem:[%s500 + $0x98] sm:$0xff]
                  %525 = vst [vmem:[%s501 + $0x58] sm:$0xff] %v524
                  %v526 = vld [vmem:[%s500 + $0xc0] sm:$0xff]
                  %527 = vst [vmem:[%s501 + $0x60] sm:$0xff] %v526
                  %v528 = vld [vmem:[%s500 + $0xc8] sm:$0xff]
                  %529 = vst [vmem:[%s501 + $0x68] sm:$0xff] %v528
                  %v530 = vld [vmem:[%s500 + $0xd0] sm:$0xff]
                  %531 = vst [vmem:[%s501 + $0x70] sm:$0xff] %v530
                  %v532 = vld [vmem:[%s500 + $0xd8] sm:$0xff]
                  %533 = vst [vmem:[%s501 + $0x78] sm:$0xff] %v532
                  %v534 = vld [vmem:[%s500 + $0x100] sm:$0xff]
                  %535 = vst [vmem:[%s501 + $0x80] sm:$0xff] %v534
                  %v536 = vld [vmem:[%s500 + $0x108] sm:$0xff]
                  %537 = vst [vmem:[%s501 + $0x88] sm:$0xff] %v536
                  %v538 = vld [vmem:[%s500 + $0x110] sm:$0xff]
                  %539 = vst [vmem:[%s501 + $0x90] sm:$0xff] %v538
                  %v540 = vld [vmem:[%s500 + $0x118] sm:$0xff]
                  %541 = vst [vmem:[%s501 + $0x98] sm:$0xff] %v540
                  %v542 = vld [vmem:[%s500 + $0x140] sm:$0xff]
                  %543 = vst [vmem:[%s501 + $0xa0] sm:$0xff] %v542
                  %v544 = vld [vmem:[%s500 + $0x148] sm:$0xff]
                  %545 = vst [vmem:[%s501 + $0xa8] sm:$0xff] %v544
                  %v546 = vld [vmem:[%s500 + $0x150] sm:$0xff]
                  %547 = vst [vmem:[%s501 + $0xb0] sm:$0xff] %v546
                  %v548 = vld [vmem:[%s500 + $0x158] sm:$0xff]
                  %549 = vst [vmem:[%s501 + $0xb8] sm:$0xff] %v548
                  %v550 = vld [vmem:[%s500 + $0x180] sm:$0xff]
                  %551 = vst [vmem:[%s501 + $0xc0] sm:$0xff] %v550
                  %v552 = vld [vmem:[%s500 + $0x188] sm:$0xff]
                  %553 = vst [vmem:[%s501 + $0xc8] sm:$0xff] %v552
                  %v554 = vld [vmem:[%s500 + $0x190] sm:$0xff]
                  %555 = vst [vmem:[%s501 + $0xd0] sm:$0xff] %v554
                  %v556 = vld [vmem:[%s500 + $0x198] sm:$0xff]
                  %557 = vst [vmem:[%s501 + $0xd8] sm:$0xff] %v556
                  %v558 = vld [vmem:[%s500 + $0x1c0] sm:$0xff]
                  %559 = vst [vmem:[%s501 + $0xe0] sm:$0xff] %v558
                  %v560 = vld [vmem:[%s500 + $0x1c8] sm:$0xff]
                  %561 = vst [vmem:[%s501 + $0xe8] sm:$0xff] %v560
                  %v562 = vld [vmem:[%s500 + $0x1d0] sm:$0xff]
                  %563 = vst [vmem:[%s501 + $0xf0] sm:$0xff] %v562
                  %v564 = vld [vmem:[%s500 + $0x1d8] sm:$0xff]
                  %565 = vst [vmem:[%s501 + $0xf8] sm:$0xff] %v564
                  %v566 = vld [vmem:[%s500 + $0x200] sm:$0xff]
                  %567 = vst [vmem:[%s501 + $0x100] sm:$0xff] %v566
                  %v568 = vld [vmem:[%s500 + $0x208] sm:$0xff]
                  %569 = vst [vmem:[%s501 + $0x108] sm:$0xff] %v568
                  %v570 = vld [vmem:[%s500 + $0x210] sm:$0xff]
                  %571 = vst [vmem:[%s501 + $0x110] sm:$0xff] %v570
                  %v572 = vld [vmem:[%s500 + $0x218] sm:$0xff]
                  %573 = vst [vmem:[%s501 + $0x118] sm:$0xff] %v572
                  %v574 = vld [vmem:[%s500 + $0x240] sm:$0xff]
                  %575 = vst [vmem:[%s501 + $0x120] sm:$0xff] %v574
                  %v576 = vld [vmem:[%s500 + $0x248] sm:$0xff]
                  %577 = vst [vmem:[%s501 + $0x128] sm:$0xff] %v576
                  %v578 = vld [vmem:[%s500 + $0x250] sm:$0xff]
                  %579 = vst [vmem:[%s501 + $0x130] sm:$0xff] %v578
                  %v580 = vld [vmem:[%s500 + $0x258] sm:$0xff]
                  %581 = vst [vmem:[%s501 + $0x138] sm:$0xff] %v580
                  %v582 = vld [vmem:[%s500 + $0x280] sm:$0xff]
                  %583 = vst [vmem:[%s501 + $0x140] sm:$0xff] %v582
                  %v584 = vld [vmem:[%s500 + $0x288] sm:$0xff]
                  %585 = vst [vmem:[%s501 + $0x148] sm:$0xff] %v584
                  %v586 = vld [vmem:[%s500 + $0x290] sm:$0xff]
                  %587 = vst [vmem:[%s501 + $0x150] sm:$0xff] %v586
                  %v588 = vld [vmem:[%s500 + $0x298] sm:$0xff]
                  %589 = vst [vmem:[%s501 + $0x158] sm:$0xff] %v588
                  %v590 = vld [vmem:[%s500 + $0x2c0] sm:$0xff]
                  %591 = vst [vmem:[%s501 + $0x160] sm:$0xff] %v590
                  %v592 = vld [vmem:[%s500 + $0x2c8] sm:$0xff]
                  %593 = vst [vmem:[%s501 + $0x168] sm:$0xff] %v592
                  %v594 = vld [vmem:[%s500 + $0x2d0] sm:$0xff]
                  %595 = vst [vmem:[%s501 + $0x170] sm:$0xff] %v594
                  %v596 = vld [vmem:[%s500 + $0x2d8] sm:$0xff]
                  %597 = vst [vmem:[%s501 + $0x178] sm:$0xff] %v596
                  %v598 = vld [vmem:[%s500 + $0x300] sm:$0xff]
                  %599 = vst [vmem:[%s501 + $0x180] sm:$0xff] %v598
                  %v600 = vld [vmem:[%s500 + $0x308] sm:$0xff]
                  %601 = vst [vmem:[%s501 + $0x188] sm:$0xff] %v600
                  %v602 = vld [vmem:[%s500 + $0x310] sm:$0xff]
                  %603 = vst [vmem:[%s501 + $0x190] sm:$0xff] %v602
                  %v604 = vld [vmem:[%s500 + $0x318] sm:$0xff]
                  %605 = vst [vmem:[%s501 + $0x198] sm:$0xff] %v604
                  %v606 = vld [vmem:[%s500 + $0x340] sm:$0xff]
                  %607 = vst [vmem:[%s501 + $0x1a0] sm:$0xff] %v606
                  %v608 = vld [vmem:[%s500 + $0x348] sm:$0xff]
                  %609 = vst [vmem:[%s501 + $0x1a8] sm:$0xff] %v608
                  %v610 = vld [vmem:[%s500 + $0x350] sm:$0xff]
                  %611 = vst [vmem:[%s501 + $0x1b0] sm:$0xff] %v610
                  %v612 = vld [vmem:[%s500 + $0x358] sm:$0xff]
                  %613 = vst [vmem:[%s501 + $0x1b8] sm:$0xff] %v612
                  %v614 = vld [vmem:[%s500 + $0x380] sm:$0xff]
                  %615 = vst [vmem:[%s501 + $0x1c0] sm:$0xff] %v614
                  %v616 = vld [vmem:[%s500 + $0x388] sm:$0xff]
                  %617 = vst [vmem:[%s501 + $0x1c8] sm:$0xff] %v616
                  %v618 = vld [vmem:[%s500 + $0x390] sm:$0xff]
                  %619 = vst [vmem:[%s501 + $0x1d0] sm:$0xff] %v618
                  %v620 = vld [vmem:[%s500 + $0x398] sm:$0xff]
                  %621 = vst [vmem:[%s501 + $0x1d8] sm:$0xff] %v620
                  %v622 = vld [vmem:[%s500 + $0x3c0] sm:$0xff]
                  %623 = vst [vmem:[%s501 + $0x1e0] sm:$0xff] %v622
                  %v624 = vld [vmem:[%s500 + $0x3c8] sm:$0xff]
                  %625 = vst [vmem:[%s501 + $0x1e8] sm:$0xff] %v624
                  %v626 = vld [vmem:[%s500 + $0x3d0] sm:$0xff]
                  %627 = vst [vmem:[%s501 + $0x1f0] sm:$0xff] %v626
                  %v628 = vld [vmem:[%s500 + $0x3d8] sm:$0xff]
                  %629 = vst [vmem:[%s501 + $0x1f8] sm:$0xff] %v628
                  %v630 = vld [vmem:[%s500 + $0x400] sm:$0xff]
                  %631 = vst [vmem:[%s501 + $0x200] sm:$0xff] %v630
                  %v632 = vld [vmem:[%s500 + $0x408] sm:$0xff]
                  %633 = vst [vmem:[%s501 + $0x208] sm:$0xff] %v632
                  %v634 = vld [vmem:[%s500 + $0x410] sm:$0xff]
                  %635 = vst [vmem:[%s501 + $0x210] sm:$0xff] %v634
                  %v636 = vld [vmem:[%s500 + $0x418] sm:$0xff]
                  %637 = vst [vmem:[%s501 + $0x218] sm:$0xff] %v636
                  %v638 = vld [vmem:[%s500 + $0x440] sm:$0xff]
                  %639 = vst [vmem:[%s501 + $0x220] sm:$0xff] %v638
                  %v640 = vld [vmem:[%s500 + $0x448] sm:$0xff]
                  %641 = vst [vmem:[%s501 + $0x228] sm:$0xff] %v640
                  %v642 = vld [vmem:[%s500 + $0x450] sm:$0xff]
                  %643 = vst [vmem:[%s501 + $0x230] sm:$0xff] %v642
                  %v644 = vld [vmem:[%s500 + $0x458] sm:$0xff]
                  %645 = vst [vmem:[%s501 + $0x238] sm:$0xff] %v644
                  %v646 = vld [vmem:[%s500 + $0x480] sm:$0xff]
                  %647 = vst [vmem:[%s501 + $0x240] sm:$0xff] %v646
                  %v648 = vld [vmem:[%s500 + $0x488] sm:$0xff]
                  %649 = vst [vmem:[%s501 + $0x248] sm:$0xff] %v648
                  %v650 = vld [vmem:[%s500 + $0x490] sm:$0xff]
                  %651 = vst [vmem:[%s501 + $0x250] sm:$0xff] %v650
                  %v652 = vld [vmem:[%s500 + $0x498] sm:$0xff]
                  %653 = vst [vmem:[%s501 + $0x258] sm:$0xff] %v652
                  %v654 = vld [vmem:[%s500 + $0x4c0] sm:$0xff]
                  %655 = vst [vmem:[%s501 + $0x260] sm:$0xff] %v654
                  %v656 = vld [vmem:[%s500 + $0x4c8] sm:$0xff]
                  %657 = vst [vmem:[%s501 + $0x268] sm:$0xff] %v656
                  %v658 = vld [vmem:[%s500 + $0x4d0] sm:$0xff]
                  %659 = vst [vmem:[%s501 + $0x270] sm:$0xff] %v658
                  %v660 = vld [vmem:[%s500 + $0x4d8] sm:$0xff]
                  %661 = vst [vmem:[%s501 + $0x278] sm:$0xff] %v660
                  %v662 = vld [vmem:[%s500 + $0x500] sm:$0xff]
                  %663 = vst [vmem:[%s501 + $0x280] sm:$0xff] %v662
                  %v664 = vld [vmem:[%s500 + $0x508] sm:$0xff]
                  %665 = vst [vmem:[%s501 + $0x288] sm:$0xff] %v664
                  %v666 = vld [vmem:[%s500 + $0x510] sm:$0xff]
                  %667 = vst [vmem:[%s501 + $0x290] sm:$0xff] %v666
                  %v668 = vld [vmem:[%s500 + $0x518] sm:$0xff]
                  %669 = vst [vmem:[%s501 + $0x298] sm:$0xff] %v668
                  %v670 = vld [vmem:[%s500 + $0x540] sm:$0xff]
                  %671 = vst [vmem:[%s501 + $0x2a0] sm:$0xff] %v670
                  %v672 = vld [vmem:[%s500 + $0x548] sm:$0xff]
                  %673 = vst [vmem:[%s501 + $0x2a8] sm:$0xff] %v672
                  %v674 = vld [vmem:[%s500 + $0x550] sm:$0xff]
                  %675 = vst [vmem:[%s501 + $0x2b0] sm:$0xff] %v674
                  %v676 = vld [vmem:[%s500 + $0x558] sm:$0xff]
                  %677 = vst [vmem:[%s501 + $0x2b8] sm:$0xff] %v676
                  %v678 = vld [vmem:[%s500 + $0x580] sm:$0xff]
                  %679 = vst [vmem:[%s501 + $0x2c0] sm:$0xff] %v678
                  %v680 = vld [vmem:[%s500 + $0x588] sm:$0xff]
                  %681 = vst [vmem:[%s501 + $0x2c8] sm:$0xff] %v680
                  %v682 = vld [vmem:[%s500 + $0x590] sm:$0xff]
                  %683 = vst [vmem:[%s501 + $0x2d0] sm:$0xff] %v682
                  %v684 = vld [vmem:[%s500 + $0x598] sm:$0xff]
                  %685 = vst [vmem:[%s501 + $0x2d8] sm:$0xff] %v684
                  %v686 = vld [vmem:[%s500 + $0x5c0] sm:$0xff]
                  %687 = vst [vmem:[%s501 + $0x2e0] sm:$0xff] %v686
                  %v688 = vld [vmem:[%s500 + $0x5c8] sm:$0xff]
                  %689 = vst [vmem:[%s501 + $0x2e8] sm:$0xff] %v688
                  %v690 = vld [vmem:[%s500 + $0x5d0] sm:$0xff]
                  %691 = vst [vmem:[%s501 + $0x2f0] sm:$0xff] %v690
                  %v692 = vld [vmem:[%s500 + $0x5d8] sm:$0xff]
                  %693 = vst [vmem:[%s501 + $0x2f8] sm:$0xff] %v692
                  %v694 = vld [vmem:[%s500 + $0x600] sm:$0xff]
                  %695 = vst [vmem:[%s501 + $0x300] sm:$0xff] %v694
                  %v696 = vld [vmem:[%s500 + $0x608] sm:$0xff]
                  %697 = vst [vmem:[%s501 + $0x308] sm:$0xff] %v696
                  %v698 = vld [vmem:[%s500 + $0x610] sm:$0xff]
                  %699 = vst [vmem:[%s501 + $0x310] sm:$0xff] %v698
                  %v700 = vld [vmem:[%s500 + $0x618] sm:$0xff]
                  %701 = vst [vmem:[%s501 + $0x318] sm:$0xff] %v700
                  %v702 = vld [vmem:[%s500 + $0x640] sm:$0xff]
                  %703 = vst [vmem:[%s501 + $0x320] sm:$0xff] %v702
                  %v704 = vld [vmem:[%s500 + $0x648] sm:$0xff]
                  %705 = vst [vmem:[%s501 + $0x328] sm:$0xff] %v704
                  %v706 = vld [vmem:[%s500 + $0x650] sm:$0xff]
                  %707 = vst [vmem:[%s501 + $0x330] sm:$0xff] %v706
                  %v708 = vld [vmem:[%s500 + $0x658] sm:$0xff]
                  %709 = vst [vmem:[%s501 + $0x338] sm:$0xff] %v708
                  %v710 = vld [vmem:[%s500 + $0x680] sm:$0xff]
                  %711 = vst [vmem:[%s501 + $0x340] sm:$0xff] %v710
                  %v712 = vld [vmem:[%s500 + $0x688] sm:$0xff]
                  %713 = vst [vmem:[%s501 + $0x348] sm:$0xff] %v712
                  %v714 = vld [vmem:[%s500 + $0x690] sm:$0xff]
                  %715 = vst [vmem:[%s501 + $0x350] sm:$0xff] %v714
                  %v716 = vld [vmem:[%s500 + $0x698] sm:$0xff]
                  %717 = vst [vmem:[%s501 + $0x358] sm:$0xff] %v716
                  %v718 = vld [vmem:[%s500 + $0x6c0] sm:$0xff]
                  %719 = vst [vmem:[%s501 + $0x360] sm:$0xff] %v718
                  %v720 = vld [vmem:[%s500 + $0x6c8] sm:$0xff]
                  %721 = vst [vmem:[%s501 + $0x368] sm:$0xff] %v720
                  %v722 = vld [vmem:[%s500 + $0x6d0] sm:$0xff]
                  %723 = vst [vmem:[%s501 + $0x370] sm:$0xff] %v722
                  %v724 = vld [vmem:[%s500 + $0x6d8] sm:$0xff]
                  %725 = vst [vmem:[%s501 + $0x378] sm:$0xff] %v724
                  %v726 = vld [vmem:[%s500 + $0x700] sm:$0xff]
                  %727 = vst [vmem:[%s501 + $0x380] sm:$0xff] %v726
                  %v728 = vld [vmem:[%s500 + $0x708] sm:$0xff]
                  %729 = vst [vmem:[%s501 + $0x388] sm:$0xff] %v728
                  %v730 = vld [vmem:[%s500 + $0x710] sm:$0xff]
                  %731 = vst [vmem:[%s501 + $0x390] sm:$0xff] %v730
                  %v732 = vld [vmem:[%s500 + $0x718] sm:$0xff]
                  %733 = vst [vmem:[%s501 + $0x398] sm:$0xff] %v732
                  %v734 = vld [vmem:[%s500 + $0x740] sm:$0xff]
                  %735 = vst [vmem:[%s501 + $0x3a0] sm:$0xff] %v734
                  %v736 = vld [vmem:[%s500 + $0x748] sm:$0xff]
                  %737 = vst [vmem:[%s501 + $0x3a8] sm:$0xff] %v736
                  %v738 = vld [vmem:[%s500 + $0x750] sm:$0xff]
                  %739 = vst [vmem:[%s501 + $0x3b0] sm:$0xff] %v738
                  %v740 = vld [vmem:[%s500 + $0x758] sm:$0xff]
                  %741 = vst [vmem:[%s501 + $0x3b8] sm:$0xff] %v740
                  %v742 = vld [vmem:[%s500 + $0x780] sm:$0xff]
                  %743 = vst [vmem:[%s501 + $0x3c0] sm:$0xff] %v742
                  %v744 = vld [vmem:[%s500 + $0x788] sm:$0xff]
                  %745 = vst [vmem:[%s501 + $0x3c8] sm:$0xff] %v744
                  %v746 = vld [vmem:[%s500 + $0x790] sm:$0xff]
                  %747 = vst [vmem:[%s501 + $0x3d0] sm:$0xff] %v746
                  %v748 = vld [vmem:[%s500 + $0x798] sm:$0xff]
                  %749 = vst [vmem:[%s501 + $0x3d8] sm:$0xff] %v748
                  %v750 = vld [vmem:[%s500 + $0x7c0] sm:$0xff]
                  %751 = vst [vmem:[%s501 + $0x3e0] sm:$0xff] %v750
                  %v752 = vld [vmem:[%s500 + $0x7c8] sm:$0xff]
                  %753 = vst [vmem:[%s501 + $0x3e8] sm:$0xff] %v752
                  %v754 = vld [vmem:[%s500 + $0x7d0] sm:$0xff]
                  %755 = vst [vmem:[%s501 + $0x3f0] sm:$0xff] %v754
                  %v756 = vld [vmem:[%s500 + $0x7d8] sm:$0xff]
                  %757 = vst [vmem:[%s501 + $0x3f8] sm:$0xff] %v756
                $region64: #{tpu_custom_call.1} parent=58 // loop_footer
                  %s499 = sadd.s32 1, %s495
                $region65: #{tpu_custom_call.1} parent=58 // loop_footer_branch
                  %494 = sbr.rel target = $region61
                $region66: #{tpu_custom_call.1} parent=58 // loop_exit
                  _
              $region59: #{tpu_custom_call.1} parent=43 // pred_fallthru
                _
              // Predicated region
              $region67: #{tpu_custom_call.1} parent=43 // pred_check
                _
              $region68: #{tpu_custom_call.1} parent=43 // pred_check_branch
                %759 = sbr.rel target = $region70
              $region69: #{tpu_custom_call.1} parent=43 // pred_region
                _
              $region70: #{tpu_custom_call.1} parent=43 // pred_fallthru
                _
            $region44: #{tpu_custom_call.1} parent=39 // pred_fallthru
              _
            // Predicated region
            $region45: #{tpu_custom_call.1} parent=39 // pred_check
              _
            $region46: #{tpu_custom_call.1} parent=39 // pred_check_branch
              %225 = sbr.rel target = $region48
            $region47: #{tpu_custom_call.1} parent=39 // pred_region
              %s227 = ssub.s32 256, 1
              loop: start=0, step=1, limit=1
              $region49: #{tpu_custom_call.1} parent=47 // loop_pre_header
                _
              $region50: #{tpu_custom_call.1} parent=47 // loop_header
                %s229 = sphi 0, %s233
                %p230 = scmp.ge.s32.totalorder %s229, 1
                %s234 = sphi %s219, %s219
                %s235 = sphi %s210, %s210
              $region51: #{tpu_custom_call.1} parent=47 // loop_header_branch
                %232 = sbr.rel (%p230) target = $region55
              $region52: #{tpu_custom_call.1} parent=47 // loop_body
                %v236 = vld [vmem:[%s234] sm:%s227]
                %237 = vst [vmem:[%s235] sm:%s227] %v236
                %v238 = vld [vmem:[%s234 + $0x8] sm:%s227]
                %239 = vst [vmem:[%s235 + $0x8] sm:%s227] %v238
                %v240 = vld [vmem:[%s234 + $0x10] sm:%s227]
                %241 = vst [vmem:[%s235 + $0x10] sm:%s227] %v240
                %v242 = vld [vmem:[%s234 + $0x18] sm:%s227]
                %243 = vst [vmem:[%s235 + $0x18] sm:%s227] %v242
                %v244 = vld [vmem:[%s234 + $0x40] sm:%s227]
                %245 = vst [vmem:[%s235 + $0x20] sm:%s227] %v244
                %v246 = vld [vmem:[%s234 + $0x48] sm:%s227]
                %247 = vst [vmem:[%s235 + $0x28] sm:%s227] %v246
                %v248 = vld [vmem:[%s234 + $0x50] sm:%s227]
                %249 = vst [vmem:[%s235 + $0x30] sm:%s227] %v248
                %v250 = vld [vmem:[%s234 + $0x58] sm:%s227]
                %251 = vst [vmem:[%s235 + $0x38] sm:%s227] %v250
                %v252 = vld [vmem:[%s234 + $0x80] sm:%s227]
                %253 = vst [vmem:[%s235 + $0x40] sm:%s227] %v252
                %v254 = vld [vmem:[%s234 + $0x88] sm:%s227]
                %255 = vst [vmem:[%s235 + $0x48] sm:%s227] %v254
                %v256 = vld [vmem:[%s234 + $0x90] sm:%s227]
                %257 = vst [vmem:[%s235 + $0x50] sm:%s227] %v256
                %v258 = vld [vmem:[%s234 + $0x98] sm:%s227]
                %259 = vst [vmem:[%s235 + $0x58] sm:%s227] %v258
                %v260 = vld [vmem:[%s234 + $0xc0] sm:%s227]
                %261 = vst [vmem:[%s235 + $0x60] sm:%s227] %v260
                %v262 = vld [vmem:[%s234 + $0xc8] sm:%s227]
                %263 = vst [vmem:[%s235 + $0x68] sm:%s227] %v262
                %v264 = vld [vmem:[%s234 + $0xd0] sm:%s227]
                %265 = vst [vmem:[%s235 + $0x70] sm:%s227] %v264
                %v266 = vld [vmem:[%s234 + $0xd8] sm:%s227]
                %267 = vst [vmem:[%s235 + $0x78] sm:%s227] %v266
                %v268 = vld [vmem:[%s234 + $0x100] sm:%s227]
                %269 = vst [vmem:[%s235 + $0x80] sm:%s227] %v268
                %v270 = vld [vmem:[%s234 + $0x108] sm:%s227]
                %271 = vst [vmem:[%s235 + $0x88] sm:%s227] %v270
                %v272 = vld [vmem:[%s234 + $0x110] sm:%s227]
                %273 = vst [vmem:[%s235 + $0x90] sm:%s227] %v272
                %v274 = vld [vmem:[%s234 + $0x118] sm:%s227]
                %275 = vst [vmem:[%s235 + $0x98] sm:%s227] %v274
                %v276 = vld [vmem:[%s234 + $0x140] sm:%s227]
                %277 = vst [vmem:[%s235 + $0xa0] sm:%s227] %v276
                %v278 = vld [vmem:[%s234 + $0x148] sm:%s227]
                %279 = vst [vmem:[%s235 + $0xa8] sm:%s227] %v278
                %v280 = vld [vmem:[%s234 + $0x150] sm:%s227]
                %281 = vst [vmem:[%s235 + $0xb0] sm:%s227] %v280
                %v282 = vld [vmem:[%s234 + $0x158] sm:%s227]
                %283 = vst [vmem:[%s235 + $0xb8] sm:%s227] %v282
                %v284 = vld [vmem:[%s234 + $0x180] sm:%s227]
                %285 = vst [vmem:[%s235 + $0xc0] sm:%s227] %v284
                %v286 = vld [vmem:[%s234 + $0x188] sm:%s227]
                %287 = vst [vmem:[%s235 + $0xc8] sm:%s227] %v286
                %v288 = vld [vmem:[%s234 + $0x190] sm:%s227]
                %289 = vst [vmem:[%s235 + $0xd0] sm:%s227] %v288
                %v290 = vld [vmem:[%s234 + $0x198] sm:%s227]
                %291 = vst [vmem:[%s235 + $0xd8] sm:%s227] %v290
                %v292 = vld [vmem:[%s234 + $0x1c0] sm:%s227]
                %293 = vst [vmem:[%s235 + $0xe0] sm:%s227] %v292
                %v294 = vld [vmem:[%s234 + $0x1c8] sm:%s227]
                %295 = vst [vmem:[%s235 + $0xe8] sm:%s227] %v294
                %v296 = vld [vmem:[%s234 + $0x1d0] sm:%s227]
                %297 = vst [vmem:[%s235 + $0xf0] sm:%s227] %v296
                %v298 = vld [vmem:[%s234 + $0x1d8] sm:%s227]
                %299 = vst [vmem:[%s235 + $0xf8] sm:%s227] %v298
                %v300 = vld [vmem:[%s234 + $0x200] sm:%s227]
                %301 = vst [vmem:[%s235 + $0x100] sm:%s227] %v300
                %v302 = vld [vmem:[%s234 + $0x208] sm:%s227]
                %303 = vst [vmem:[%s235 + $0x108] sm:%s227] %v302
                %v304 = vld [vmem:[%s234 + $0x210] sm:%s227]
                %305 = vst [vmem:[%s235 + $0x110] sm:%s227] %v304
                %v306 = vld [vmem:[%s234 + $0x218] sm:%s227]
                %307 = vst [vmem:[%s235 + $0x118] sm:%s227] %v306
                %v308 = vld [vmem:[%s234 + $0x240] sm:%s227]
                %309 = vst [vmem:[%s235 + $0x120] sm:%s227] %v308
                %v310 = vld [vmem:[%s234 + $0x248] sm:%s227]
                %311 = vst [vmem:[%s235 + $0x128] sm:%s227] %v310
                %v312 = vld [vmem:[%s234 + $0x250] sm:%s227]
                %313 = vst [vmem:[%s235 + $0x130] sm:%s227] %v312
                %v314 = vld [vmem:[%s234 + $0x258] sm:%s227]
                %315 = vst [vmem:[%s235 + $0x138] sm:%s227] %v314
                %v316 = vld [vmem:[%s234 + $0x280] sm:%s227]
                %317 = vst [vmem:[%s235 + $0x140] sm:%s227] %v316
                %v318 = vld [vmem:[%s234 + $0x288] sm:%s227]
                %319 = vst [vmem:[%s235 + $0x148] sm:%s227] %v318
                %v320 = vld [vmem:[%s234 + $0x290] sm:%s227]
                %321 = vst [vmem:[%s235 + $0x150] sm:%s227] %v320
                %v322 = vld [vmem:[%s234 + $0x298] sm:%s227]
                %323 = vst [vmem:[%s235 + $0x158] sm:%s227] %v322
                %v324 = vld [vmem:[%s234 + $0x2c0] sm:%s227]
                %325 = vst [vmem:[%s235 + $0x160] sm:%s227] %v324
                %v326 = vld [vmem:[%s234 + $0x2c8] sm:%s227]
                %327 = vst [vmem:[%s235 + $0x168] sm:%s227] %v326
                %v328 = vld [vmem:[%s234 + $0x2d0] sm:%s227]
                %329 = vst [vmem:[%s235 + $0x170] sm:%s227] %v328
                %v330 = vld [vmem:[%s234 + $0x2d8] sm:%s227]
                %331 = vst [vmem:[%s235 + $0x178] sm:%s227] %v330
                %v332 = vld [vmem:[%s234 + $0x300] sm:%s227]
                %333 = vst [vmem:[%s235 + $0x180] sm:%s227] %v332
                %v334 = vld [vmem:[%s234 + $0x308] sm:%s227]
                %335 = vst [vmem:[%s235 + $0x188] sm:%s227] %v334
                %v336 = vld [vmem:[%s234 + $0x310] sm:%s227]
                %337 = vst [vmem:[%s235 + $0x190] sm:%s227] %v336
                %v338 = vld [vmem:[%s234 + $0x318] sm:%s227]
                %339 = vst [vmem:[%s235 + $0x198] sm:%s227] %v338
                %v340 = vld [vmem:[%s234 + $0x340] sm:%s227]
                %341 = vst [vmem:[%s235 + $0x1a0] sm:%s227] %v340
                %v342 = vld [vmem:[%s234 + $0x348] sm:%s227]
                %343 = vst [vmem:[%s235 + $0x1a8] sm:%s227] %v342
                %v344 = vld [vmem:[%s234 + $0x350] sm:%s227]
                %345 = vst [vmem:[%s235 + $0x1b0] sm:%s227] %v344
                %v346 = vld [vmem:[%s234 + $0x358] sm:%s227]
                %347 = vst [vmem:[%s235 + $0x1b8] sm:%s227] %v346
                %v348 = vld [vmem:[%s234 + $0x380] sm:%s227]
                %349 = vst [vmem:[%s235 + $0x1c0] sm:%s227] %v348
                %v350 = vld [vmem:[%s234 + $0x388] sm:%s227]
                %351 = vst [vmem:[%s235 + $0x1c8] sm:%s227] %v350
                %v352 = vld [vmem:[%s234 + $0x390] sm:%s227]
                %353 = vst [vmem:[%s235 + $0x1d0] sm:%s227] %v352
                %v354 = vld [vmem:[%s234 + $0x398] sm:%s227]
                %355 = vst [vmem:[%s235 + $0x1d8] sm:%s227] %v354
                %v356 = vld [vmem:[%s234 + $0x3c0] sm:%s227]
                %357 = vst [vmem:[%s235 + $0x1e0] sm:%s227] %v356
                %v358 = vld [vmem:[%s234 + $0x3c8] sm:%s227]
                %359 = vst [vmem:[%s235 + $0x1e8] sm:%s227] %v358
                %v360 = vld [vmem:[%s234 + $0x3d0] sm:%s227]
                %361 = vst [vmem:[%s235 + $0x1f0] sm:%s227] %v360
                %v362 = vld [vmem:[%s234 + $0x3d8] sm:%s227]
                %363 = vst [vmem:[%s235 + $0x1f8] sm:%s227] %v362
                %v364 = vld [vmem:[%s234 + $0x400] sm:%s227]
                %365 = vst [vmem:[%s235 + $0x200] sm:%s227] %v364
                %v366 = vld [vmem:[%s234 + $0x408] sm:%s227]
                %367 = vst [vmem:[%s235 + $0x208] sm:%s227] %v366
                %v368 = vld [vmem:[%s234 + $0x410] sm:%s227]
                %369 = vst [vmem:[%s235 + $0x210] sm:%s227] %v368
                %v370 = vld [vmem:[%s234 + $0x418] sm:%s227]
                %371 = vst [vmem:[%s235 + $0x218] sm:%s227] %v370
                %v372 = vld [vmem:[%s234 + $0x440] sm:%s227]
                %373 = vst [vmem:[%s235 + $0x220] sm:%s227] %v372
                %v374 = vld [vmem:[%s234 + $0x448] sm:%s227]
                %375 = vst [vmem:[%s235 + $0x228] sm:%s227] %v374
                %v376 = vld [vmem:[%s234 + $0x450] sm:%s227]
                %377 = vst [vmem:[%s235 + $0x230] sm:%s227] %v376
                %v378 = vld [vmem:[%s234 + $0x458] sm:%s227]
                %379 = vst [vmem:[%s235 + $0x238] sm:%s227] %v378
                %v380 = vld [vmem:[%s234 + $0x480] sm:%s227]
                %381 = vst [vmem:[%s235 + $0x240] sm:%s227] %v380
                %v382 = vld [vmem:[%s234 + $0x488] sm:%s227]
                %383 = vst [vmem:[%s235 + $0x248] sm:%s227] %v382
                %v384 = vld [vmem:[%s234 + $0x490] sm:%s227]
                %385 = vst [vmem:[%s235 + $0x250] sm:%s227] %v384
                %v386 = vld [vmem:[%s234 + $0x498] sm:%s227]
                %387 = vst [vmem:[%s235 + $0x258] sm:%s227] %v386
                %v388 = vld [vmem:[%s234 + $0x4c0] sm:%s227]
                %389 = vst [vmem:[%s235 + $0x260] sm:%s227] %v388
                %v390 = vld [vmem:[%s234 + $0x4c8] sm:%s227]
                %391 = vst [vmem:[%s235 + $0x268] sm:%s227] %v390
                %v392 = vld [vmem:[%s234 + $0x4d0] sm:%s227]
                %393 = vst [vmem:[%s235 + $0x270] sm:%s227] %v392
                %v394 = vld [vmem:[%s234 + $0x4d8] sm:%s227]
                %395 = vst [vmem:[%s235 + $0x278] sm:%s227] %v394
                %v396 = vld [vmem:[%s234 + $0x500] sm:%s227]
                %397 = vst [vmem:[%s235 + $0x280] sm:%s227] %v396
                %v398 = vld [vmem:[%s234 + $0x508] sm:%s227]
                %399 = vst [vmem:[%s235 + $0x288] sm:%s227] %v398
                %v400 = vld [vmem:[%s234 + $0x510] sm:%s227]
                %401 = vst [vmem:[%s235 + $0x290] sm:%s227] %v400
                %v402 = vld [vmem:[%s234 + $0x518] sm:%s227]
                %403 = vst [vmem:[%s235 + $0x298] sm:%s227] %v402
                %v404 = vld [vmem:[%s234 + $0x540] sm:%s227]
                %405 = vst [vmem:[%s235 + $0x2a0] sm:%s227] %v404
                %v406 = vld [vmem:[%s234 + $0x548] sm:%s227]
                %407 = vst [vmem:[%s235 + $0x2a8] sm:%s227] %v406
                %v408 = vld [vmem:[%s234 + $0x550] sm:%s227]
                %409 = vst [vmem:[%s235 + $0x2b0] sm:%s227] %v408
                %v410 = vld [vmem:[%s234 + $0x558] sm:%s227]
                %411 = vst [vmem:[%s235 + $0x2b8] sm:%s227] %v410
                %v412 = vld [vmem:[%s234 + $0x580] sm:%s227]
                %413 = vst [vmem:[%s235 + $0x2c0] sm:%s227] %v412
                %v414 = vld [vmem:[%s234 + $0x588] sm:%s227]
                %415 = vst [vmem:[%s235 + $0x2c8] sm:%s227] %v414
                %v416 = vld [vmem:[%s234 + $0x590] sm:%s227]
                %417 = vst [vmem:[%s235 + $0x2d0] sm:%s227] %v416
                %v418 = vld [vmem:[%s234 + $0x598] sm:%s227]
                %419 = vst [vmem:[%s235 + $0x2d8] sm:%s227] %v418
                %v420 = vld [vmem:[%s234 + $0x5c0] sm:%s227]
                %421 = vst [vmem:[%s235 + $0x2e0] sm:%s227] %v420
                %v422 = vld [vmem:[%s234 + $0x5c8] sm:%s227]
                %423 = vst [vmem:[%s235 + $0x2e8] sm:%s227] %v422
                %v424 = vld [vmem:[%s234 + $0x5d0] sm:%s227]
                %425 = vst [vmem:[%s235 + $0x2f0] sm:%s227] %v424
                %v426 = vld [vmem:[%s234 + $0x5d8] sm:%s227]
                %427 = vst [vmem:[%s235 + $0x2f8] sm:%s227] %v426
                %v428 = vld [vmem:[%s234 + $0x600] sm:%s227]
                %429 = vst [vmem:[%s235 + $0x300] sm:%s227] %v428
                %v430 = vld [vmem:[%s234 + $0x608] sm:%s227]
                %431 = vst [vmem:[%s235 + $0x308] sm:%s227] %v430
                %v432 = vld [vmem:[%s234 + $0x610] sm:%s227]
                %433 = vst [vmem:[%s235 + $0x310] sm:%s227] %v432
                %v434 = vld [vmem:[%s234 + $0x618] sm:%s227]
                %435 = vst [vmem:[%s235 + $0x318] sm:%s227] %v434
                %v436 = vld [vmem:[%s234 + $0x640] sm:%s227]
                %437 = vst [vmem:[%s235 + $0x320] sm:%s227] %v436
                %v438 = vld [vmem:[%s234 + $0x648] sm:%s227]
                %439 = vst [vmem:[%s235 + $0x328] sm:%s227] %v438
                %v440 = vld [vmem:[%s234 + $0x650] sm:%s227]
                %441 = vst [vmem:[%s235 + $0x330] sm:%s227] %v440
                %v442 = vld [vmem:[%s234 + $0x658] sm:%s227]
                %443 = vst [vmem:[%s235 + $0x338] sm:%s227] %v442
                %v444 = vld [vmem:[%s234 + $0x680] sm:%s227]
                %445 = vst [vmem:[%s235 + $0x340] sm:%s227] %v444
                %v446 = vld [vmem:[%s234 + $0x688] sm:%s227]
                %447 = vst [vmem:[%s235 + $0x348] sm:%s227] %v446
                %v448 = vld [vmem:[%s234 + $0x690] sm:%s227]
                %449 = vst [vmem:[%s235 + $0x350] sm:%s227] %v448
                %v450 = vld [vmem:[%s234 + $0x698] sm:%s227]
                %451 = vst [vmem:[%s235 + $0x358] sm:%s227] %v450
                %v452 = vld [vmem:[%s234 + $0x6c0] sm:%s227]
                %453 = vst [vmem:[%s235 + $0x360] sm:%s227] %v452
                %v454 = vld [vmem:[%s234 + $0x6c8] sm:%s227]
                %455 = vst [vmem:[%s235 + $0x368] sm:%s227] %v454
                %v456 = vld [vmem:[%s234 + $0x6d0] sm:%s227]
                %457 = vst [vmem:[%s235 + $0x370] sm:%s227] %v456
                %v458 = vld [vmem:[%s234 + $0x6d8] sm:%s227]
                %459 = vst [vmem:[%s235 + $0x378] sm:%s227] %v458
                %v460 = vld [vmem:[%s234 + $0x700] sm:%s227]
                %461 = vst [vmem:[%s235 + $0x380] sm:%s227] %v460
                %v462 = vld [vmem:[%s234 + $0x708] sm:%s227]
                %463 = vst [vmem:[%s235 + $0x388] sm:%s227] %v462
                %v464 = vld [vmem:[%s234 + $0x710] sm:%s227]
                %465 = vst [vmem:[%s235 + $0x390] sm:%s227] %v464
                %v466 = vld [vmem:[%s234 + $0x718] sm:%s227]
                %467 = vst [vmem:[%s235 + $0x398] sm:%s227] %v466
                %v468 = vld [vmem:[%s234 + $0x740] sm:%s227]
                %469 = vst [vmem:[%s235 + $0x3a0] sm:%s227] %v468
                %v470 = vld [vmem:[%s234 + $0x748] sm:%s227]
                %471 = vst [vmem:[%s235 + $0x3a8] sm:%s227] %v470
                %v472 = vld [vmem:[%s234 + $0x750] sm:%s227]
                %473 = vst [vmem:[%s235 + $0x3b0] sm:%s227] %v472
                %v474 = vld [vmem:[%s234 + $0x758] sm:%s227]
                %475 = vst [vmem:[%s235 + $0x3b8] sm:%s227] %v474
                %v476 = vld [vmem:[%s234 + $0x780] sm:%s227]
                %477 = vst [vmem:[%s235 + $0x3c0] sm:%s227] %v476
                %v478 = vld [vmem:[%s234 + $0x788] sm:%s227]
                %479 = vst [vmem:[%s235 + $0x3c8] sm:%s227] %v478
                %v480 = vld [vmem:[%s234 + $0x790] sm:%s227]
                %481 = vst [vmem:[%s235 + $0x3d0] sm:%s227] %v480
                %v482 = vld [vmem:[%s234 + $0x798] sm:%s227]
                %483 = vst [vmem:[%s235 + $0x3d8] sm:%s227] %v482
                %v484 = vld [vmem:[%s234 + $0x7c0] sm:%s227]
                %485 = vst [vmem:[%s235 + $0x3e0] sm:%s227] %v484
                %v486 = vld [vmem:[%s234 + $0x7c8] sm:%s227]
                %487 = vst [vmem:[%s235 + $0x3e8] sm:%s227] %v486
                %v488 = vld [vmem:[%s234 + $0x7d0] sm:%s227]
                %489 = vst [vmem:[%s235 + $0x3f0] sm:%s227] %v488
                %v490 = vld [vmem:[%s234 + $0x7d8] sm:%s227]
                %491 = vst [vmem:[%s235 + $0x3f8] sm:%s227] %v490
              $region53: #{tpu_custom_call.1} parent=47 // loop_footer
                %s233 = sadd.s32 1, %s229
              $region54: #{tpu_custom_call.1} parent=47 // loop_footer_branch
                %228 = sbr.rel target = $region50
              $region55: #{tpu_custom_call.1} parent=47 // loop_exit
                _
            $region48: #{tpu_custom_call.1} parent=39 // pred_fallthru
              _
          $region40: #{tpu_custom_call.1} parent=35 // pred_fallthru
            _
          %760 = vnop
        $region36: #{tpu_custom_call.1} parent=31 // pred_fallthru
          _
      $region32: #{tpu_custom_call.1} parent=5 // pred_fallthru
        _
      %p761 = scmp.le.s32.totalorder 1, %s12
      %p762 = scmp.lt.s32.totalorder %s12, 3
      %p763 = pnand %p761, %p762
      %p764 = pneg %p763
      // Predicated region
      $region71: #{tpu_custom_call.1} parent=5 // pred_check
        _
      $region72: #{tpu_custom_call.1} parent=5 // pred_check_branch
        %766 = sbr.rel (%p763) target = $region74
      $region73: #{tpu_custom_call.1} parent=5 // pred_region
        %s767 = ssub.s32 %s12, 1
        %s768 = sand.u32 %s48, 1
        %s769 = sand.u32 %s48, 1
        %s770 = smul.addr %s769, 1024
        %s771 = scalar_lea.vmem [#allocation3], %s770
        // Predicated region
        $region75: #{tpu_custom_call.1} parent=73 // pred_check
          %p772 = pneg %p61
        $region76: #{tpu_custom_call.1} parent=73 // pred_check_branch
          %774 = sbr.rel (%p772) target = $region78
        $region77: #{tpu_custom_call.1} parent=73 // pred_region
          _
        $region78: #{tpu_custom_call.1} parent=73 // pred_fallthru
          _
        %s775 = sand.u32 %s48, 1
        %s776 = sand.u32 %s48, 1
        %s777 = smul.addr %s776, 1024
        %s778 = scalar_lea.vmem [#allocation3], %s777
        %p779 = pneg %p61
        %p780 = pneg %p58
        %p781 = pneg %p82
        %p782 = pneg %p79
        %p783 = pneg %p103
        %p784 = pneg %p100
        %p785 = pneg %p124
        %p786 = pneg %p121
        %p787 = pneg %p145
        %p788 = pneg %p142
        %p789 = pneg %p173
        %p790 = pneg %p170
        %s791 = smul.u32 4, %s22
        %s792 = smul.u32 8, %s23
        %s793 = smul.u32 4, %s24
        %s794 = smul.u32 4, %s22
        %p795 = scmp.eq.s32.totalorder %s24, 0
        // Predicated region
        $region79: #{tpu_custom_call.1} parent=73 // pred_check
          %p796 = pneg %p795
        $region80: #{tpu_custom_call.1} parent=73 // pred_check_branch
          %798 = sbr.rel (%p796) target = $region82
        $region81: #{tpu_custom_call.1} parent=73 // pred_region
          %799 = vst [vmem:[#allocation2] sm:$0xff] 0.0
          %800 = vst [vmem:[#allocation2 + $0x8] sm:$0xff] 0.0
          %801 = vst [vmem:[#allocation2 + $0x10] sm:$0xff] 0.0
          %802 = vst [vmem:[#allocation2 + $0x18] sm:$0xff] 0.0
          %803 = vst [vmem:[#allocation2 + $0x20] sm:$0xff] 0.0
          %804 = vst [vmem:[#allocation2 + $0x28] sm:$0xff] 0.0
          %805 = vst [vmem:[#allocation2 + $0x30] sm:$0xff] 0.0
          %806 = vst [vmem:[#allocation2 + $0x38] sm:$0xff] 0.0
        $region82: #{tpu_custom_call.1} parent=73 // pred_fallthru
          _
        %v807 = vld [vmem:[%s771] sm:$0xff]
        %v808 = vld [vmem:[%s771 + $0x8] sm:$0xff]
        %v809 = vld [vmem:[%s771 + $0x10] sm:$0xff]
        %v810 = vld [vmem:[%s771 + $0x18] sm:$0xff]
        %v811 = vld [vmem:[%s771 + $0x20] sm:$0xff]
        %v812 = vld [vmem:[%s771 + $0x28] sm:$0xff]
        %v813 = vld [vmem:[%s771 + $0x30] sm:$0xff]
        %v814 = vld [vmem:[%s771 + $0x38] sm:$0xff]
        %v815 = vld [vmem:[%s771 + $0x40] sm:$0xff]
        %v816 = vld [vmem:[%s771 + $0x48] sm:$0xff]
        %v817 = vld [vmem:[%s771 + $0x50] sm:$0xff]
        %v818 = vld [vmem:[%s771 + $0x58] sm:$0xff]
        %v819 = vld [vmem:[%s771 + $0x60] sm:$0xff]
        %v820 = vld [vmem:[%s771 + $0x68] sm:$0xff]
        %v821 = vld [vmem:[%s771 + $0x70] sm:$0xff]
        %v822 = vld [vmem:[%s771 + $0x78] sm:$0xff]
        %v823 = vld [vmem:[%s771 + $0x80] sm:$0xff]
        %v824 = vld [vmem:[%s771 + $0x88] sm:$0xff]
        %v825 = vld [vmem:[%s771 + $0x90] sm:$0xff]
        %v826 = vld [vmem:[%s771 + $0x98] sm:$0xff]
        %v827 = vld [vmem:[%s771 + $0xa0] sm:$0xff]
        %v828 = vld [vmem:[%s771 + $0xa8] sm:$0xff]
        %v829 = vld [vmem:[%s771 + $0xb0] sm:$0xff]
        %v830 = vld [vmem:[%s771 + $0xb8] sm:$0xff]
        %v831 = vld [vmem:[%s771 + $0xc0] sm:$0xff]
        %v832 = vld [vmem:[%s771 + $0xc8] sm:$0xff]
        %v833 = vld [vmem:[%s771 + $0xd0] sm:$0xff]
        %v834 = vld [vmem:[%s771 + $0xd8] sm:$0xff]
        %v835 = vld [vmem:[%s771 + $0xe0] sm:$0xff]
        %v836 = vld [vmem:[%s771 + $0xe8] sm:$0xff]
        %v837 = vld [vmem:[%s771 + $0xf0] sm:$0xff]
        %v838 = vld [vmem:[%s771 + $0xf8] sm:$0xff]
        %v839 = vld [vmem:[%s771 + $0x100] sm:$0xff]
        %v840 = vld [vmem:[%s771 + $0x108] sm:$0xff]
        %v841 = vld [vmem:[%s771 + $0x110] sm:$0xff]
        %v842 = vld [vmem:[%s771 + $0x118] sm:$0xff]
        %v843 = vld [vmem:[%s771 + $0x120] sm:$0xff]
        %v844 = vld [vmem:[%s771 + $0x128] sm:$0xff]
        %v845 = vld [vmem:[%s771 + $0x130] sm:$0xff]
        %v846 = vld [vmem:[%s771 + $0x138] sm:$0xff]
        %v847 = vld [vmem:[%s771 + $0x140] sm:$0xff]
        %v848 = vld [vmem:[%s771 + $0x148] sm:$0xff]
        %v849 = vld [vmem:[%s771 + $0x150] sm:$0xff]
        %v850 = vld [vmem:[%s771 + $0x158] sm:$0xff]
        %v851 = vld [vmem:[%s771 + $0x160] sm:$0xff]
        %v852 = vld [vmem:[%s771 + $0x168] sm:$0xff]
        %v853 = vld [vmem:[%s771 + $0x170] sm:$0xff]
        %v854 = vld [vmem:[%s771 + $0x178] sm:$0xff]
        %v855 = vld [vmem:[%s771 + $0x180] sm:$0xff]
        %v856 = vld [vmem:[%s771 + $0x188] sm:$0xff]
        %v857 = vld [vmem:[%s771 + $0x190] sm:$0xff]
        %v858 = vld [vmem:[%s771 + $0x198] sm:$0xff]
        %v859 = vld [vmem:[%s771 + $0x1a0] sm:$0xff]
        %v860 = vld [vmem:[%s771 + $0x1a8] sm:$0xff]
        %v861 = vld [vmem:[%s771 + $0x1b0] sm:$0xff]
        %v862 = vld [vmem:[%s771 + $0x1b8] sm:$0xff]
        %v863 = vld [vmem:[%s771 + $0x1c0] sm:$0xff]
        %v864 = vld [vmem:[%s771 + $0x1c8] sm:$0xff]
        %v865 = vld [vmem:[%s771 + $0x1d0] sm:$0xff]
        %v866 = vld [vmem:[%s771 + $0x1d8] sm:$0xff]
        %v867 = vld [vmem:[%s771 + $0x1e0] sm:$0xff]
        %v868 = vld [vmem:[%s771 + $0x1e8] sm:$0xff]
        %v869 = vld [vmem:[%s771 + $0x1f0] sm:$0xff]
        %v870 = vld [vmem:[%s771 + $0x1f8] sm:$0xff]
        %v871 = vld [vmem:[%s771 + $0x200] sm:$0xff]
        %v872 = vld [vmem:[%s771 + $0x208] sm:$0xff]
        %v873 = vld [vmem:[%s771 + $0x210] sm:$0xff]
        %v874 = vld [vmem:[%s771 + $0x218] sm:$0xff]
        %v875 = vld [vmem:[%s771 + $0x220] sm:$0xff]
        %v876 = vld [vmem:[%s771 + $0x228] sm:$0xff]
        %v877 = vld [vmem:[%s771 + $0x230] sm:$0xff]
        %v878 = vld [vmem:[%s771 + $0x238] sm:$0xff]
        %v879 = vld [vmem:[%s771 + $0x240] sm:$0xff]
        %v880 = vld [vmem:[%s771 + $0x248] sm:$0xff]
        %v881 = vld [vmem:[%s771 + $0x250] sm:$0xff]
        %v882 = vld [vmem:[%s771 + $0x258] sm:$0xff]
        %v883 = vld [vmem:[%s771 + $0x260] sm:$0xff]
        %v884 = vld [vmem:[%s771 + $0x268] sm:$0xff]
        %v885 = vld [vmem:[%s771 + $0x270] sm:$0xff]
        %v886 = vld [vmem:[%s771 + $0x278] sm:$0xff]
        %v887 = vld [vmem:[%s771 + $0x280] sm:$0xff]
        %v888 = vld [vmem:[%s771 + $0x288] sm:$0xff]
        %v889 = vld [vmem:[%s771 + $0x290] sm:$0xff]
        %v890 = vld [vmem:[%s771 + $0x298] sm:$0xff]
        %v891 = vld [vmem:[%s771 + $0x2a0] sm:$0xff]
        %v892 = vld [vmem:[%s771 + $0x2a8] sm:$0xff]
        %v893 = vld [vmem:[%s771 + $0x2b0] sm:$0xff]
        %v894 = vld [vmem:[%s771 + $0x2b8] sm:$0xff]
        %v895 = vld [vmem:[%s771 + $0x2c0] sm:$0xff]
        %v896 = vld [vmem:[%s771 + $0x2c8] sm:$0xff]
        %v897 = vld [vmem:[%s771 + $0x2d0] sm:$0xff]
        %v898 = vld [vmem:[%s771 + $0x2d8] sm:$0xff]
        %v899 = vld [vmem:[%s771 + $0x2e0] sm:$0xff]
        %v900 = vld [vmem:[%s771 + $0x2e8] sm:$0xff]
        %v901 = vld [vmem:[%s771 + $0x2f0] sm:$0xff]
        %v902 = vld [vmem:[%s771 + $0x2f8] sm:$0xff]
        %v903 = vld [vmem:[%s771 + $0x300] sm:$0xff]
        %v904 = vld [vmem:[%s771 + $0x308] sm:$0xff]
        %v905 = vld [vmem:[%s771 + $0x310] sm:$0xff]
        %v906 = vld [vmem:[%s771 + $0x318] sm:$0xff]
        %v907 = vld [vmem:[%s771 + $0x320] sm:$0xff]
        %v908 = vld [vmem:[%s771 + $0x328] sm:$0xff]
        %v909 = vld [vmem:[%s771 + $0x330] sm:$0xff]
        %v910 = vld [vmem:[%s771 + $0x338] sm:$0xff]
        %v911 = vld [vmem:[%s771 + $0x340] sm:$0xff]
        %v912 = vld [vmem:[%s771 + $0x348] sm:$0xff]
        %v913 = vld [vmem:[%s771 + $0x350] sm:$0xff]
        %v914 = vld [vmem:[%s771 + $0x358] sm:$0xff]
        %v915 = vld [vmem:[%s771 + $0x360] sm:$0xff]
        %v916 = vld [vmem:[%s771 + $0x368] sm:$0xff]
        %v917 = vld [vmem:[%s771 + $0x370] sm:$0xff]
        %v918 = vld [vmem:[%s771 + $0x378] sm:$0xff]
        %v919 = vld [vmem:[%s771 + $0x380] sm:$0xff]
        %v920 = vld [vmem:[%s771 + $0x388] sm:$0xff]
        %v921 = vld [vmem:[%s771 + $0x390] sm:$0xff]
        %v922 = vld [vmem:[%s771 + $0x398] sm:$0xff]
        %v923 = vld [vmem:[%s771 + $0x3a0] sm:$0xff]
        %v924 = vld [vmem:[%s771 + $0x3a8] sm:$0xff]
        %v925 = vld [vmem:[%s771 + $0x3b0] sm:$0xff]
        %v926 = vld [vmem:[%s771 + $0x3b8] sm:$0xff]
        %v927 = vld [vmem:[%s771 + $0x3c0] sm:$0xff]
        %v928 = vld [vmem:[%s771 + $0x3c8] sm:$0xff]
        %v929 = vld [vmem:[%s771 + $0x3d0] sm:$0xff]
        %v930 = vld [vmem:[%s771 + $0x3d8] sm:$0xff]
        %v931 = vld [vmem:[%s771 + $0x3e0] sm:$0xff]
        %v932 = vld [vmem:[%s771 + $0x3e8] sm:$0xff]
        %v933 = vld [vmem:[%s771 + $0x3f0] sm:$0xff]
        %v934 = vld [vmem:[%s771 + $0x3f8] sm:$0xff]
        %v935 = vld [vmem:[%s1] sm:$0xff]
        %v936 = vld [vmem:[%s1 + $0x8] sm:$0xff]
        %v937 = vld [vmem:[%s1 + $0x10] sm:$0xff]
        %v938 = vld [vmem:[%s1 + $0x18] sm:$0xff]
        %v939 = vld [vmem:[%s1 + $0x20] sm:$0xff]
        %v940 = vld [vmem:[%s1 + $0x28] sm:$0xff]
        %v941 = vld [vmem:[%s1 + $0x30] sm:$0xff]
        %v942 = vld [vmem:[%s1 + $0x38] sm:$0xff]
        %v943 = vld [vmem:[%s1 + $0x40] sm:$0xf]
        %v944 = vld [vmem:[%s1 + $0x48] sm:$0xf]
        %v945 = vld [vmem:[%s2] sm:$0x3]
        %v947 = vlaneseq
        %v948 = vshrl.u32 %v947, 7
        %v949 = vsub.s32 0, %v948
        %v950 = vrot.slane %v945, %v949
        %v951 = vlaneseq
        %v952 = vshrl.u32 %v951, 7
        %v953 = vsub.s32 1, %v952
        %v954 = vrot.slane %v945, %v953
        %vm957 = vcmask 293888
        %v959 = vsel %vm957, %v807, 0
        %v962 = vsel %vm957, %v808, 0
        %v965 = vsel %vm957, %v809, 0
        %v968 = vsel %vm957, %v810, 0
        %v971 = vsel %vm957, %v811, 0
        %v974 = vsel %vm957, %v812, 0
        %v977 = vsel %vm957, %v813, 0
        %v980 = vsel %vm957, %v814, 0
        %v983 = vsel %vm957, %v815, 0
        %v986 = vsel %vm957, %v816, 0
        %v989 = vsel %vm957, %v817, 0
        %v992 = vsel %vm957, %v818, 0
        %v995 = vsel %vm957, %v819, 0
        %v998 = vsel %vm957, %v820, 0
        %v1001 = vsel %vm957, %v821, 0
        %v1004 = vsel %vm957, %v822, 0
        %v1007 = vsel %vm957, %v823, 0
        %v1010 = vsel %vm957, %v824, 0
        %v1013 = vsel %vm957, %v825, 0
        %v1016 = vsel %vm957, %v826, 0
        %v1019 = vsel %vm957, %v827, 0
        %v1022 = vsel %vm957, %v828, 0
        %v1025 = vsel %vm957, %v829, 0
        %v1028 = vsel %vm957, %v830, 0
        %v1031 = vsel %vm957, %v831, 0
        %v1034 = vsel %vm957, %v832, 0
        %v1037 = vsel %vm957, %v833, 0
        %v1040 = vsel %vm957, %v834, 0
        %v1043 = vsel %vm957, %v835, 0
        %v1046 = vsel %vm957, %v836, 0
        %v1049 = vsel %vm957, %v837, 0
        %v1052 = vsel %vm957, %v838, 0
        %v1055 = vsel %vm957, %v839, 0
        %v1058 = vsel %vm957, %v840, 0
        %v1061 = vsel %vm957, %v841, 0
        %v1064 = vsel %vm957, %v842, 0
        %v1067 = vsel %vm957, %v843, 0
        %v1070 = vsel %vm957, %v844, 0
        %v1073 = vsel %vm957, %v845, 0
        %v1076 = vsel %vm957, %v846, 0
        %v1079 = vsel %vm957, %v847, 0
        %v1082 = vsel %vm957, %v848, 0
        %v1085 = vsel %vm957, %v849, 0
        %v1088 = vsel %vm957, %v850, 0
        %v1091 = vsel %vm957, %v851, 0
        %v1094 = vsel %vm957, %v852, 0
        %v1097 = vsel %vm957, %v853, 0
        %v1100 = vsel %vm957, %v854, 0
        %v1103 = vsel %vm957, %v855, 0
        %v1106 = vsel %vm957, %v856, 0
        %v1109 = vsel %vm957, %v857, 0
        %v1112 = vsel %vm957, %v858, 0
        %v1115 = vsel %vm957, %v859, 0
        %v1118 = vsel %vm957, %v860, 0
        %v1121 = vsel %vm957, %v861, 0
        %v1124 = vsel %vm957, %v862, 0
        %v1127 = vsel %vm957, %v863, 0
        %v1130 = vsel %vm957, %v864, 0
        %v1133 = vsel %vm957, %v865, 0
        %v1136 = vsel %vm957, %v866, 0
        %v1139 = vsel %vm957, %v867, 0
        %v1142 = vsel %vm957, %v868, 0
        %v1145 = vsel %vm957, %v869, 0
        %v1148 = vsel %vm957, %v870, 0
        %v1151 = vsel %vm957, %v871, 0
        %v1154 = vsel %vm957, %v872, 0
        %v1157 = vsel %vm957, %v873, 0
        %v1160 = vsel %vm957, %v874, 0
        %v1163 = vsel %vm957, %v875, 0
        %v1166 = vsel %vm957, %v876, 0
        %v1169 = vsel %vm957, %v877, 0
        %v1172 = vsel %vm957, %v878, 0
        %v1175 = vsel %vm957, %v879, 0
        %v1178 = vsel %vm957, %v880, 0
        %v1181 = vsel %vm957, %v881, 0
        %v1184 = vsel %vm957, %v882, 0
        %v1187 = vsel %vm957, %v883, 0
        %v1190 = vsel %vm957, %v884, 0
        %v1193 = vsel %vm957, %v885, 0
        %v1196 = vsel %vm957, %v886, 0
        %v1199 = vsel %vm957, %v887, 0
        %v1202 = vsel %vm957, %v888, 0
        %v1205 = vsel %vm957, %v889, 0
        %v1208 = vsel %vm957, %v890, 0
        %v1211 = vsel %vm957, %v891, 0
        %v1214 = vsel %vm957, %v892, 0
        %v1217 = vsel %vm957, %v893, 0
        %v1220 = vsel %vm957, %v894, 0
        %v1223 = vsel %vm957, %v895, 0
        %v1226 = vsel %vm957, %v896, 0
        %v1229 = vsel %vm957, %v897, 0
        %v1232 = vsel %vm957, %v898, 0
        %v1235 = vsel %vm957, %v899, 0
        %v1238 = vsel %vm957, %v900, 0
        %v1241 = vsel %vm957, %v901, 0
        %v1244 = vsel %vm957, %v902, 0
        %v1247 = vsel %vm957, %v903, 0
        %v1250 = vsel %vm957, %v904, 0
        %v1253 = vsel %vm957, %v905, 0
        %v1256 = vsel %vm957, %v906, 0
        %v1259 = vsel %vm957, %v907, 0
        %v1262 = vsel %vm957, %v908, 0
        %v1265 = vsel %vm957, %v909, 0
        %v1268 = vsel %vm957, %v910, 0
        %v1271 = vsel %vm957, %v911, 0
        %v1274 = vsel %vm957, %v912, 0
        %v1277 = vsel %vm957, %v913, 0
        %v1280 = vsel %vm957, %v914, 0
        %v1283 = vsel %vm957, %v915, 0
        %v1286 = vsel %vm957, %v916, 0
        %v1289 = vsel %vm957, %v917, 0
        %v1292 = vsel %vm957, %v918, 0
        %v1295 = vsel %vm957, %v919, 0
        %v1298 = vsel %vm957, %v920, 0
        %v1301 = vsel %vm957, %v921, 0
        %v1304 = vsel %vm957, %v922, 0
        %v1307 = vsel %vm957, %v923, 0
        %v1310 = vsel %vm957, %v924, 0
        %v1313 = vsel %vm957, %v925, 0
        %v1316 = vsel %vm957, %v926, 0
        %v1319 = vsel %vm957, %v927, 0
        %v1322 = vsel %vm957, %v928, 0
        %v1325 = vsel %vm957, %v929, 0
        %v1328 = vsel %vm957, %v930, 0
        %v1331 = vsel %vm957, %v931, 0
        %v1334 = vsel %vm957, %v932, 0
        %v1337 = vsel %vm957, %v933, 0
        %v1340 = vsel %vm957, %v934, 0
        %vm1342 = vcmask 1043456
        %v1344 = vsel %vm1342, %v943, 0
        %v1347 = vsel %vm1342, %v944, 0
        %1349 = vmatprep.subr.mxu0 0.0
        %1350 = vmatpush1.msra.mxu0 0.0
        %1351 = vmatprep.subr.mxu0 0.0
        %1352 = vmatpush1.msra.mxu0 0.0
        %1353 = vmatprep.subr.mxu0 0.0
        %1354 = vmatpush1.msra.mxu0 0.0
        %1355 = vmatprep.subr.mxu0 0.0
        %1356 = vmatpush1.msra.mxu0 0.0
        %1357 = vmatprep.subr.mxu0 0.0
        %1358 = vmatpush1.msra.mxu0 0.0
        %1359 = vmatprep.subr.mxu0 0.0
        %1360 = vmatpush1.msra.mxu0 0.0
        %1361 = vmatprep.subr.mxu0 0.0
        %1362 = vmatpush1.msra.mxu0 0.0
        %1363 = vmatprep.subr.mxu0 0.0
        %1364 = vmatpush1.msra.mxu0 0.0
        %1365 = vmatprep.subr.mxu0 0.0
        %1366 = vmatpush1.msra.mxu0 0.0
        %1367 = vmatprep.subr.mxu0 0.0
        %1368 = vmatpush1.msra.mxu0 0.0
        %1369 = vmatprep.subr.mxu0 0.0
        %1370 = vmatpush1.msra.mxu0 0.0
        %1371 = vmatprep.subr.mxu0 %v1347
        %1372 = vmatpush1.msra.mxu0 %v1344
        %1373 = vmatprep.subr.mxu0 %v942
        %1374 = vmatpush1.msra.mxu0 %v941
        %1375 = vmatprep.subr.mxu0 %v940
        %1376 = vmatpush1.msra.mxu0 %v939
        %1377 = vmatprep.subr.mxu0 %v938
        %1378 = vmatpush1.msra.mxu0 %v937
        %1379 = vmatprep.subr.mxu0 %v936
        %1380 = vmatpush1.msra.mxu0 %v935
        %1381 = vmatprep.subr.mxu0 0.0
        %1382 = vmatpush2.msra.mxu0 0.0
        %1383 = vmatprep.subr.mxu0 0.0
        %1384 = vmatpush2.msra.mxu0 0.0
        %1385 = vmatprep.subr.mxu0 0.0
        %1386 = vmatpush2.msra.mxu0 0.0
        %1387 = vmatprep.subr.mxu0 0.0
        %1388 = vmatpush2.msra.mxu0 0.0
        %1389 = vmatprep.subr.mxu0 0.0
        %1390 = vmatpush2.msra.mxu0 0.0
        %1391 = vmatprep.subr.mxu0 0.0
        %1392 = vmatpush2.msra.mxu0 0.0
        %1393 = vmatprep.subr.mxu0 0.0
        %1394 = vmatpush2.msra.mxu0 0.0
        %1395 = vmatprep.subr.mxu0 0.0
        %1396 = vmatpush2.msra.mxu0 0.0
        %1397 = vmatprep.subr.mxu0 0.0
        %1398 = vmatpush2.msra.mxu0 0.0
        %1399 = vmatprep.subr.mxu0 0.0
        %1400 = vmatpush2.msra.mxu0 0.0
        %1401 = vmatprep.subr.mxu0 0.0
        %1402 = vmatpush2.msra.mxu0 0.0
        %1403 = vmatprep.subr.mxu0 0.0
        %1404 = vmatpush2.msra.mxu0 0.0
        %1405 = vmatprep.subr.mxu0 0.0
        %1406 = vmatpush2.msra.mxu0 0.0
        %1407 = vmatprep.subr.mxu0 0.0
        %1408 = vmatpush2.msra.mxu0 0.0
        %1409 = vmatprep.subr.mxu0 0.0
        %1410 = vmatpush2.msra.mxu0 0.0
        %1411 = vmatprep.subr.mxu0 0.0
        %1412 = vmatpush2.msra.mxu0 0.0
        %1413 = vmatprep.mubr.f32.mxu0 0.0
        %1414 = vmatmul.mubr.f32.gmra.mxu0 %v959
        %v1415 = vpop.f32.mrf.mxu0
        %v1416 = vadd.f32 %v950, %v1415
        %v1417 = vpop.f32.mrf.mxu0
        %v1418 = vadd.f32 %v954, %v1417
        %1419 = vmatprep.mubr.f32.mxu0 0.0
        %1420 = vmatmul.mubr.f32.gmra.mxu0 %v962
        %v1421 = vpop.f32.mrf.mxu0
        %v1422 = vadd.f32 %v950, %v1421
        %v1423 = vpop.f32.mrf.mxu0
        %v1424 = vadd.f32 %v954, %v1423
        %1425 = vmatprep.mubr.f32.mxu0 0.0
        %1426 = vmatmul.mubr.f32.gmra.mxu0 %v965
        %v1427 = vpop.f32.mrf.mxu0
        %v1428 = vadd.f32 %v950, %v1427
        %v1429 = vpop.f32.mrf.mxu0
        %v1430 = vadd.f32 %v954, %v1429
        %1431 = vmatprep.mubr.f32.mxu0 0.0
        %1432 = vmatmul.mubr.f32.gmra.mxu0 %v968
        %v1433 = vpop.f32.mrf.mxu0
        %v1434 = vadd.f32 %v950, %v1433
        %v1435 = vpop.f32.mrf.mxu0
        %v1436 = vadd.f32 %v954, %v1435
        %1437 = vmatprep.mubr.f32.mxu0 0.0
        %1438 = vmatmul.mubr.f32.gmra.mxu0 %v971
        %v1439 = vpop.f32.mrf.mxu0
        %v1440 = vadd.f32 %v950, %v1439
        %v1441 = vpop.f32.mrf.mxu0
        %v1442 = vadd.f32 %v954, %v1441
        %1443 = vmatprep.mubr.f32.mxu0 0.0
        %1444 = vmatmul.mubr.f32.gmra.mxu0 %v974
        %v1445 = vpop.f32.mrf.mxu0
        %v1446 = vadd.f32 %v950, %v1445
        %v1447 = vpop.f32.mrf.mxu0
        %v1448 = vadd.f32 %v954, %v1447
        %1449 = vmatprep.mubr.f32.mxu0 0.0
        %1450 = vmatmul.mubr.f32.gmra.mxu0 %v977
        %v1451 = vpop.f32.mrf.mxu0
        %v1452 = vadd.f32 %v950, %v1451
        %v1453 = vpop.f32.mrf.mxu0
        %v1454 = vadd.f32 %v954, %v1453
        %1455 = vmatprep.mubr.f32.mxu0 0.0
        %1456 = vmatmul.mubr.f32.gmra.mxu0 %v980
        %v1457 = vpop.f32.mrf.mxu0
        %v1458 = vadd.f32 %v950, %v1457
        %v1459 = vpop.f32.mrf.mxu0
        %v1460 = vadd.f32 %v954, %v1459
        %1461 = vmatprep.mubr.f32.mxu0 0.0
        %1462 = vmatmul.mubr.f32.gmra.mxu0 %v983
        %v1463 = vpop.f32.mrf.mxu0
        %v1464 = vadd.f32 %v950, %v1463
        %v1465 = vpop.f32.mrf.mxu0
        %v1466 = vadd.f32 %v954, %v1465
        %1467 = vmatprep.mubr.f32.mxu0 0.0
        %1468 = vmatmul.mubr.f32.gmra.mxu0 %v986
        %v1469 = vpop.f32.mrf.mxu0
        %v1470 = vadd.f32 %v950, %v1469
        %v1471 = vpop.f32.mrf.mxu0
        %v1472 = vadd.f32 %v954, %v1471
        %1473 = vmatprep.mubr.f32.mxu0 0.0
        %1474 = vmatmul.mubr.f32.gmra.mxu0 %v989
        %v1475 = vpop.f32.mrf.mxu0
        %v1476 = vadd.f32 %v950, %v1475
        %v1477 = vpop.f32.mrf.mxu0
        %v1478 = vadd.f32 %v954, %v1477
        %1479 = vmatprep.mubr.f32.mxu0 0.0
        %1480 = vmatmul.mubr.f32.gmra.mxu0 %v992
        %v1481 = vpop.f32.mrf.mxu0
        %v1482 = vadd.f32 %v950, %v1481
        %v1483 = vpop.f32.mrf.mxu0
        %v1484 = vadd.f32 %v954, %v1483
        %1485 = vmatprep.mubr.f32.mxu0 0.0
        %1486 = vmatmul.mubr.f32.gmra.mxu0 %v995
        %v1487 = vpop.f32.mrf.mxu0
        %v1488 = vadd.f32 %v950, %v1487
        %v1489 = vpop.f32.mrf.mxu0
        %v1490 = vadd.f32 %v954, %v1489
        %1491 = vmatprep.mubr.f32.mxu0 0.0
        %1492 = vmatmul.mubr.f32.gmra.mxu0 %v998
        %v1493 = vpop.f32.mrf.mxu0
        %v1494 = vadd.f32 %v950, %v1493
        %v1495 = vpop.f32.mrf.mxu0
        %v1496 = vadd.f32 %v954, %v1495
        %1497 = vmatprep.mubr.f32.mxu0 0.0
        %1498 = vmatmul.mubr.f32.gmra.mxu0 %v1001
        %v1499 = vpop.f32.mrf.mxu0
        %v1500 = vadd.f32 %v950, %v1499
        %v1501 = vpop.f32.mrf.mxu0
        %v1502 = vadd.f32 %v954, %v1501
        %1503 = vmatprep.mubr.f32.mxu0 0.0
        %1504 = vmatmul.mubr.f32.gmra.mxu0 %v1004
        %v1505 = vpop.f32.mrf.mxu0
        %v1506 = vadd.f32 %v950, %v1505
        %v1507 = vpop.f32.mrf.mxu0
        %v1508 = vadd.f32 %v954, %v1507
        %1509 = vmatprep.mubr.f32.mxu0 0.0
        %1510 = vmatmul.mubr.f32.gmra.mxu0 %v1007
        %v1511 = vpop.f32.mrf.mxu0
        %v1512 = vadd.f32 %v950, %v1511
        %v1513 = vpop.f32.mrf.mxu0
        %v1514 = vadd.f32 %v954, %v1513
        %1515 = vmatprep.mubr.f32.mxu0 0.0
        %1516 = vmatmul.mubr.f32.gmra.mxu0 %v1010
        %v1517 = vpop.f32.mrf.mxu0
        %v1518 = vadd.f32 %v950, %v1517
        %v1519 = vpop.f32.mrf.mxu0
        %v1520 = vadd.f32 %v954, %v1519
        %1521 = vmatprep.mubr.f32.mxu0 0.0
        %1522 = vmatmul.mubr.f32.gmra.mxu0 %v1013
        %v1523 = vpop.f32.mrf.mxu0
        %v1524 = vadd.f32 %v950, %v1523
        %v1525 = vpop.f32.mrf.mxu0
        %v1526 = vadd.f32 %v954, %v1525
        %1527 = vmatprep.mubr.f32.mxu0 0.0
        %1528 = vmatmul.mubr.f32.gmra.mxu0 %v1016
        %v1529 = vpop.f32.mrf.mxu0
        %v1530 = vadd.f32 %v950, %v1529
        %v1531 = vpop.f32.mrf.mxu0
        %v1532 = vadd.f32 %v954, %v1531
        %1533 = vmatprep.mubr.f32.mxu0 0.0
        %1534 = vmatmul.mubr.f32.gmra.mxu0 %v1019
        %v1535 = vpop.f32.mrf.mxu0
        %v1536 = vadd.f32 %v950, %v1535
        %v1537 = vpop.f32.mrf.mxu0
        %v1538 = vadd.f32 %v954, %v1537
        %1539 = vmatprep.mubr.f32.mxu0 0.0
        %1540 = vmatmul.mubr.f32.gmra.mxu0 %v1022
        %v1541 = vpop.f32.mrf.mxu0
        %v1542 = vadd.f32 %v950, %v1541
        %v1543 = vpop.f32.mrf.mxu0
        %v1544 = vadd.f32 %v954, %v1543
        %1545 = vmatprep.mubr.f32.mxu0 0.0
        %1546 = vmatmul.mubr.f32.gmra.mxu0 %v1025
        %v1547 = vpop.f32.mrf.mxu0
        %v1548 = vadd.f32 %v950, %v1547
        %v1549 = vpop.f32.mrf.mxu0
        %v1550 = vadd.f32 %v954, %v1549
        %1551 = vmatprep.mubr.f32.mxu0 0.0
        %1552 = vmatmul.mubr.f32.gmra.mxu0 %v1028
        %v1553 = vpop.f32.mrf.mxu0
        %v1554 = vadd.f32 %v950, %v1553
        %v1555 = vpop.f32.mrf.mxu0
        %v1556 = vadd.f32 %v954, %v1555
        %1557 = vmatprep.mubr.f32.mxu0 0.0
        %1558 = vmatmul.mubr.f32.gmra.mxu0 %v1031
        %v1559 = vpop.f32.mrf.mxu0
        %v1560 = vadd.f32 %v950, %v1559
        %v1561 = vpop.f32.mrf.mxu0
        %v1562 = vadd.f32 %v954, %v1561
        %1563 = vmatprep.mubr.f32.mxu0 0.0
        %1564 = vmatmul.mubr.f32.gmra.mxu0 %v1034
        %v1565 = vpop.f32.mrf.mxu0
        %v1566 = vadd.f32 %v950, %v1565
        %v1567 = vpop.f32.mrf.mxu0
        %v1568 = vadd.f32 %v954, %v1567
        %1569 = vmatprep.mubr.f32.mxu0 0.0
        %1570 = vmatmul.mubr.f32.gmra.mxu0 %v1037
        %v1571 = vpop.f32.mrf.mxu0
        %v1572 = vadd.f32 %v950, %v1571
        %v1573 = vpop.f32.mrf.mxu0
        %v1574 = vadd.f32 %v954, %v1573
        %1575 = vmatprep.mubr.f32.mxu0 0.0
        %1576 = vmatmul.mubr.f32.gmra.mxu0 %v1040
        %v1577 = vpop.f32.mrf.mxu0
        %v1578 = vadd.f32 %v950, %v1577
        %v1579 = vpop.f32.mrf.mxu0
        %v1580 = vadd.f32 %v954, %v1579
        %1581 = vmatprep.mubr.f32.mxu0 0.0
        %1582 = vmatmul.mubr.f32.gmra.mxu0 %v1043
        %v1583 = vpop.f32.mrf.mxu0
        %v1584 = vadd.f32 %v950, %v1583
        %v1585 = vpop.f32.mrf.mxu0
        %v1586 = vadd.f32 %v954, %v1585
        %1587 = vmatprep.mubr.f32.mxu0 0.0
        %1588 = vmatmul.mubr.f32.gmra.mxu0 %v1046
        %v1589 = vpop.f32.mrf.mxu0
        %v1590 = vadd.f32 %v950, %v1589
        %v1591 = vpop.f32.mrf.mxu0
        %v1592 = vadd.f32 %v954, %v1591
        %1593 = vmatprep.mubr.f32.mxu0 0.0
        %1594 = vmatmul.mubr.f32.gmra.mxu0 %v1049
        %v1595 = vpop.f32.mrf.mxu0
        %v1596 = vadd.f32 %v950, %v1595
        %v1597 = vpop.f32.mrf.mxu0
        %v1598 = vadd.f32 %v954, %v1597
        %1599 = vmatprep.mubr.f32.mxu0 0.0
        %1600 = vmatmul.mubr.f32.gmra.mxu0 %v1052
        %v1601 = vpop.f32.mrf.mxu0
        %v1602 = vadd.f32 %v950, %v1601
        %v1603 = vpop.f32.mrf.mxu0
        %v1604 = vadd.f32 %v954, %v1603
        %1605 = vmatprep.mubr.f32.mxu0 0.0
        %1606 = vmatmul.mubr.f32.gmra.mxu0 %v1055
        %v1607 = vpop.f32.mrf.mxu0
        %v1608 = vadd.f32 %v950, %v1607
        %v1609 = vpop.f32.mrf.mxu0
        %v1610 = vadd.f32 %v954, %v1609
        %1611 = vmatprep.mubr.f32.mxu0 0.0
        %1612 = vmatmul.mubr.f32.gmra.mxu0 %v1058
        %v1613 = vpop.f32.mrf.mxu0
        %v1614 = vadd.f32 %v950, %v1613
        %v1615 = vpop.f32.mrf.mxu0
        %v1616 = vadd.f32 %v954, %v1615
        %1617 = vmatprep.mubr.f32.mxu0 0.0
        %1618 = vmatmul.mubr.f32.gmra.mxu0 %v1061
        %v1619 = vpop.f32.mrf.mxu0
        %v1620 = vadd.f32 %v950, %v1619
        %v1621 = vpop.f32.mrf.mxu0
        %v1622 = vadd.f32 %v954, %v1621
        %1623 = vmatprep.mubr.f32.mxu0 0.0
        %1624 = vmatmul.mubr.f32.gmra.mxu0 %v1064
        %v1625 = vpop.f32.mrf.mxu0
        %v1626 = vadd.f32 %v950, %v1625
        %v1627 = vpop.f32.mrf.mxu0
        %v1628 = vadd.f32 %v954, %v1627
        %1629 = vmatprep.mubr.f32.mxu0 0.0
        %1630 = vmatmul.mubr.f32.gmra.mxu0 %v1067
        %v1631 = vpop.f32.mrf.mxu0
        %v1632 = vadd.f32 %v950, %v1631
        %v1633 = vpop.f32.mrf.mxu0
        %v1634 = vadd.f32 %v954, %v1633
        %1635 = vmatprep.mubr.f32.mxu0 0.0
        %1636 = vmatmul.mubr.f32.gmra.mxu0 %v1070
        %v1637 = vpop.f32.mrf.mxu0
        %v1638 = vadd.f32 %v950, %v1637
        %v1639 = vpop.f32.mrf.mxu0
        %v1640 = vadd.f32 %v954, %v1639
        %1641 = vmatprep.mubr.f32.mxu0 0.0
        %1642 = vmatmul.mubr.f32.gmra.mxu0 %v1073
        %v1643 = vpop.f32.mrf.mxu0
        %v1644 = vadd.f32 %v950, %v1643
        %v1645 = vpop.f32.mrf.mxu0
        %v1646 = vadd.f32 %v954, %v1645
        %1647 = vmatprep.mubr.f32.mxu0 0.0
        %1648 = vmatmul.mubr.f32.gmra.mxu0 %v1076
        %v1649 = vpop.f32.mrf.mxu0
        %v1650 = vadd.f32 %v950, %v1649
        %v1651 = vpop.f32.mrf.mxu0
        %v1652 = vadd.f32 %v954, %v1651
        %1653 = vmatprep.mubr.f32.mxu0 0.0
        %1654 = vmatmul.mubr.f32.gmra.mxu0 %v1079
        %v1655 = vpop.f32.mrf.mxu0
        %v1656 = vadd.f32 %v950, %v1655
        %v1657 = vpop.f32.mrf.mxu0
        %v1658 = vadd.f32 %v954, %v1657
        %1659 = vmatprep.mubr.f32.mxu0 0.0
        %1660 = vmatmul.mubr.f32.gmra.mxu0 %v1082
        %v1661 = vpop.f32.mrf.mxu0
        %v1662 = vadd.f32 %v950, %v1661
        %v1663 = vpop.f32.mrf.mxu0
        %v1664 = vadd.f32 %v954, %v1663
        %1665 = vmatprep.mubr.f32.mxu0 0.0
        %1666 = vmatmul.mubr.f32.gmra.mxu0 %v1085
        %v1667 = vpop.f32.mrf.mxu0
        %v1668 = vadd.f32 %v950, %v1667
        %v1669 = vpop.f32.mrf.mxu0
        %v1670 = vadd.f32 %v954, %v1669
        %1671 = vmatprep.mubr.f32.mxu0 0.0
        %1672 = vmatmul.mubr.f32.gmra.mxu0 %v1088
        %v1673 = vpop.f32.mrf.mxu0
        %v1674 = vadd.f32 %v950, %v1673
        %v1675 = vpop.f32.mrf.mxu0
        %v1676 = vadd.f32 %v954, %v1675
        %1677 = vmatprep.mubr.f32.mxu0 0.0
        %1678 = vmatmul.mubr.f32.gmra.mxu0 %v1091
        %v1679 = vpop.f32.mrf.mxu0
        %v1680 = vadd.f32 %v950, %v1679
        %v1681 = vpop.f32.mrf.mxu0
        %v1682 = vadd.f32 %v954, %v1681
        %1683 = vmatprep.mubr.f32.mxu0 0.0
        %1684 = vmatmul.mubr.f32.gmra.mxu0 %v1094
        %v1685 = vpop.f32.mrf.mxu0
        %v1686 = vadd.f32 %v950, %v1685
        %v1687 = vpop.f32.mrf.mxu0
        %v1688 = vadd.f32 %v954, %v1687
        %1689 = vmatprep.mubr.f32.mxu0 0.0
        %1690 = vmatmul.mubr.f32.gmra.mxu0 %v1097
        %v1691 = vpop.f32.mrf.mxu0
        %v1692 = vadd.f32 %v950, %v1691
        %v1693 = vpop.f32.mrf.mxu0
        %v1694 = vadd.f32 %v954, %v1693
        %1695 = vmatprep.mubr.f32.mxu0 0.0
        %1696 = vmatmul.mubr.f32.gmra.mxu0 %v1100
        %v1697 = vpop.f32.mrf.mxu0
        %v1698 = vadd.f32 %v950, %v1697
        %v1699 = vpop.f32.mrf.mxu0
        %v1700 = vadd.f32 %v954, %v1699
        %1701 = vmatprep.mubr.f32.mxu0 0.0
        %1702 = vmatmul.mubr.f32.gmra.mxu0 %v1103
        %v1703 = vpop.f32.mrf.mxu0
        %v1704 = vadd.f32 %v950, %v1703
        %v1705 = vpop.f32.mrf.mxu0
        %v1706 = vadd.f32 %v954, %v1705
        %1707 = vmatprep.mubr.f32.mxu0 0.0
        %1708 = vmatmul.mubr.f32.gmra.mxu0 %v1106
        %v1709 = vpop.f32.mrf.mxu0
        %v1710 = vadd.f32 %v950, %v1709
        %v1711 = vpop.f32.mrf.mxu0
        %v1712 = vadd.f32 %v954, %v1711
        %1713 = vmatprep.mubr.f32.mxu0 0.0
        %1714 = vmatmul.mubr.f32.gmra.mxu0 %v1109
        %v1715 = vpop.f32.mrf.mxu0
        %v1716 = vadd.f32 %v950, %v1715
        %v1717 = vpop.f32.mrf.mxu0
        %v1718 = vadd.f32 %v954, %v1717
        %1719 = vmatprep.mubr.f32.mxu0 0.0
        %1720 = vmatmul.mubr.f32.gmra.mxu0 %v1112
        %v1721 = vpop.f32.mrf.mxu0
        %v1722 = vadd.f32 %v950, %v1721
        %v1723 = vpop.f32.mrf.mxu0
        %v1724 = vadd.f32 %v954, %v1723
        %1725 = vmatprep.mubr.f32.mxu0 0.0
        %1726 = vmatmul.mubr.f32.gmra.mxu0 %v1115
        %v1727 = vpop.f32.mrf.mxu0
        %v1728 = vadd.f32 %v950, %v1727
        %v1729 = vpop.f32.mrf.mxu0
        %v1730 = vadd.f32 %v954, %v1729
        %1731 = vmatprep.mubr.f32.mxu0 0.0
        %1732 = vmatmul.mubr.f32.gmra.mxu0 %v1118
        %v1733 = vpop.f32.mrf.mxu0
        %v1734 = vadd.f32 %v950, %v1733
        %v1735 = vpop.f32.mrf.mxu0
        %v1736 = vadd.f32 %v954, %v1735
        %1737 = vmatprep.mubr.f32.mxu0 0.0
        %1738 = vmatmul.mubr.f32.gmra.mxu0 %v1121
        %v1739 = vpop.f32.mrf.mxu0
        %v1740 = vadd.f32 %v950, %v1739
        %v1741 = vpop.f32.mrf.mxu0
        %v1742 = vadd.f32 %v954, %v1741
        %1743 = vmatprep.mubr.f32.mxu0 0.0
        %1744 = vmatmul.mubr.f32.gmra.mxu0 %v1124
        %v1745 = vpop.f32.mrf.mxu0
        %v1746 = vadd.f32 %v950, %v1745
        %v1747 = vpop.f32.mrf.mxu0
        %v1748 = vadd.f32 %v954, %v1747
        %1749 = vmatprep.mubr.f32.mxu0 0.0
        %1750 = vmatmul.mubr.f32.gmra.mxu0 %v1127
        %v1751 = vpop.f32.mrf.mxu0
        %v1752 = vadd.f32 %v950, %v1751
        %v1753 = vpop.f32.mrf.mxu0
        %v1754 = vadd.f32 %v954, %v1753
        %1755 = vmatprep.mubr.f32.mxu0 0.0
        %1756 = vmatmul.mubr.f32.gmra.mxu0 %v1130
        %v1757 = vpop.f32.mrf.mxu0
        %v1758 = vadd.f32 %v950, %v1757
        %v1759 = vpop.f32.mrf.mxu0
        %v1760 = vadd.f32 %v954, %v1759
        %1761 = vmatprep.mubr.f32.mxu0 0.0
        %1762 = vmatmul.mubr.f32.gmra.mxu0 %v1133
        %v1763 = vpop.f32.mrf.mxu0
        %v1764 = vadd.f32 %v950, %v1763
        %v1765 = vpop.f32.mrf.mxu0
        %v1766 = vadd.f32 %v954, %v1765
        %1767 = vmatprep.mubr.f32.mxu0 0.0
        %1768 = vmatmul.mubr.f32.gmra.mxu0 %v1136
        %v1769 = vpop.f32.mrf.mxu0
        %v1770 = vadd.f32 %v950, %v1769
        %v1771 = vpop.f32.mrf.mxu0
        %v1772 = vadd.f32 %v954, %v1771
        %1773 = vmatprep.mubr.f32.mxu0 0.0
        %1774 = vmatmul.mubr.f32.gmra.mxu0 %v1139
        %v1775 = vpop.f32.mrf.mxu0
        %v1776 = vadd.f32 %v950, %v1775
        %v1777 = vpop.f32.mrf.mxu0
        %v1778 = vadd.f32 %v954, %v1777
        %1779 = vmatprep.mubr.f32.mxu0 0.0
        %1780 = vmatmul.mubr.f32.gmra.mxu0 %v1142
        %v1781 = vpop.f32.mrf.mxu0
        %v1782 = vadd.f32 %v950, %v1781
        %v1783 = vpop.f32.mrf.mxu0
        %v1784 = vadd.f32 %v954, %v1783
        %1785 = vmatprep.mubr.f32.mxu0 0.0
        %1786 = vmatmul.mubr.f32.gmra.mxu0 %v1145
        %v1787 = vpop.f32.mrf.mxu0
        %v1788 = vadd.f32 %v950, %v1787
        %v1789 = vpop.f32.mrf.mxu0
        %v1790 = vadd.f32 %v954, %v1789
        %1791 = vmatprep.mubr.f32.mxu0 0.0
        %1792 = vmatmul.mubr.f32.gmra.mxu0 %v1148
        %v1793 = vpop.f32.mrf.mxu0
        %v1794 = vadd.f32 %v950, %v1793
        %v1795 = vpop.f32.mrf.mxu0
        %v1796 = vadd.f32 %v954, %v1795
        %1797 = vmatprep.mubr.f32.mxu0 0.0
        %1798 = vmatmul.mubr.f32.gmra.mxu0 %v1151
        %v1799 = vpop.f32.mrf.mxu0
        %v1800 = vadd.f32 %v950, %v1799
        %v1801 = vpop.f32.mrf.mxu0
        %v1802 = vadd.f32 %v954, %v1801
        %1803 = vmatprep.mubr.f32.mxu0 0.0
        %1804 = vmatmul.mubr.f32.gmra.mxu0 %v1154
        %v1805 = vpop.f32.mrf.mxu0
        %v1806 = vadd.f32 %v950, %v1805
        %v1807 = vpop.f32.mrf.mxu0
        %v1808 = vadd.f32 %v954, %v1807
        %1809 = vmatprep.mubr.f32.mxu0 0.0
        %1810 = vmatmul.mubr.f32.gmra.mxu0 %v1157
        %v1811 = vpop.f32.mrf.mxu0
        %v1812 = vadd.f32 %v950, %v1811
        %v1813 = vpop.f32.mrf.mxu0
        %v1814 = vadd.f32 %v954, %v1813
        %1815 = vmatprep.mubr.f32.mxu0 0.0
        %1816 = vmatmul.mubr.f32.gmra.mxu0 %v1160
        %v1817 = vpop.f32.mrf.mxu0
        %v1818 = vadd.f32 %v950, %v1817
        %v1819 = vpop.f32.mrf.mxu0
        %v1820 = vadd.f32 %v954, %v1819
        %1821 = vmatprep.mubr.f32.mxu0 0.0
        %1822 = vmatmul.mubr.f32.gmra.mxu0 %v1163
        %v1823 = vpop.f32.mrf.mxu0
        %v1824 = vadd.f32 %v950, %v1823
        %v1825 = vpop.f32.mrf.mxu0
        %v1826 = vadd.f32 %v954, %v1825
        %1827 = vmatprep.mubr.f32.mxu0 0.0
        %1828 = vmatmul.mubr.f32.gmra.mxu0 %v1166
        %v1829 = vpop.f32.mrf.mxu0
        %v1830 = vadd.f32 %v950, %v1829
        %v1831 = vpop.f32.mrf.mxu0
        %v1832 = vadd.f32 %v954, %v1831
        %1833 = vmatprep.mubr.f32.mxu0 0.0
        %1834 = vmatmul.mubr.f32.gmra.mxu0 %v1169
        %v1835 = vpop.f32.mrf.mxu0
        %v1836 = vadd.f32 %v950, %v1835
        %v1837 = vpop.f32.mrf.mxu0
        %v1838 = vadd.f32 %v954, %v1837
        %1839 = vmatprep.mubr.f32.mxu0 0.0
        %1840 = vmatmul.mubr.f32.gmra.mxu0 %v1172
        %v1841 = vpop.f32.mrf.mxu0
        %v1842 = vadd.f32 %v950, %v1841
        %v1843 = vpop.f32.mrf.mxu0
        %v1844 = vadd.f32 %v954, %v1843
        %1845 = vmatprep.mubr.f32.mxu0 0.0
        %1846 = vmatmul.mubr.f32.gmra.mxu0 %v1175
        %v1847 = vpop.f32.mrf.mxu0
        %v1848 = vadd.f32 %v950, %v1847
        %v1849 = vpop.f32.mrf.mxu0
        %v1850 = vadd.f32 %v954, %v1849
        %1851 = vmatprep.mubr.f32.mxu0 0.0
        %1852 = vmatmul.mubr.f32.gmra.mxu0 %v1178
        %v1853 = vpop.f32.mrf.mxu0
        %v1854 = vadd.f32 %v950, %v1853
        %v1855 = vpop.f32.mrf.mxu0
        %v1856 = vadd.f32 %v954, %v1855
        %1857 = vmatprep.mubr.f32.mxu0 0.0
        %1858 = vmatmul.mubr.f32.gmra.mxu0 %v1181
        %v1859 = vpop.f32.mrf.mxu0
        %v1860 = vadd.f32 %v950, %v1859
        %v1861 = vpop.f32.mrf.mxu0
        %v1862 = vadd.f32 %v954, %v1861
        %1863 = vmatprep.mubr.f32.mxu0 0.0
        %1864 = vmatmul.mubr.f32.gmra.mxu0 %v1184
        %v1865 = vpop.f32.mrf.mxu0
        %v1866 = vadd.f32 %v950, %v1865
        %v1867 = vpop.f32.mrf.mxu0
        %v1868 = vadd.f32 %v954, %v1867
        %1869 = vmatprep.mubr.f32.mxu0 0.0
        %1870 = vmatmul.mubr.f32.gmra.mxu0 %v1187
        %v1871 = vpop.f32.mrf.mxu0
        %v1872 = vadd.f32 %v950, %v1871
        %v1873 = vpop.f32.mrf.mxu0
        %v1874 = vadd.f32 %v954, %v1873
        %1875 = vmatprep.mubr.f32.mxu0 0.0
        %1876 = vmatmul.mubr.f32.gmra.mxu0 %v1190
        %v1877 = vpop.f32.mrf.mxu0
        %v1878 = vadd.f32 %v950, %v1877
        %v1879 = vpop.f32.mrf.mxu0
        %v1880 = vadd.f32 %v954, %v1879
        %1881 = vmatprep.mubr.f32.mxu0 0.0
        %1882 = vmatmul.mubr.f32.gmra.mxu0 %v1193
        %v1883 = vpop.f32.mrf.mxu0
        %v1884 = vadd.f32 %v950, %v1883
        %v1885 = vpop.f32.mrf.mxu0
        %v1886 = vadd.f32 %v954, %v1885
        %1887 = vmatprep.mubr.f32.mxu0 0.0
        %1888 = vmatmul.mubr.f32.gmra.mxu0 %v1196
        %v1889 = vpop.f32.mrf.mxu0
        %v1890 = vadd.f32 %v950, %v1889
        %v1891 = vpop.f32.mrf.mxu0
        %v1892 = vadd.f32 %v954, %v1891
        %1893 = vmatprep.mubr.f32.mxu0 0.0
        %1894 = vmatmul.mubr.f32.gmra.mxu0 %v1199
        %v1895 = vpop.f32.mrf.mxu0
        %v1896 = vadd.f32 %v950, %v1895
        %v1897 = vpop.f32.mrf.mxu0
        %v1898 = vadd.f32 %v954, %v1897
        %1899 = vmatprep.mubr.f32.mxu0 0.0
        %1900 = vmatmul.mubr.f32.gmra.mxu0 %v1202
        %v1901 = vpop.f32.mrf.mxu0
        %v1902 = vadd.f32 %v950, %v1901
        %v1903 = vpop.f32.mrf.mxu0
        %v1904 = vadd.f32 %v954, %v1903
        %1905 = vmatprep.mubr.f32.mxu0 0.0
        %1906 = vmatmul.mubr.f32.gmra.mxu0 %v1205
        %v1907 = vpop.f32.mrf.mxu0
        %v1908 = vadd.f32 %v950, %v1907
        %v1909 = vpop.f32.mrf.mxu0
        %v1910 = vadd.f32 %v954, %v1909
        %1911 = vmatprep.mubr.f32.mxu0 0.0
        %1912 = vmatmul.mubr.f32.gmra.mxu0 %v1208
        %v1913 = vpop.f32.mrf.mxu0
        %v1914 = vadd.f32 %v950, %v1913
        %v1915 = vpop.f32.mrf.mxu0
        %v1916 = vadd.f32 %v954, %v1915
        %1917 = vmatprep.mubr.f32.mxu0 0.0
        %1918 = vmatmul.mubr.f32.gmra.mxu0 %v1211
        %v1919 = vpop.f32.mrf.mxu0
        %v1920 = vadd.f32 %v950, %v1919
        %v1921 = vpop.f32.mrf.mxu0
        %v1922 = vadd.f32 %v954, %v1921
        %1923 = vmatprep.mubr.f32.mxu0 0.0
        %1924 = vmatmul.mubr.f32.gmra.mxu0 %v1214
        %v1925 = vpop.f32.mrf.mxu0
        %v1926 = vadd.f32 %v950, %v1925
        %v1927 = vpop.f32.mrf.mxu0
        %v1928 = vadd.f32 %v954, %v1927
        %1929 = vmatprep.mubr.f32.mxu0 0.0
        %1930 = vmatmul.mubr.f32.gmra.mxu0 %v1217
        %v1931 = vpop.f32.mrf.mxu0
        %v1932 = vadd.f32 %v950, %v1931
        %v1933 = vpop.f32.mrf.mxu0
        %v1934 = vadd.f32 %v954, %v1933
        %1935 = vmatprep.mubr.f32.mxu0 0.0
        %1936 = vmatmul.mubr.f32.gmra.mxu0 %v1220
        %v1937 = vpop.f32.mrf.mxu0
        %v1938 = vadd.f32 %v950, %v1937
        %v1939 = vpop.f32.mrf.mxu0
        %v1940 = vadd.f32 %v954, %v1939
        %1941 = vmatprep.mubr.f32.mxu0 0.0
        %1942 = vmatmul.mubr.f32.gmra.mxu0 %v1223
        %v1943 = vpop.f32.mrf.mxu0
        %v1944 = vadd.f32 %v950, %v1943
        %v1945 = vpop.f32.mrf.mxu0
        %v1946 = vadd.f32 %v954, %v1945
        %1947 = vmatprep.mubr.f32.mxu0 0.0
        %1948 = vmatmul.mubr.f32.gmra.mxu0 %v1226
        %v1949 = vpop.f32.mrf.mxu0
        %v1950 = vadd.f32 %v950, %v1949
        %v1951 = vpop.f32.mrf.mxu0
        %v1952 = vadd.f32 %v954, %v1951
        %1953 = vmatprep.mubr.f32.mxu0 0.0
        %1954 = vmatmul.mubr.f32.gmra.mxu0 %v1229
        %v1955 = vpop.f32.mrf.mxu0
        %v1956 = vadd.f32 %v950, %v1955
        %v1957 = vpop.f32.mrf.mxu0
        %v1958 = vadd.f32 %v954, %v1957
        %1959 = vmatprep.mubr.f32.mxu0 0.0
        %1960 = vmatmul.mubr.f32.gmra.mxu0 %v1232
        %v1961 = vpop.f32.mrf.mxu0
        %v1962 = vadd.f32 %v950, %v1961
        %v1963 = vpop.f32.mrf.mxu0
        %v1964 = vadd.f32 %v954, %v1963
        %1965 = vmatprep.mubr.f32.mxu0 0.0
        %1966 = vmatmul.mubr.f32.gmra.mxu0 %v1235
        %v1967 = vpop.f32.mrf.mxu0
        %v1968 = vadd.f32 %v950, %v1967
        %v1969 = vpop.f32.mrf.mxu0
        %v1970 = vadd.f32 %v954, %v1969
        %1971 = vmatprep.mubr.f32.mxu0 0.0
        %1972 = vmatmul.mubr.f32.gmra.mxu0 %v1238
        %v1973 = vpop.f32.mrf.mxu0
        %v1974 = vadd.f32 %v950, %v1973
        %v1975 = vpop.f32.mrf.mxu0
        %v1976 = vadd.f32 %v954, %v1975
        %1977 = vmatprep.mubr.f32.mxu0 0.0
        %1978 = vmatmul.mubr.f32.gmra.mxu0 %v1241
        %v1979 = vpop.f32.mrf.mxu0
        %v1980 = vadd.f32 %v950, %v1979
        %v1981 = vpop.f32.mrf.mxu0
        %v1982 = vadd.f32 %v954, %v1981
        %1983 = vmatprep.mubr.f32.mxu0 0.0
        %1984 = vmatmul.mubr.f32.gmra.mxu0 %v1244
        %v1985 = vpop.f32.mrf.mxu0
        %v1986 = vadd.f32 %v950, %v1985
        %v1987 = vpop.f32.mrf.mxu0
        %v1988 = vadd.f32 %v954, %v1987
        %1989 = vmatprep.mubr.f32.mxu0 0.0
        %1990 = vmatmul.mubr.f32.gmra.mxu0 %v1247
        %v1991 = vpop.f32.mrf.mxu0
        %v1992 = vadd.f32 %v950, %v1991
        %v1993 = vpop.f32.mrf.mxu0
        %v1994 = vadd.f32 %v954, %v1993
        %1995 = vmatprep.mubr.f32.mxu0 0.0
        %1996 = vmatmul.mubr.f32.gmra.mxu0 %v1250
        %v1997 = vpop.f32.mrf.mxu0
        %v1998 = vadd.f32 %v950, %v1997
        %v1999 = vpop.f32.mrf.mxu0
        %v2000 = vadd.f32 %v954, %v1999
        %2001 = vmatprep.mubr.f32.mxu0 0.0
        %2002 = vmatmul.mubr.f32.gmra.mxu0 %v1253
        %v2003 = vpop.f32.mrf.mxu0
        %v2004 = vadd.f32 %v950, %v2003
        %v2005 = vpop.f32.mrf.mxu0
        %v2006 = vadd.f32 %v954, %v2005
        %2007 = vmatprep.mubr.f32.mxu0 0.0
        %2008 = vmatmul.mubr.f32.gmra.mxu0 %v1256
        %v2009 = vpop.f32.mrf.mxu0
        %v2010 = vadd.f32 %v950, %v2009
        %v2011 = vpop.f32.mrf.mxu0
        %v2012 = vadd.f32 %v954, %v2011
        %2013 = vmatprep.mubr.f32.mxu0 0.0
        %2014 = vmatmul.mubr.f32.gmra.mxu0 %v1259
        %v2015 = vpop.f32.mrf.mxu0
        %v2016 = vadd.f32 %v950, %v2015
        %v2017 = vpop.f32.mrf.mxu0
        %v2018 = vadd.f32 %v954, %v2017
        %2019 = vmatprep.mubr.f32.mxu0 0.0
        %2020 = vmatmul.mubr.f32.gmra.mxu0 %v1262
        %v2021 = vpop.f32.mrf.mxu0
        %v2022 = vadd.f32 %v950, %v2021
        %v2023 = vpop.f32.mrf.mxu0
        %v2024 = vadd.f32 %v954, %v2023
        %2025 = vmatprep.mubr.f32.mxu0 0.0
        %2026 = vmatmul.mubr.f32.gmra.mxu0 %v1265
        %v2027 = vpop.f32.mrf.mxu0
        %v2028 = vadd.f32 %v950, %v2027
        %v2029 = vpop.f32.mrf.mxu0
        %v2030 = vadd.f32 %v954, %v2029
        %2031 = vmatprep.mubr.f32.mxu0 0.0
        %2032 = vmatmul.mubr.f32.gmra.mxu0 %v1268
        %v2033 = vpop.f32.mrf.mxu0
        %v2034 = vadd.f32 %v950, %v2033
        %v2035 = vpop.f32.mrf.mxu0
        %v2036 = vadd.f32 %v954, %v2035
        %2037 = vmatprep.mubr.f32.mxu0 0.0
        %2038 = vmatmul.mubr.f32.gmra.mxu0 %v1271
        %v2039 = vpop.f32.mrf.mxu0
        %v2040 = vadd.f32 %v950, %v2039
        %v2041 = vpop.f32.mrf.mxu0
        %v2042 = vadd.f32 %v954, %v2041
        %2043 = vmatprep.mubr.f32.mxu0 0.0
        %2044 = vmatmul.mubr.f32.gmra.mxu0 %v1274
        %v2045 = vpop.f32.mrf.mxu0
        %v2046 = vadd.f32 %v950, %v2045
        %v2047 = vpop.f32.mrf.mxu0
        %v2048 = vadd.f32 %v954, %v2047
        %2049 = vmatprep.mubr.f32.mxu0 0.0
        %2050 = vmatmul.mubr.f32.gmra.mxu0 %v1277
        %v2051 = vpop.f32.mrf.mxu0
        %v2052 = vadd.f32 %v950, %v2051
        %v2053 = vpop.f32.mrf.mxu0
        %v2054 = vadd.f32 %v954, %v2053
        %2055 = vmatprep.mubr.f32.mxu0 0.0
        %2056 = vmatmul.mubr.f32.gmra.mxu0 %v1280
        %v2057 = vpop.f32.mrf.mxu0
        %v2058 = vadd.f32 %v950, %v2057
        %v2059 = vpop.f32.mrf.mxu0
        %v2060 = vadd.f32 %v954, %v2059
        %2061 = vmatprep.mubr.f32.mxu0 0.0
        %2062 = vmatmul.mubr.f32.gmra.mxu0 %v1283
        %v2063 = vpop.f32.mrf.mxu0
        %v2064 = vadd.f32 %v950, %v2063
        %v2065 = vpop.f32.mrf.mxu0
        %v2066 = vadd.f32 %v954, %v2065
        %2067 = vmatprep.mubr.f32.mxu0 0.0
        %2068 = vmatmul.mubr.f32.gmra.mxu0 %v1286
        %v2069 = vpop.f32.mrf.mxu0
        %v2070 = vadd.f32 %v950, %v2069
        %v2071 = vpop.f32.mrf.mxu0
        %v2072 = vadd.f32 %v954, %v2071
        %2073 = vmatprep.mubr.f32.mxu0 0.0
        %2074 = vmatmul.mubr.f32.gmra.mxu0 %v1289
        %v2075 = vpop.f32.mrf.mxu0
        %v2076 = vadd.f32 %v950, %v2075
        %v2077 = vpop.f32.mrf.mxu0
        %v2078 = vadd.f32 %v954, %v2077
        %2079 = vmatprep.mubr.f32.mxu0 0.0
        %2080 = vmatmul.mubr.f32.gmra.mxu0 %v1292
        %v2081 = vpop.f32.mrf.mxu0
        %v2082 = vadd.f32 %v950, %v2081
        %v2083 = vpop.f32.mrf.mxu0
        %v2084 = vadd.f32 %v954, %v2083
        %2085 = vmatprep.mubr.f32.mxu0 0.0
        %2086 = vmatmul.mubr.f32.gmra.mxu0 %v1295
        %v2087 = vpop.f32.mrf.mxu0
        %v2088 = vadd.f32 %v950, %v2087
        %v2089 = vpop.f32.mrf.mxu0
        %v2090 = vadd.f32 %v954, %v2089
        %2091 = vmatprep.mubr.f32.mxu0 0.0
        %2092 = vmatmul.mubr.f32.gmra.mxu0 %v1298
        %v2093 = vpop.f32.mrf.mxu0
        %v2094 = vadd.f32 %v950, %v2093
        %v2095 = vpop.f32.mrf.mxu0
        %v2096 = vadd.f32 %v954, %v2095
        %2097 = vmatprep.mubr.f32.mxu0 0.0
        %2098 = vmatmul.mubr.f32.gmra.mxu0 %v1301
        %v2099 = vpop.f32.mrf.mxu0
        %v2100 = vadd.f32 %v950, %v2099
        %v2101 = vpop.f32.mrf.mxu0
        %v2102 = vadd.f32 %v954, %v2101
        %2103 = vmatprep.mubr.f32.mxu0 0.0
        %2104 = vmatmul.mubr.f32.gmra.mxu0 %v1304
        %v2105 = vpop.f32.mrf.mxu0
        %v2106 = vadd.f32 %v950, %v2105
        %v2107 = vpop.f32.mrf.mxu0
        %v2108 = vadd.f32 %v954, %v2107
        %2109 = vmatprep.mubr.f32.mxu0 0.0
        %2110 = vmatmul.mubr.f32.gmra.mxu0 %v1307
        %v2111 = vpop.f32.mrf.mxu0
        %v2112 = vadd.f32 %v950, %v2111
        %v2113 = vpop.f32.mrf.mxu0
        %v2114 = vadd.f32 %v954, %v2113
        %2115 = vmatprep.mubr.f32.mxu0 0.0
        %2116 = vmatmul.mubr.f32.gmra.mxu0 %v1310
        %v2117 = vpop.f32.mrf.mxu0
        %v2118 = vadd.f32 %v950, %v2117
        %v2119 = vpop.f32.mrf.mxu0
        %v2120 = vadd.f32 %v954, %v2119
        %2121 = vmatprep.mubr.f32.mxu0 0.0
        %2122 = vmatmul.mubr.f32.gmra.mxu0 %v1313
        %v2123 = vpop.f32.mrf.mxu0
        %v2124 = vadd.f32 %v950, %v2123
        %v2125 = vpop.f32.mrf.mxu0
        %v2126 = vadd.f32 %v954, %v2125
        %2127 = vmatprep.mubr.f32.mxu0 0.0
        %2128 = vmatmul.mubr.f32.gmra.mxu0 %v1316
        %v2129 = vpop.f32.mrf.mxu0
        %v2130 = vadd.f32 %v950, %v2129
        %v2131 = vpop.f32.mrf.mxu0
        %v2132 = vadd.f32 %v954, %v2131
        %2133 = vmatprep.mubr.f32.mxu0 0.0
        %2134 = vmatmul.mubr.f32.gmra.mxu0 %v1319
        %v2135 = vpop.f32.mrf.mxu0
        %v2136 = vadd.f32 %v950, %v2135
        %v2137 = vpop.f32.mrf.mxu0
        %v2138 = vadd.f32 %v954, %v2137
        %2139 = vmatprep.mubr.f32.mxu0 0.0
        %2140 = vmatmul.mubr.f32.gmra.mxu0 %v1322
        %v2141 = vpop.f32.mrf.mxu0
        %v2142 = vadd.f32 %v950, %v2141
        %v2143 = vpop.f32.mrf.mxu0
        %v2144 = vadd.f32 %v954, %v2143
        %2145 = vmatprep.mubr.f32.mxu0 0.0
        %2146 = vmatmul.mubr.f32.gmra.mxu0 %v1325
        %v2147 = vpop.f32.mrf.mxu0
        %v2148 = vadd.f32 %v950, %v2147
        %v2149 = vpop.f32.mrf.mxu0
        %v2150 = vadd.f32 %v954, %v2149
        %2151 = vmatprep.mubr.f32.mxu0 0.0
        %2152 = vmatmul.mubr.f32.gmra.mxu0 %v1328
        %v2153 = vpop.f32.mrf.mxu0
        %v2154 = vadd.f32 %v950, %v2153
        %v2155 = vpop.f32.mrf.mxu0
        %v2156 = vadd.f32 %v954, %v2155
        %2157 = vmatprep.mubr.f32.mxu0 0.0
        %2158 = vmatmul.mubr.f32.gmra.mxu0 %v1331
        %v2159 = vpop.f32.mrf.mxu0
        %v2160 = vadd.f32 %v950, %v2159
        %v2161 = vpop.f32.mrf.mxu0
        %v2162 = vadd.f32 %v954, %v2161
        %2163 = vmatprep.mubr.f32.mxu0 0.0
        %2164 = vmatmul.mubr.f32.gmra.mxu0 %v1334
        %v2165 = vpop.f32.mrf.mxu0
        %v2166 = vadd.f32 %v950, %v2165
        %v2167 = vpop.f32.mrf.mxu0
        %v2168 = vadd.f32 %v954, %v2167
        %2169 = vmatprep.mubr.f32.mxu0 0.0
        %2170 = vmatmul.mubr.f32.gmra.mxu0 %v1337
        %v2171 = vpop.f32.mrf.mxu0
        %v2172 = vadd.f32 %v950, %v2171
        %v2173 = vpop.f32.mrf.mxu0
        %v2174 = vadd.f32 %v954, %v2173
        %2175 = vmatprep.mubr.f32.mxu0 0.0
        %2176 = vmatmul.mubr.f32.gmra.mxu0 %v1340
        %v2177 = vpop.f32.mrf.mxu0
        %v2178 = vadd.f32 %v950, %v2177
        %v2179 = vpop.f32.mrf.mxu0
        %v2180 = vadd.f32 %v954, %v2179
        %2181 = vdwg.mxu0
        %v2182 = vmax.f32 %v1416, 0.0
        %v2183 = vmax.f32 %v1418, 0.0
        %v2184 = vmax.f32 %v1422, 0.0
        %v2185 = vmax.f32 %v1424, 0.0
        %v2186 = vmax.f32 %v1428, 0.0
        %v2187 = vmax.f32 %v1430, 0.0
        %v2188 = vmax.f32 %v1434, 0.0
        %v2189 = vmax.f32 %v1436, 0.0
        %v2190 = vmax.f32 %v1440, 0.0
        %v2191 = vmax.f32 %v1442, 0.0
        %v2192 = vmax.f32 %v1446, 0.0
        %v2193 = vmax.f32 %v1448, 0.0
        %v2194 = vmax.f32 %v1452, 0.0
        %v2195 = vmax.f32 %v1454, 0.0
        %v2196 = vmax.f32 %v1458, 0.0
        %v2197 = vmax.f32 %v1460, 0.0
        %v2198 = vmax.f32 %v1464, 0.0
        %v2199 = vmax.f32 %v1466, 0.0
        %v2200 = vmax.f32 %v1470, 0.0
        %v2201 = vmax.f32 %v1472, 0.0
        %v2202 = vmax.f32 %v1476, 0.0
        %v2203 = vmax.f32 %v1478, 0.0
        %v2204 = vmax.f32 %v1482, 0.0
        %v2205 = vmax.f32 %v1484, 0.0
        %v2206 = vmax.f32 %v1488, 0.0
        %v2207 = vmax.f32 %v1490, 0.0
        %v2208 = vmax.f32 %v1494, 0.0
        %v2209 = vmax.f32 %v1496, 0.0
        %v2210 = vmax.f32 %v1500, 0.0
        %v2211 = vmax.f32 %v1502, 0.0
        %v2212 = vmax.f32 %v1506, 0.0
        %v2213 = vmax.f32 %v1508, 0.0
        %v2214 = vmax.f32 %v1512, 0.0
        %v2215 = vmax.f32 %v1514, 0.0
        %v2216 = vmax.f32 %v1518, 0.0
        %v2217 = vmax.f32 %v1520, 0.0
        %v2218 = vmax.f32 %v1524, 0.0
        %v2219 = vmax.f32 %v1526, 0.0
        %v2220 = vmax.f32 %v1530, 0.0
        %v2221 = vmax.f32 %v1532, 0.0
        %v2222 = vmax.f32 %v1536, 0.0
        %v2223 = vmax.f32 %v1538, 0.0
        %v2224 = vmax.f32 %v1542, 0.0
        %v2225 = vmax.f32 %v1544, 0.0
        %v2226 = vmax.f32 %v1548, 0.0
        %v2227 = vmax.f32 %v1550, 0.0
        %v2228 = vmax.f32 %v1554, 0.0
        %v2229 = vmax.f32 %v1556, 0.0
        %v2230 = vmax.f32 %v1560, 0.0
        %v2231 = vmax.f32 %v1562, 0.0
        %v2232 = vmax.f32 %v1566, 0.0
        %v2233 = vmax.f32 %v1568, 0.0
        %v2234 = vmax.f32 %v1572, 0.0
        %v2235 = vmax.f32 %v1574, 0.0
        %v2236 = vmax.f32 %v1578, 0.0
        %v2237 = vmax.f32 %v1580, 0.0
        %v2238 = vmax.f32 %v1584, 0.0
        %v2239 = vmax.f32 %v1586, 0.0
        %v2240 = vmax.f32 %v1590, 0.0
        %v2241 = vmax.f32 %v1592, 0.0
        %v2242 = vmax.f32 %v1596, 0.0
        %v2243 = vmax.f32 %v1598, 0.0
        %v2244 = vmax.f32 %v1602, 0.0
        %v2245 = vmax.f32 %v1604, 0.0
        %v2246 = vmax.f32 %v1608, 0.0
        %v2247 = vmax.f32 %v1610, 0.0
        %v2248 = vmax.f32 %v1614, 0.0
        %v2249 = vmax.f32 %v1616, 0.0
        %v2250 = vmax.f32 %v1620, 0.0
        %v2251 = vmax.f32 %v1622, 0.0
        %v2252 = vmax.f32 %v1626, 0.0
        %v2253 = vmax.f32 %v1628, 0.0
        %v2254 = vmax.f32 %v1632, 0.0
        %v2255 = vmax.f32 %v1634, 0.0
        %v2256 = vmax.f32 %v1638, 0.0
        %v2257 = vmax.f32 %v1640, 0.0
        %v2258 = vmax.f32 %v1644, 0.0
        %v2259 = vmax.f32 %v1646, 0.0
        %v2260 = vmax.f32 %v1650, 0.0
        %v2261 = vmax.f32 %v1652, 0.0
        %v2262 = vmax.f32 %v1656, 0.0
        %v2263 = vmax.f32 %v1658, 0.0
        %v2264 = vmax.f32 %v1662, 0.0
        %v2265 = vmax.f32 %v1664, 0.0
        %v2266 = vmax.f32 %v1668, 0.0
        %v2267 = vmax.f32 %v1670, 0.0
        %v2268 = vmax.f32 %v1674, 0.0
        %v2269 = vmax.f32 %v1676, 0.0
        %v2270 = vmax.f32 %v1680, 0.0
        %v2271 = vmax.f32 %v1682, 0.0
        %v2272 = vmax.f32 %v1686, 0.0
        %v2273 = vmax.f32 %v1688, 0.0
        %v2274 = vmax.f32 %v1692, 0.0
        %v2275 = vmax.f32 %v1694, 0.0
        %v2276 = vmax.f32 %v1698, 0.0
        %v2277 = vmax.f32 %v1700, 0.0
        %v2278 = vmax.f32 %v1704, 0.0
        %v2279 = vmax.f32 %v1706, 0.0
        %v2280 = vmax.f32 %v1710, 0.0
        %v2281 = vmax.f32 %v1712, 0.0
        %v2282 = vmax.f32 %v1716, 0.0
        %v2283 = vmax.f32 %v1718, 0.0
        %v2284 = vmax.f32 %v1722, 0.0
        %v2285 = vmax.f32 %v1724, 0.0
        %v2286 = vmax.f32 %v1728, 0.0
        %v2287 = vmax.f32 %v1730, 0.0
        %v2288 = vmax.f32 %v1734, 0.0
        %v2289 = vmax.f32 %v1736, 0.0
        %v2290 = vmax.f32 %v1740, 0.0
        %v2291 = vmax.f32 %v1742, 0.0
        %v2292 = vmax.f32 %v1746, 0.0
        %v2293 = vmax.f32 %v1748, 0.0
        %v2294 = vmax.f32 %v1752, 0.0
        %v2295 = vmax.f32 %v1754, 0.0
        %v2296 = vmax.f32 %v1758, 0.0
        %v2297 = vmax.f32 %v1760, 0.0
        %v2298 = vmax.f32 %v1764, 0.0
        %v2299 = vmax.f32 %v1766, 0.0
        %v2300 = vmax.f32 %v1770, 0.0
        %v2301 = vmax.f32 %v1772, 0.0
        %v2302 = vmax.f32 %v1776, 0.0
        %v2303 = vmax.f32 %v1778, 0.0
        %v2304 = vmax.f32 %v1782, 0.0
        %v2305 = vmax.f32 %v1784, 0.0
        %v2306 = vmax.f32 %v1788, 0.0
        %v2307 = vmax.f32 %v1790, 0.0
        %v2308 = vmax.f32 %v1794, 0.0
        %v2309 = vmax.f32 %v1796, 0.0
        %v2310 = vmax.f32 %v1800, 0.0
        %v2311 = vmax.f32 %v1802, 0.0
        %v2312 = vmax.f32 %v1806, 0.0
        %v2313 = vmax.f32 %v1808, 0.0
        %v2314 = vmax.f32 %v1812, 0.0
        %v2315 = vmax.f32 %v1814, 0.0
        %v2316 = vmax.f32 %v1818, 0.0
        %v2317 = vmax.f32 %v1820, 0.0
        %v2318 = vmax.f32 %v1824, 0.0
        %v2319 = vmax.f32 %v1826, 0.0
        %v2320 = vmax.f32 %v1830, 0.0
        %v2321 = vmax.f32 %v1832, 0.0
        %v2322 = vmax.f32 %v1836, 0.0
        %v2323 = vmax.f32 %v1838, 0.0
        %v2324 = vmax.f32 %v1842, 0.0
        %v2325 = vmax.f32 %v1844, 0.0
        %v2326 = vmax.f32 %v1848, 0.0
        %v2327 = vmax.f32 %v1850, 0.0
        %v2328 = vmax.f32 %v1854, 0.0
        %v2329 = vmax.f32 %v1856, 0.0
        %v2330 = vmax.f32 %v1860, 0.0
        %v2331 = vmax.f32 %v1862, 0.0
        %v2332 = vmax.f32 %v1866, 0.0
        %v2333 = vmax.f32 %v1868, 0.0
        %v2334 = vmax.f32 %v1872, 0.0
        %v2335 = vmax.f32 %v1874, 0.0
        %v2336 = vmax.f32 %v1878, 0.0
        %v2337 = vmax.f32 %v1880, 0.0
        %v2338 = vmax.f32 %v1884, 0.0
        %v2339 = vmax.f32 %v1886, 0.0
        %v2340 = vmax.f32 %v1890, 0.0
        %v2341 = vmax.f32 %v1892, 0.0
        %v2342 = vmax.f32 %v1896, 0.0
        %v2343 = vmax.f32 %v1898, 0.0
        %v2344 = vmax.f32 %v1902, 0.0
        %v2345 = vmax.f32 %v1904, 0.0
        %v2346 = vmax.f32 %v1908, 0.0
        %v2347 = vmax.f32 %v1910, 0.0
        %v2348 = vmax.f32 %v1914, 0.0
        %v2349 = vmax.f32 %v1916, 0.0
        %v2350 = vmax.f32 %v1920, 0.0
        %v2351 = vmax.f32 %v1922, 0.0
        %v2352 = vmax.f32 %v1926, 0.0
        %v2353 = vmax.f32 %v1928, 0.0
        %v2354 = vmax.f32 %v1932, 0.0
        %v2355 = vmax.f32 %v1934, 0.0
        %v2356 = vmax.f32 %v1938, 0.0
        %v2357 = vmax.f32 %v1940, 0.0
        %v2358 = vmax.f32 %v1944, 0.0
        %v2359 = vmax.f32 %v1946, 0.0
        %v2360 = vmax.f32 %v1950, 0.0
        %v2361 = vmax.f32 %v1952, 0.0
        %v2362 = vmax.f32 %v1956, 0.0
        %v2363 = vmax.f32 %v1958, 0.0
        %v2364 = vmax.f32 %v1962, 0.0
        %v2365 = vmax.f32 %v1964, 0.0
        %v2366 = vmax.f32 %v1968, 0.0
        %v2367 = vmax.f32 %v1970, 0.0
        %v2368 = vmax.f32 %v1974, 0.0
        %v2369 = vmax.f32 %v1976, 0.0
        %v2370 = vmax.f32 %v1980, 0.0
        %v2371 = vmax.f32 %v1982, 0.0
        %v2372 = vmax.f32 %v1986, 0.0
        %v2373 = vmax.f32 %v1988, 0.0
        %v2374 = vmax.f32 %v1992, 0.0
        %v2375 = vmax.f32 %v1994, 0.0
        %v2376 = vmax.f32 %v1998, 0.0
        %v2377 = vmax.f32 %v2000, 0.0
        %v2378 = vmax.f32 %v2004, 0.0
        %v2379 = vmax.f32 %v2006, 0.0
        %v2380 = vmax.f32 %v2010, 0.0
        %v2381 = vmax.f32 %v2012, 0.0
        %v2382 = vmax.f32 %v2016, 0.0
        %v2383 = vmax.f32 %v2018, 0.0
        %v2384 = vmax.f32 %v2022, 0.0
        %v2385 = vmax.f32 %v2024, 0.0
        %v2386 = vmax.f32 %v2028, 0.0
        %v2387 = vmax.f32 %v2030, 0.0
        %v2388 = vmax.f32 %v2034, 0.0
        %v2389 = vmax.f32 %v2036, 0.0
        %v2390 = vmax.f32 %v2040, 0.0
        %v2391 = vmax.f32 %v2042, 0.0
        %v2392 = vmax.f32 %v2046, 0.0
        %v2393 = vmax.f32 %v2048, 0.0
        %v2394 = vmax.f32 %v2052, 0.0
        %v2395 = vmax.f32 %v2054, 0.0
        %v2396 = vmax.f32 %v2058, 0.0
        %v2397 = vmax.f32 %v2060, 0.0
        %v2398 = vmax.f32 %v2064, 0.0
        %v2399 = vmax.f32 %v2066, 0.0
        %v2400 = vmax.f32 %v2070, 0.0
        %v2401 = vmax.f32 %v2072, 0.0
        %v2402 = vmax.f32 %v2076, 0.0
        %v2403 = vmax.f32 %v2078, 0.0
        %v2404 = vmax.f32 %v2082, 0.0
        %v2405 = vmax.f32 %v2084, 0.0
        %v2406 = vmax.f32 %v2088, 0.0
        %v2407 = vmax.f32 %v2090, 0.0
        %v2408 = vmax.f32 %v2094, 0.0
        %v2409 = vmax.f32 %v2096, 0.0
        %v2410 = vmax.f32 %v2100, 0.0
        %v2411 = vmax.f32 %v2102, 0.0
        %v2412 = vmax.f32 %v2106, 0.0
        %v2413 = vmax.f32 %v2108, 0.0
        %v2414 = vmax.f32 %v2112, 0.0
        %v2415 = vmax.f32 %v2114, 0.0
        %v2416 = vmax.f32 %v2118, 0.0
        %v2417 = vmax.f32 %v2120, 0.0
        %v2418 = vmax.f32 %v2124, 0.0
        %v2419 = vmax.f32 %v2126, 0.0
        %v2420 = vmax.f32 %v2130, 0.0
        %v2421 = vmax.f32 %v2132, 0.0
        %v2422 = vmax.f32 %v2136, 0.0
        %v2423 = vmax.f32 %v2138, 0.0
        %v2424 = vmax.f32 %v2142, 0.0
        %v2425 = vmax.f32 %v2144, 0.0
        %v2426 = vmax.f32 %v2148, 0.0
        %v2427 = vmax.f32 %v2150, 0.0
        %v2428 = vmax.f32 %v2154, 0.0
        %v2429 = vmax.f32 %v2156, 0.0
        %v2430 = vmax.f32 %v2160, 0.0
        %v2431 = vmax.f32 %v2162, 0.0
        %v2432 = vmax.f32 %v2166, 0.0
        %v2433 = vmax.f32 %v2168, 0.0
        %v2434 = vmax.f32 %v2172, 0.0
        %v2435 = vmax.f32 %v2174, 0.0
        %v2436 = vmax.f32 %v2178, 0.0
        %v2437 = vmax.f32 %v2180, 0.0
        %v2438 = vld [vmem:[#allocation2] sm:$0xff]
        %v2439 = vld [vmem:[#allocation2 + $0x8] sm:$0xff]
        %v2440 = vld [vmem:[#allocation2 + $0x10] sm:$0xff]
        %v2441 = vld [vmem:[#allocation2 + $0x18] sm:$0xff]
        %v2442 = vld [vmem:[#allocation2 + $0x20] sm:$0xff]
        %v2443 = vld [vmem:[#allocation2 + $0x28] sm:$0xff]
        %v2444 = vld [vmem:[#allocation2 + $0x30] sm:$0xff]
        %v2445 = vld [vmem:[#allocation2 + $0x38] sm:$0xff]
        %v2446 = vadd.f32 %v2182, %v2184
        %v2447 = vadd.f32 %v2446, %v2186
        %v2448 = vadd.f32 %v2447, %v2188
        %v2449 = vrot.slane %v2448, 4
        %v2450 = vadd.f32 %v2448, %v2449
        %v2451 = vrot.slane %v2450, 2
        %v2452 = vadd.f32 %v2450, %v2451
        %v2453 = vrot.slane %v2452, 1
        %v2454 = vadd.f32 %v2452, %v2453
        %v2455 = vadd.f32 %v2183, %v2185
        %v2456 = vadd.f32 %v2455, %v2187
        %v2457 = vadd.f32 %v2456, %v2189
        %v2458 = vrot.slane %v2457, 4
        %v2459 = vadd.f32 %v2457, %v2458
        %v2460 = vrot.slane %v2459, 2
        %v2461 = vadd.f32 %v2459, %v2460
        %v2462 = vrot.slane %v2461, 1
        %v2463 = vadd.f32 %v2461, %v2462
        %v2464 = vadd.f32 %v2190, %v2192
        %v2465 = vadd.f32 %v2464, %v2194
        %v2466 = vadd.f32 %v2465, %v2196
        %v2467 = vrot.slane %v2466, 4
        %v2468 = vadd.f32 %v2466, %v2467
        %v2469 = vrot.slane %v2468, 2
        %v2470 = vadd.f32 %v2468, %v2469
        %v2471 = vrot.slane %v2470, 1
        %v2472 = vadd.f32 %v2470, %v2471
        %v2473 = vadd.f32 %v2191, %v2193
        %v2474 = vadd.f32 %v2473, %v2195
        %v2475 = vadd.f32 %v2474, %v2197
        %v2476 = vrot.slane %v2475, 4
        %v2477 = vadd.f32 %v2475, %v2476
        %v2478 = vrot.slane %v2477, 2
        %v2479 = vadd.f32 %v2477, %v2478
        %v2480 = vrot.slane %v2479, 1
        %v2481 = vadd.f32 %v2479, %v2480
        %v2482 = vadd.f32 %v2198, %v2200
        %v2483 = vadd.f32 %v2482, %v2202
        %v2484 = vadd.f32 %v2483, %v2204
        %v2485 = vrot.slane %v2484, 4
        %v2486 = vadd.f32 %v2484, %v2485
        %v2487 = vrot.slane %v2486, 2
        %v2488 = vadd.f32 %v2486, %v2487
        %v2489 = vrot.slane %v2488, 1
        %v2490 = vadd.f32 %v2488, %v2489
        %v2491 = vadd.f32 %v2199, %v2201
        %v2492 = vadd.f32 %v2491, %v2203
        %v2493 = vadd.f32 %v2492, %v2205
        %v2494 = vrot.slane %v2493, 4
        %v2495 = vadd.f32 %v2493, %v2494
        %v2496 = vrot.slane %v2495, 2
        %v2497 = vadd.f32 %v2495, %v2496
        %v2498 = vrot.slane %v2497, 1
        %v2499 = vadd.f32 %v2497, %v2498
        %v2500 = vadd.f32 %v2206, %v2208
        %v2501 = vadd.f32 %v2500, %v2210
        %v2502 = vadd.f32 %v2501, %v2212
        %v2503 = vrot.slane %v2502, 4
        %v2504 = vadd.f32 %v2502, %v2503
        %v2505 = vrot.slane %v2504, 2
        %v2506 = vadd.f32 %v2504, %v2505
        %v2507 = vrot.slane %v2506, 1
        %v2508 = vadd.f32 %v2506, %v2507
        %v2509 = vadd.f32 %v2207, %v2209
        %v2510 = vadd.f32 %v2509, %v2211
        %v2511 = vadd.f32 %v2510, %v2213
        %v2512 = vrot.slane %v2511, 4
        %v2513 = vadd.f32 %v2511, %v2512
        %v2514 = vrot.slane %v2513, 2
        %v2515 = vadd.f32 %v2513, %v2514
        %v2516 = vrot.slane %v2515, 1
        %v2517 = vadd.f32 %v2515, %v2516
        %v2518 = vadd.f32 %v2214, %v2216
        %v2519 = vadd.f32 %v2518, %v2218
        %v2520 = vadd.f32 %v2519, %v2220
        %v2521 = vrot.slane %v2520, 4
        %v2522 = vadd.f32 %v2520, %v2521
        %v2523 = vrot.slane %v2522, 2
        %v2524 = vadd.f32 %v2522, %v2523
        %v2525 = vrot.slane %v2524, 1
        %v2526 = vadd.f32 %v2524, %v2525
        %v2527 = vadd.f32 %v2215, %v2217
        %v2528 = vadd.f32 %v2527, %v2219
        %v2529 = vadd.f32 %v2528, %v2221
        %v2530 = vrot.slane %v2529, 4
        %v2531 = vadd.f32 %v2529, %v2530
        %v2532 = vrot.slane %v2531, 2
        %v2533 = vadd.f32 %v2531, %v2532
        %v2534 = vrot.slane %v2533, 1
        %v2535 = vadd.f32 %v2533, %v2534
        %v2536 = vadd.f32 %v2222, %v2224
        %v2537 = vadd.f32 %v2536, %v2226
        %v2538 = vadd.f32 %v2537, %v2228
        %v2539 = vrot.slane %v2538, 4
        %v2540 = vadd.f32 %v2538, %v2539
        %v2541 = vrot.slane %v2540, 2
        %v2542 = vadd.f32 %v2540, %v2541
        %v2543 = vrot.slane %v2542, 1
        %v2544 = vadd.f32 %v2542, %v2543
        %v2545 = vadd.f32 %v2223, %v2225
        %v2546 = vadd.f32 %v2545, %v2227
        %v2547 = vadd.f32 %v2546, %v2229
        %v2548 = vrot.slane %v2547, 4
        %v2549 = vadd.f32 %v2547, %v2548
        %v2550 = vrot.slane %v2549, 2
        %v2551 = vadd.f32 %v2549, %v2550
        %v2552 = vrot.slane %v2551, 1
        %v2553 = vadd.f32 %v2551, %v2552
        %v2554 = vadd.f32 %v2230, %v2232
        %v2555 = vadd.f32 %v2554, %v2234
        %v2556 = vadd.f32 %v2555, %v2236
        %v2557 = vrot.slane %v2556, 4
        %v2558 = vadd.f32 %v2556, %v2557
        %v2559 = vrot.slane %v2558, 2
        %v2560 = vadd.f32 %v2558, %v2559
        %v2561 = vrot.slane %v2560, 1
        %v2562 = vadd.f32 %v2560, %v2561
        %v2563 = vadd.f32 %v2231, %v2233
        %v2564 = vadd.f32 %v2563, %v2235
        %v2565 = vadd.f32 %v2564, %v2237
        %v2566 = vrot.slane %v2565, 4
        %v2567 = vadd.f32 %v2565, %v2566
        %v2568 = vrot.slane %v2567, 2
        %v2569 = vadd.f32 %v2567, %v2568
        %v2570 = vrot.slane %v2569, 1
        %v2571 = vadd.f32 %v2569, %v2570
        %v2572 = vadd.f32 %v2238, %v2240
        %v2573 = vadd.f32 %v2572, %v2242
        %v2574 = vadd.f32 %v2573, %v2244
        %v2575 = vrot.slane %v2574, 4
        %v2576 = vadd.f32 %v2574, %v2575
        %v2577 = vrot.slane %v2576, 2
        %v2578 = vadd.f32 %v2576, %v2577
        %v2579 = vrot.slane %v2578, 1
        %v2580 = vadd.f32 %v2578, %v2579
        %v2581 = vadd.f32 %v2239, %v2241
        %v2582 = vadd.f32 %v2581, %v2243
        %v2583 = vadd.f32 %v2582, %v2245
        %v2584 = vrot.slane %v2583, 4
        %v2585 = vadd.f32 %v2583, %v2584
        %v2586 = vrot.slane %v2585, 2
        %v2587 = vadd.f32 %v2585, %v2586
        %v2588 = vrot.slane %v2587, 1
        %v2589 = vadd.f32 %v2587, %v2588
        %v2590 = vadd.f32 %v2246, %v2248
        %v2591 = vadd.f32 %v2590, %v2250
        %v2592 = vadd.f32 %v2591, %v2252
        %v2593 = vrot.slane %v2592, 4
        %v2594 = vadd.f32 %v2592, %v2593
        %v2595 = vrot.slane %v2594, 2
        %v2596 = vadd.f32 %v2594, %v2595
        %v2597 = vrot.slane %v2596, 1
        %v2598 = vadd.f32 %v2596, %v2597
        %v2599 = vadd.f32 %v2247, %v2249
        %v2600 = vadd.f32 %v2599, %v2251
        %v2601 = vadd.f32 %v2600, %v2253
        %v2602 = vrot.slane %v2601, 4
        %v2603 = vadd.f32 %v2601, %v2602
        %v2604 = vrot.slane %v2603, 2
        %v2605 = vadd.f32 %v2603, %v2604
        %v2606 = vrot.slane %v2605, 1
        %v2607 = vadd.f32 %v2605, %v2606
        %v2608 = vadd.f32 %v2254, %v2256
        %v2609 = vadd.f32 %v2608, %v2258
        %v2610 = vadd.f32 %v2609, %v2260
        %v2611 = vrot.slane %v2610, 4
        %v2612 = vadd.f32 %v2610, %v2611
        %v2613 = vrot.slane %v2612, 2
        %v2614 = vadd.f32 %v2612, %v2613
        %v2615 = vrot.slane %v2614, 1
        %v2616 = vadd.f32 %v2614, %v2615
        %v2617 = vadd.f32 %v2255, %v2257
        %v2618 = vadd.f32 %v2617, %v2259
        %v2619 = vadd.f32 %v2618, %v2261
        %v2620 = vrot.slane %v2619, 4
        %v2621 = vadd.f32 %v2619, %v2620
        %v2622 = vrot.slane %v2621, 2
        %v2623 = vadd.f32 %v2621, %v2622
        %v2624 = vrot.slane %v2623, 1
        %v2625 = vadd.f32 %v2623, %v2624
        %v2626 = vadd.f32 %v2262, %v2264
        %v2627 = vadd.f32 %v2626, %v2266
        %v2628 = vadd.f32 %v2627, %v2268
        %v2629 = vrot.slane %v2628, 4
        %v2630 = vadd.f32 %v2628, %v2629
        %v2631 = vrot.slane %v2630, 2
        %v2632 = vadd.f32 %v2630, %v2631
        %v2633 = vrot.slane %v2632, 1
        %v2634 = vadd.f32 %v2632, %v2633
        %v2635 = vadd.f32 %v2263, %v2265
        %v2636 = vadd.f32 %v2635, %v2267
        %v2637 = vadd.f32 %v2636, %v2269
        %v2638 = vrot.slane %v2637, 4
        %v2639 = vadd.f32 %v2637, %v2638
        %v2640 = vrot.slane %v2639, 2
        %v2641 = vadd.f32 %v2639, %v2640
        %v2642 = vrot.slane %v2641, 1
        %v2643 = vadd.f32 %v2641, %v2642
        %v2644 = vadd.f32 %v2270, %v2272
        %v2645 = vadd.f32 %v2644, %v2274
        %v2646 = vadd.f32 %v2645, %v2276
        %v2647 = vrot.slane %v2646, 4
        %v2648 = vadd.f32 %v2646, %v2647
        %v2649 = vrot.slane %v2648, 2
        %v2650 = vadd.f32 %v2648, %v2649
        %v2651 = vrot.slane %v2650, 1
        %v2652 = vadd.f32 %v2650, %v2651
        %v2653 = vadd.f32 %v2271, %v2273
        %v2654 = vadd.f32 %v2653, %v2275
        %v2655 = vadd.f32 %v2654, %v2277
        %v2656 = vrot.slane %v2655, 4
        %v2657 = vadd.f32 %v2655, %v2656
        %v2658 = vrot.slane %v2657, 2
        %v2659 = vadd.f32 %v2657, %v2658
        %v2660 = vrot.slane %v2659, 1
        %v2661 = vadd.f32 %v2659, %v2660
        %v2662 = vadd.f32 %v2278, %v2280
        %v2663 = vadd.f32 %v2662, %v2282
        %v2664 = vadd.f32 %v2663, %v2284
        %v2665 = vrot.slane %v2664, 4
        %v2666 = vadd.f32 %v2664, %v2665
        %v2667 = vrot.slane %v2666, 2
        %v2668 = vadd.f32 %v2666, %v2667
        %v2669 = vrot.slane %v2668, 1
        %v2670 = vadd.f32 %v2668, %v2669
        %v2671 = vadd.f32 %v2279, %v2281
        %v2672 = vadd.f32 %v2671, %v2283
        %v2673 = vadd.f32 %v2672, %v2285
        %v2674 = vrot.slane %v2673, 4
        %v2675 = vadd.f32 %v2673, %v2674
        %v2676 = vrot.slane %v2675, 2
        %v2677 = vadd.f32 %v2675, %v2676
        %v2678 = vrot.slane %v2677, 1
        %v2679 = vadd.f32 %v2677, %v2678
        %v2680 = vadd.f32 %v2286, %v2288
        %v2681 = vadd.f32 %v2680, %v2290
        %v2682 = vadd.f32 %v2681, %v2292
        %v2683 = vrot.slane %v2682, 4
        %v2684 = vadd.f32 %v2682, %v2683
        %v2685 = vrot.slane %v2684, 2
        %v2686 = vadd.f32 %v2684, %v2685
        %v2687 = vrot.slane %v2686, 1
        %v2688 = vadd.f32 %v2686, %v2687
        %v2689 = vadd.f32 %v2287, %v2289
        %v2690 = vadd.f32 %v2689, %v2291
        %v2691 = vadd.f32 %v2690, %v2293
        %v2692 = vrot.slane %v2691, 4
        %v2693 = vadd.f32 %v2691, %v2692
        %v2694 = vrot.slane %v2693, 2
        %v2695 = vadd.f32 %v2693, %v2694
        %v2696 = vrot.slane %v2695, 1
        %v2697 = vadd.f32 %v2695, %v2696
        %v2698 = vadd.f32 %v2294, %v2296
        %v2699 = vadd.f32 %v2698, %v2298
        %v2700 = vadd.f32 %v2699, %v2300
        %v2701 = vrot.slane %v2700, 4
        %v2702 = vadd.f32 %v2700, %v2701
        %v2703 = vrot.slane %v2702, 2
        %v2704 = vadd.f32 %v2702, %v2703
        %v2705 = vrot.slane %v2704, 1
        %v2706 = vadd.f32 %v2704, %v2705
        %v2707 = vadd.f32 %v2295, %v2297
        %v2708 = vadd.f32 %v2707, %v2299
        %v2709 = vadd.f32 %v2708, %v2301
        %v2710 = vrot.slane %v2709, 4
        %v2711 = vadd.f32 %v2709, %v2710
        %v2712 = vrot.slane %v2711, 2
        %v2713 = vadd.f32 %v2711, %v2712
        %v2714 = vrot.slane %v2713, 1
        %v2715 = vadd.f32 %v2713, %v2714
        %v2716 = vadd.f32 %v2302, %v2304
        %v2717 = vadd.f32 %v2716, %v2306
        %v2718 = vadd.f32 %v2717, %v2308
        %v2719 = vrot.slane %v2718, 4
        %v2720 = vadd.f32 %v2718, %v2719
        %v2721 = vrot.slane %v2720, 2
        %v2722 = vadd.f32 %v2720, %v2721
        %v2723 = vrot.slane %v2722, 1
        %v2724 = vadd.f32 %v2722, %v2723
        %v2725 = vadd.f32 %v2303, %v2305
        %v2726 = vadd.f32 %v2725, %v2307
        %v2727 = vadd.f32 %v2726, %v2309
        %v2728 = vrot.slane %v2727, 4
        %v2729 = vadd.f32 %v2727, %v2728
        %v2730 = vrot.slane %v2729, 2
        %v2731 = vadd.f32 %v2729, %v2730
        %v2732 = vrot.slane %v2731, 1
        %v2733 = vadd.f32 %v2731, %v2732
        %v2734 = vadd.f32 %v2310, %v2312
        %v2735 = vadd.f32 %v2734, %v2314
        %v2736 = vadd.f32 %v2735, %v2316
        %v2737 = vrot.slane %v2736, 4
        %v2738 = vadd.f32 %v2736, %v2737
        %v2739 = vrot.slane %v2738, 2
        %v2740 = vadd.f32 %v2738, %v2739
        %v2741 = vrot.slane %v2740, 1
        %v2742 = vadd.f32 %v2740, %v2741
        %v2743 = vadd.f32 %v2311, %v2313
        %v2744 = vadd.f32 %v2743, %v2315
        %v2745 = vadd.f32 %v2744, %v2317
        %v2746 = vrot.slane %v2745, 4
        %v2747 = vadd.f32 %v2745, %v2746
        %v2748 = vrot.slane %v2747, 2
        %v2749 = vadd.f32 %v2747, %v2748
        %v2750 = vrot.slane %v2749, 1
        %v2751 = vadd.f32 %v2749, %v2750
        %v2752 = vadd.f32 %v2318, %v2320
        %v2753 = vadd.f32 %v2752, %v2322
        %v2754 = vadd.f32 %v2753, %v2324
        %v2755 = vrot.slane %v2754, 4
        %v2756 = vadd.f32 %v2754, %v2755
        %v2757 = vrot.slane %v2756, 2
        %v2758 = vadd.f32 %v2756, %v2757
        %v2759 = vrot.slane %v2758, 1
        %v2760 = vadd.f32 %v2758, %v2759
        %v2761 = vadd.f32 %v2319, %v2321
        %v2762 = vadd.f32 %v2761, %v2323
        %v2763 = vadd.f32 %v2762, %v2325
        %v2764 = vrot.slane %v2763, 4
        %v2765 = vadd.f32 %v2763, %v2764
        %v2766 = vrot.slane %v2765, 2
        %v2767 = vadd.f32 %v2765, %v2766
        %v2768 = vrot.slane %v2767, 1
        %v2769 = vadd.f32 %v2767, %v2768
        %v2770 = vadd.f32 %v2326, %v2328
        %v2771 = vadd.f32 %v2770, %v2330
        %v2772 = vadd.f32 %v2771, %v2332
        %v2773 = vrot.slane %v2772, 4
        %v2774 = vadd.f32 %v2772, %v2773
        %v2775 = vrot.slane %v2774, 2
        %v2776 = vadd.f32 %v2774, %v2775
        %v2777 = vrot.slane %v2776, 1
        %v2778 = vadd.f32 %v2776, %v2777
        %v2779 = vadd.f32 %v2327, %v2329
        %v2780 = vadd.f32 %v2779, %v2331
        %v2781 = vadd.f32 %v2780, %v2333
        %v2782 = vrot.slane %v2781, 4
        %v2783 = vadd.f32 %v2781, %v2782
        %v2784 = vrot.slane %v2783, 2
        %v2785 = vadd.f32 %v2783, %v2784
        %v2786 = vrot.slane %v2785, 1
        %v2787 = vadd.f32 %v2785, %v2786
        %v2788 = vadd.f32 %v2334, %v2336
        %v2789 = vadd.f32 %v2788, %v2338
        %v2790 = vadd.f32 %v2789, %v2340
        %v2791 = vrot.slane %v2790, 4
        %v2792 = vadd.f32 %v2790, %v2791
        %v2793 = vrot.slane %v2792, 2
        %v2794 = vadd.f32 %v2792, %v2793
        %v2795 = vrot.slane %v2794, 1
        %v2796 = vadd.f32 %v2794, %v2795
        %v2797 = vadd.f32 %v2335, %v2337
        %v2798 = vadd.f32 %v2797, %v2339
        %v2799 = vadd.f32 %v2798, %v2341
        %v2800 = vrot.slane %v2799, 4
        %v2801 = vadd.f32 %v2799, %v2800
        %v2802 = vrot.slane %v2801, 2
        %v2803 = vadd.f32 %v2801, %v2802
        %v2804 = vrot.slane %v2803, 1
        %v2805 = vadd.f32 %v2803, %v2804
        %v2806 = vadd.f32 %v2342, %v2344
        %v2807 = vadd.f32 %v2806, %v2346
        %v2808 = vadd.f32 %v2807, %v2348
        %v2809 = vrot.slane %v2808, 4
        %v2810 = vadd.f32 %v2808, %v2809
        %v2811 = vrot.slane %v2810, 2
        %v2812 = vadd.f32 %v2810, %v2811
        %v2813 = vrot.slane %v2812, 1
        %v2814 = vadd.f32 %v2812, %v2813
        %v2815 = vadd.f32 %v2343, %v2345
        %v2816 = vadd.f32 %v2815, %v2347
        %v2817 = vadd.f32 %v2816, %v2349
        %v2818 = vrot.slane %v2817, 4
        %v2819 = vadd.f32 %v2817, %v2818
        %v2820 = vrot.slane %v2819, 2
        %v2821 = vadd.f32 %v2819, %v2820
        %v2822 = vrot.slane %v2821, 1
        %v2823 = vadd.f32 %v2821, %v2822
        %v2824 = vadd.f32 %v2350, %v2352
        %v2825 = vadd.f32 %v2824, %v2354
        %v2826 = vadd.f32 %v2825, %v2356
        %v2827 = vrot.slane %v2826, 4
        %v2828 = vadd.f32 %v2826, %v2827
        %v2829 = vrot.slane %v2828, 2
        %v2830 = vadd.f32 %v2828, %v2829
        %v2831 = vrot.slane %v2830, 1
        %v2832 = vadd.f32 %v2830, %v2831
        %v2833 = vadd.f32 %v2351, %v2353
        %v2834 = vadd.f32 %v2833, %v2355
        %v2835 = vadd.f32 %v2834, %v2357
        %v2836 = vrot.slane %v2835, 4
        %v2837 = vadd.f32 %v2835, %v2836
        %v2838 = vrot.slane %v2837, 2
        %v2839 = vadd.f32 %v2837, %v2838
        %v2840 = vrot.slane %v2839, 1
        %v2841 = vadd.f32 %v2839, %v2840
        %v2842 = vadd.f32 %v2358, %v2360
        %v2843 = vadd.f32 %v2842, %v2362
        %v2844 = vadd.f32 %v2843, %v2364
        %v2845 = vrot.slane %v2844, 4
        %v2846 = vadd.f32 %v2844, %v2845
        %v2847 = vrot.slane %v2846, 2
        %v2848 = vadd.f32 %v2846, %v2847
        %v2849 = vrot.slane %v2848, 1
        %v2850 = vadd.f32 %v2848, %v2849
        %v2851 = vadd.f32 %v2359, %v2361
        %v2852 = vadd.f32 %v2851, %v2363
        %v2853 = vadd.f32 %v2852, %v2365
        %v2854 = vrot.slane %v2853, 4
        %v2855 = vadd.f32 %v2853, %v2854
        %v2856 = vrot.slane %v2855, 2
        %v2857 = vadd.f32 %v2855, %v2856
        %v2858 = vrot.slane %v2857, 1
        %v2859 = vadd.f32 %v2857, %v2858
        %v2860 = vadd.f32 %v2366, %v2368
        %v2861 = vadd.f32 %v2860, %v2370
        %v2862 = vadd.f32 %v2861, %v2372
        %v2863 = vrot.slane %v2862, 4
        %v2864 = vadd.f32 %v2862, %v2863
        %v2865 = vrot.slane %v2864, 2
        %v2866 = vadd.f32 %v2864, %v2865
        %v2867 = vrot.slane %v2866, 1
        %v2868 = vadd.f32 %v2866, %v2867
        %v2869 = vadd.f32 %v2367, %v2369
        %v2870 = vadd.f32 %v2869, %v2371
        %v2871 = vadd.f32 %v2870, %v2373
        %v2872 = vrot.slane %v2871, 4
        %v2873 = vadd.f32 %v2871, %v2872
        %v2874 = vrot.slane %v2873, 2
        %v2875 = vadd.f32 %v2873, %v2874
        %v2876 = vrot.slane %v2875, 1
        %v2877 = vadd.f32 %v2875, %v2876
        %v2878 = vadd.f32 %v2374, %v2376
        %v2879 = vadd.f32 %v2878, %v2378
        %v2880 = vadd.f32 %v2879, %v2380
        %v2881 = vrot.slane %v2880, 4
        %v2882 = vadd.f32 %v2880, %v2881
        %v2883 = vrot.slane %v2882, 2
        %v2884 = vadd.f32 %v2882, %v2883
        %v2885 = vrot.slane %v2884, 1
        %v2886 = vadd.f32 %v2884, %v2885
        %v2887 = vadd.f32 %v2375, %v2377
        %v2888 = vadd.f32 %v2887, %v2379
        %v2889 = vadd.f32 %v2888, %v2381
        %v2890 = vrot.slane %v2889, 4
        %v2891 = vadd.f32 %v2889, %v2890
        %v2892 = vrot.slane %v2891, 2
        %v2893 = vadd.f32 %v2891, %v2892
        %v2894 = vrot.slane %v2893, 1
        %v2895 = vadd.f32 %v2893, %v2894
        %v2896 = vadd.f32 %v2382, %v2384
        %v2897 = vadd.f32 %v2896, %v2386
        %v2898 = vadd.f32 %v2897, %v2388
        %v2899 = vrot.slane %v2898, 4
        %v2900 = vadd.f32 %v2898, %v2899
        %v2901 = vrot.slane %v2900, 2
        %v2902 = vadd.f32 %v2900, %v2901
        %v2903 = vrot.slane %v2902, 1
        %v2904 = vadd.f32 %v2902, %v2903
        %v2905 = vadd.f32 %v2383, %v2385
        %v2906 = vadd.f32 %v2905, %v2387
        %v2907 = vadd.f32 %v2906, %v2389
        %v2908 = vrot.slane %v2907, 4
        %v2909 = vadd.f32 %v2907, %v2908
        %v2910 = vrot.slane %v2909, 2
        %v2911 = vadd.f32 %v2909, %v2910
        %v2912 = vrot.slane %v2911, 1
        %v2913 = vadd.f32 %v2911, %v2912
        %v2914 = vadd.f32 %v2390, %v2392
        %v2915 = vadd.f32 %v2914, %v2394
        %v2916 = vadd.f32 %v2915, %v2396
        %v2917 = vrot.slane %v2916, 4
        %v2918 = vadd.f32 %v2916, %v2917
        %v2919 = vrot.slane %v2918, 2
        %v2920 = vadd.f32 %v2918, %v2919
        %v2921 = vrot.slane %v2920, 1
        %v2922 = vadd.f32 %v2920, %v2921
        %v2923 = vadd.f32 %v2391, %v2393
        %v2924 = vadd.f32 %v2923, %v2395
        %v2925 = vadd.f32 %v2924, %v2397
        %v2926 = vrot.slane %v2925, 4
        %v2927 = vadd.f32 %v2925, %v2926
        %v2928 = vrot.slane %v2927, 2
        %v2929 = vadd.f32 %v2927, %v2928
        %v2930 = vrot.slane %v2929, 1
        %v2931 = vadd.f32 %v2929, %v2930
        %v2932 = vadd.f32 %v2398, %v2400
        %v2933 = vadd.f32 %v2932, %v2402
        %v2934 = vadd.f32 %v2933, %v2404
        %v2935 = vrot.slane %v2934, 4
        %v2936 = vadd.f32 %v2934, %v2935
        %v2937 = vrot.slane %v2936, 2
        %v2938 = vadd.f32 %v2936, %v2937
        %v2939 = vrot.slane %v2938, 1
        %v2940 = vadd.f32 %v2938, %v2939
        %v2941 = vadd.f32 %v2399, %v2401
        %v2942 = vadd.f32 %v2941, %v2403
        %v2943 = vadd.f32 %v2942, %v2405
        %v2944 = vrot.slane %v2943, 4
        %v2945 = vadd.f32 %v2943, %v2944
        %v2946 = vrot.slane %v2945, 2
        %v2947 = vadd.f32 %v2945, %v2946
        %v2948 = vrot.slane %v2947, 1
        %v2949 = vadd.f32 %v2947, %v2948
        %v2950 = vadd.f32 %v2406, %v2408
        %v2951 = vadd.f32 %v2950, %v2410
        %v2952 = vadd.f32 %v2951, %v2412
        %v2953 = vrot.slane %v2952, 4
        %v2954 = vadd.f32 %v2952, %v2953
        %v2955 = vrot.slane %v2954, 2
        %v2956 = vadd.f32 %v2954, %v2955
        %v2957 = vrot.slane %v2956, 1
        %v2958 = vadd.f32 %v2956, %v2957
        %v2959 = vadd.f32 %v2407, %v2409
        %v2960 = vadd.f32 %v2959, %v2411
        %v2961 = vadd.f32 %v2960, %v2413
        %v2962 = vrot.slane %v2961, 4
        %v2963 = vadd.f32 %v2961, %v2962
        %v2964 = vrot.slane %v2963, 2
        %v2965 = vadd.f32 %v2963, %v2964
        %v2966 = vrot.slane %v2965, 1
        %v2967 = vadd.f32 %v2965, %v2966
        %v2968 = vadd.f32 %v2414, %v2416
        %v2969 = vadd.f32 %v2968, %v2418
        %v2970 = vadd.f32 %v2969, %v2420
        %v2971 = vrot.slane %v2970, 4
        %v2972 = vadd.f32 %v2970, %v2971
        %v2973 = vrot.slane %v2972, 2
        %v2974 = vadd.f32 %v2972, %v2973
        %v2975 = vrot.slane %v2974, 1
        %v2976 = vadd.f32 %v2974, %v2975
        %v2977 = vadd.f32 %v2415, %v2417
        %v2978 = vadd.f32 %v2977, %v2419
        %v2979 = vadd.f32 %v2978, %v2421
        %v2980 = vrot.slane %v2979, 4
        %v2981 = vadd.f32 %v2979, %v2980
        %v2982 = vrot.slane %v2981, 2
        %v2983 = vadd.f32 %v2981, %v2982
        %v2984 = vrot.slane %v2983, 1
        %v2985 = vadd.f32 %v2983, %v2984
        %v2986 = vadd.f32 %v2422, %v2424
        %v2987 = vadd.f32 %v2986, %v2426
        %v2988 = vadd.f32 %v2987, %v2428
        %v2989 = vrot.slane %v2988, 4
        %v2990 = vadd.f32 %v2988, %v2989
        %v2991 = vrot.slane %v2990, 2
        %v2992 = vadd.f32 %v2990, %v2991
        %v2993 = vrot.slane %v2992, 1
        %v2994 = vadd.f32 %v2992, %v2993
        %v2995 = vadd.f32 %v2423, %v2425
        %v2996 = vadd.f32 %v2995, %v2427
        %v2997 = vadd.f32 %v2996, %v2429
        %v2998 = vrot.slane %v2997, 4
        %v2999 = vadd.f32 %v2997, %v2998
        %v3000 = vrot.slane %v2999, 2
        %v3001 = vadd.f32 %v2999, %v3000
        %v3002 = vrot.slane %v3001, 1
        %v3003 = vadd.f32 %v3001, %v3002
        %v3004 = vadd.f32 %v2430, %v2432
        %v3005 = vadd.f32 %v3004, %v2434
        %v3006 = vadd.f32 %v3005, %v2436
        %v3007 = vrot.slane %v3006, 4
        %v3008 = vadd.f32 %v3006, %v3007
        %v3009 = vrot.slane %v3008, 2
        %v3010 = vadd.f32 %v3008, %v3009
        %v3011 = vrot.slane %v3010, 1
        %v3012 = vadd.f32 %v3010, %v3011
        %v3013 = vadd.f32 %v2431, %v2433
        %v3014 = vadd.f32 %v3013, %v2435
        %v3015 = vadd.f32 %v3014, %v2437
        %v3016 = vrot.slane %v3015, 4
        %v3017 = vadd.f32 %v3015, %v3016
        %v3018 = vrot.slane %v3017, 2
        %v3019 = vadd.f32 %v3017, %v3018
        %v3020 = vrot.slane %v3019, 1
        %v3021 = vadd.f32 %v3019, %v3020
        %vm3086 = vcmask 1041409
        %v3087 = vsel %vm3086, %v2472, %v2454
        %vm3088 = vcmask 1042434
        %v3089 = vsel %vm3088, %v2490, %v3087
        %vm3090 = vcmask 1043459
        %v3091 = vsel %vm3090, %v2508, %v3089
        %vm3092 = vcmask 1044484
        %v3093 = vsel %vm3092, %v2526, %v3091
        %vm3094 = vcmask 1045509
        %v3095 = vsel %vm3094, %v2544, %v3093
        %vm3096 = vcmask 1046534
        %v3097 = vsel %vm3096, %v2562, %v3095
        %vm3098 = vcmask 1047559
        %v3099 = vsel %vm3098, %v2580, %v3097
        %v3100 = vsel %vm3086, %v2481, %v2463
        %v3101 = vsel %vm3088, %v2499, %v3100
        %v3102 = vsel %vm3090, %v2517, %v3101
        %v3103 = vsel %vm3092, %v2535, %v3102
        %v3104 = vsel %vm3094, %v2553, %v3103
        %v3105 = vsel %vm3096, %v2571, %v3104
        %v3106 = vsel %vm3098, %v2589, %v3105
        %v3107 = vsel %vm3086, %v2616, %v2598
        %v3108 = vsel %vm3088, %v2634, %v3107
        %v3109 = vsel %vm3090, %v2652, %v3108
        %v3110 = vsel %vm3092, %v2670, %v3109
        %v3111 = vsel %vm3094, %v2688, %v3110
        %v3112 = vsel %vm3096, %v2706, %v3111
        %v3113 = vsel %vm3098, %v2724, %v3112
        %v3114 = vsel %vm3086, %v2625, %v2607
        %v3115 = vsel %vm3088, %v2643, %v3114
        %v3116 = vsel %vm3090, %v2661, %v3115
        %v3117 = vsel %vm3092, %v2679, %v3116
        %v3118 = vsel %vm3094, %v2697, %v3117
        %v3119 = vsel %vm3096, %v2715, %v3118
        %v3120 = vsel %vm3098, %v2733, %v3119
        %v3121 = vsel %vm3086, %v2760, %v2742
        %v3122 = vsel %vm3088, %v2778, %v3121
        %v3123 = vsel %vm3090, %v2796, %v3122
        %v3124 = vsel %vm3092, %v2814, %v3123
        %v3125 = vsel %vm3094, %v2832, %v3124
        %v3126 = vsel %vm3096, %v2850, %v3125
        %v3127 = vsel %vm3098, %v2868, %v3126
        %v3128 = vsel %vm3086, %v2769, %v2751
        %v3129 = vsel %vm3088, %v2787, %v3128
        %v3130 = vsel %vm3090, %v2805, %v3129
        %v3131 = vsel %vm3092, %v2823, %v3130
        %v3132 = vsel %vm3094, %v2841, %v3131
        %v3133 = vsel %vm3096, %v2859, %v3132
        %v3134 = vsel %vm3098, %v2877, %v3133
        %v3135 = vsel %vm3086, %v2904, %v2886
        %v3136 = vsel %vm3088, %v2922, %v3135
        %v3137 = vsel %vm3090, %v2940, %v3136
        %v3138 = vsel %vm3092, %v2958, %v3137
        %v3139 = vsel %vm3094, %v2976, %v3138
        %v3140 = vsel %vm3096, %v2994, %v3139
        %v3141 = vsel %vm3098, %v3012, %v3140
        %v3142 = vsel %vm3086, %v2913, %v2895
        %v3143 = vsel %vm3088, %v2931, %v3142
        %v3144 = vsel %vm3090, %v2949, %v3143
        %v3145 = vsel %vm3092, %v2967, %v3144
        %v3146 = vsel %vm3094, %v2985, %v3145
        %v3147 = vsel %vm3096, %v3003, %v3146
        %v3148 = vsel %vm3098, %v3021, %v3147
        %v3157 = vadd.f32 %v2438, %v3099
        %v3158 = vadd.f32 %v2439, %v3106
        %v3159 = vadd.f32 %v2440, %v3113
        %v3160 = vadd.f32 %v2441, %v3120
        %v3161 = vadd.f32 %v2442, %v3127
        %v3162 = vadd.f32 %v2443, %v3134
        %v3163 = vadd.f32 %v2444, %v3141
        %v3164 = vadd.f32 %v2445, %v3148
        %3165 = vst [vmem:[#allocation2] sm:$0xff] %v3157
        %3166 = vst [vmem:[#allocation2 + $0x8] sm:$0xff] %v3158
        %3167 = vst [vmem:[#allocation2 + $0x10] sm:$0xff] %v3159
        %3168 = vst [vmem:[#allocation2 + $0x18] sm:$0xff] %v3160
        %3169 = vst [vmem:[#allocation2 + $0x20] sm:$0xff] %v3161
        %3170 = vst [vmem:[#allocation2 + $0x28] sm:$0xff] %v3162
        %3171 = vst [vmem:[#allocation2 + $0x30] sm:$0xff] %v3163
        %3172 = vst [vmem:[#allocation2 + $0x38] sm:$0xff] %v3164
        %p3173 = scmp.eq.s32.totalorder %s24, 1
        // Predicated region
        $region83: #{tpu_custom_call.1} parent=73 // pred_check
          %p3174 = pneg %p3173
        $region84: #{tpu_custom_call.1} parent=73 // pred_check_branch
          %3176 = sbr.rel (%p3174) target = $region86
        $region85: #{tpu_custom_call.1} parent=73 // pred_region
          %v3177 = vld [vmem:[#allocation2] sm:$0xff]
          %v3178 = vld [vmem:[#allocation2 + $0x8] sm:$0xff]
          %v3179 = vld [vmem:[#allocation2 + $0x10] sm:$0xff]
          %v3180 = vld [vmem:[#allocation2 + $0x18] sm:$0xff]
          %v3181 = vld [vmem:[#allocation2 + $0x20] sm:$0xff]
          %v3182 = vld [vmem:[#allocation2 + $0x28] sm:$0xff]
          %v3183 = vld [vmem:[#allocation2 + $0x30] sm:$0xff]
          %v3184 = vld [vmem:[#allocation2 + $0x38] sm:$0xff]
          %v3185 = vmul.f32 %v3177, 0.015625
          %v3186 = vmul.f32 %v3178, 0.015625
          %v3187 = vmul.f32 %v3179, 0.015625
          %v3188 = vmul.f32 %v3180, 0.015625
          %v3189 = vmul.f32 %v3181, 0.015625
          %v3190 = vmul.f32 %v3182, 0.015625
          %v3191 = vmul.f32 %v3183, 0.015625
          %v3192 = vmul.f32 %v3184, 0.015625
          %v3193 = vld [vmem:[%s3] sm:$0xff]
          %v3194 = vld [vmem:[%s3 + $0x8] sm:$0xff]
          %v3195 = vld [vmem:[%s3 + $0x10] sm:$0xff]
          %v3196 = vld [vmem:[%s3 + $0x18] sm:$0xff]
          %v3197 = vld [vmem:[%s3 + $0x20] sm:$0xff]
          %v3198 = vld [vmem:[%s3 + $0x28] sm:$0xff]
          %v3199 = vld [vmem:[%s3 + $0x30] sm:$0xff]
          %v3200 = vld [vmem:[%s3 + $0x38] sm:$0xff]
          %v3201 = vld [vmem:[%s3 + $0x40] sm:$0xff]
          %v3202 = vld [vmem:[%s3 + $0x48] sm:$0xff]
          %v3203 = vld [vmem:[%s3 + $0x50] sm:$0xff]
          %v3204 = vld [vmem:[%s3 + $0x58] sm:$0xff]
          %v3205 = vld [vmem:[%s3 + $0x60] sm:$0xff]
          %v3206 = vld [vmem:[%s3 + $0x68] sm:$0xff]
          %v3207 = vld [vmem:[%s3 + $0x70] sm:$0xff]
          %v3208 = vld [vmem:[%s3 + $0x78] sm:$0xff]
          %v3209 = vld [vmem:[%s3 + $0x80] sm:$0xff]
          %v3210 = vld [vmem:[%s3 + $0x88] sm:$0xff]
          %v3211 = vld [vmem:[%s3 + $0x90] sm:$0xff]
          %v3212 = vld [vmem:[%s3 + $0x98] sm:$0xff]
          %v3213 = vld [vmem:[%s3 + $0xa0] sm:$0xff]
          %v3214 = vld [vmem:[%s3 + $0xa8] sm:$0xff]
          %v3215 = vld [vmem:[%s3 + $0xb0] sm:$0xff]
          %v3216 = vld [vmem:[%s3 + $0xb8] sm:$0xff]
          %v3217 = vld [vmem:[%s3 + $0xc0] sm:$0xff]
          %v3218 = vld [vmem:[%s3 + $0xc8] sm:$0xff]
          %v3219 = vld [vmem:[%s3 + $0xd0] sm:$0xff]
          %v3220 = vld [vmem:[%s3 + $0xd8] sm:$0xff]
          %v3221 = vld [vmem:[%s3 + $0xe0] sm:$0xff]
          %v3222 = vld [vmem:[%s3 + $0xe8] sm:$0xff]
          %v3223 = vld [vmem:[%s3 + $0xf0] sm:$0xff]
          %v3224 = vld [vmem:[%s3 + $0xf8] sm:$0xff]
          %v3225 = vld [vmem:[%s3 + $0x100] sm:$0xff]
          %v3226 = vld [vmem:[%s3 + $0x108] sm:$0xff]
          %v3227 = vld [vmem:[%s3 + $0x110] sm:$0xff]
          %v3228 = vld [vmem:[%s3 + $0x118] sm:$0xff]
          %v3229 = vld [vmem:[%s3 + $0x120] sm:$0xff]
          %v3230 = vld [vmem:[%s3 + $0x128] sm:$0xff]
          %v3231 = vld [vmem:[%s3 + $0x130] sm:$0xff]
          %v3232 = vld [vmem:[%s3 + $0x138] sm:$0xff]
          %v3233 = vld [vmem:[%s3 + $0x140] sm:$0xff]
          %v3234 = vld [vmem:[%s3 + $0x148] sm:$0xff]
          %v3235 = vld [vmem:[%s3 + $0x150] sm:$0xff]
          %v3236 = vld [vmem:[%s3 + $0x158] sm:$0xff]
          %v3237 = vld [vmem:[%s3 + $0x160] sm:$0xff]
          %v3238 = vld [vmem:[%s3 + $0x168] sm:$0xff]
          %v3239 = vld [vmem:[%s3 + $0x170] sm:$0xff]
          %v3240 = vld [vmem:[%s3 + $0x178] sm:$0xff]
          %v3241 = vld [vmem:[%s3 + $0x180] sm:$0xff]
          %v3242 = vld [vmem:[%s3 + $0x188] sm:$0xff]
          %v3243 = vld [vmem:[%s3 + $0x190] sm:$0xff]
          %v3244 = vld [vmem:[%s3 + $0x198] sm:$0xff]
          %v3245 = vld [vmem:[%s3 + $0x1a0] sm:$0xff]
          %v3246 = vld [vmem:[%s3 + $0x1a8] sm:$0xff]
          %v3247 = vld [vmem:[%s3 + $0x1b0] sm:$0xff]
          %v3248 = vld [vmem:[%s3 + $0x1b8] sm:$0xff]
          %v3249 = vld [vmem:[%s3 + $0x1c0] sm:$0xff]
          %v3250 = vld [vmem:[%s3 + $0x1c8] sm:$0xff]
          %v3251 = vld [vmem:[%s3 + $0x1d0] sm:$0xff]
          %v3252 = vld [vmem:[%s3 + $0x1d8] sm:$0xff]
          %v3253 = vld [vmem:[%s3 + $0x1e0] sm:$0xff]
          %v3254 = vld [vmem:[%s3 + $0x1e8] sm:$0xff]
          %v3255 = vld [vmem:[%s3 + $0x1f0] sm:$0xff]
          %v3256 = vld [vmem:[%s3 + $0x1f8] sm:$0xff]
          %v3257 = vld [vmem:[%s3 + $0x200] sm:$0xff]
          %v3258 = vld [vmem:[%s3 + $0x208] sm:$0xff]
          %v3259 = vld [vmem:[%s3 + $0x210] sm:$0xff]
          %v3260 = vld [vmem:[%s3 + $0x218] sm:$0xff]
          %v3261 = vld [vmem:[%s3 + $0x220] sm:$0xff]
          %v3262 = vld [vmem:[%s3 + $0x228] sm:$0xff]
          %v3263 = vld [vmem:[%s3 + $0x230] sm:$0xff]
          %v3264 = vld [vmem:[%s3 + $0x238] sm:$0xff]
          %v3265 = vld [vmem:[%s3 + $0x240] sm:$0xff]
          %v3266 = vld [vmem:[%s3 + $0x248] sm:$0xff]
          %v3267 = vld [vmem:[%s3 + $0x250] sm:$0xff]
          %v3268 = vld [vmem:[%s3 + $0x258] sm:$0xff]
          %v3269 = vld [vmem:[%s3 + $0x260] sm:$0xff]
          %v3270 = vld [vmem:[%s3 + $0x268] sm:$0xff]
          %v3271 = vld [vmem:[%s3 + $0x270] sm:$0xff]
          %v3272 = vld [vmem:[%s3 + $0x278] sm:$0xff]
          %v3273 = vld [vmem:[%s3 + $0x280] sm:$0xff]
          %v3274 = vld [vmem:[%s3 + $0x288] sm:$0xff]
          %v3275 = vld [vmem:[%s3 + $0x290] sm:$0xff]
          %v3276 = vld [vmem:[%s3 + $0x298] sm:$0xff]
          %v3277 = vld [vmem:[%s3 + $0x2a0] sm:$0xff]
          %v3278 = vld [vmem:[%s3 + $0x2a8] sm:$0xff]
          %v3279 = vld [vmem:[%s3 + $0x2b0] sm:$0xff]
          %v3280 = vld [vmem:[%s3 + $0x2b8] sm:$0xff]
          %v3281 = vld [vmem:[%s3 + $0x2c0] sm:$0xff]
          %v3282 = vld [vmem:[%s3 + $0x2c8] sm:$0xff]
          %v3283 = vld [vmem:[%s3 + $0x2d0] sm:$0xff]
          %v3284 = vld [vmem:[%s3 + $0x2d8] sm:$0xff]
          %v3285 = vld [vmem:[%s3 + $0x2e0] sm:$0xff]
          %v3286 = vld [vmem:[%s3 + $0x2e8] sm:$0xff]
          %v3287 = vld [vmem:[%s3 + $0x2f0] sm:$0xff]
          %v3288 = vld [vmem:[%s3 + $0x2f8] sm:$0xff]
          %v3289 = vld [vmem:[%s3 + $0x300] sm:$0xff]
          %v3290 = vld [vmem:[%s3 + $0x308] sm:$0xff]
          %v3291 = vld [vmem:[%s3 + $0x310] sm:$0xff]
          %v3292 = vld [vmem:[%s3 + $0x318] sm:$0xff]
          %v3293 = vld [vmem:[%s3 + $0x320] sm:$0xff]
          %v3294 = vld [vmem:[%s3 + $0x328] sm:$0xff]
          %v3295 = vld [vmem:[%s3 + $0x330] sm:$0xff]
          %v3296 = vld [vmem:[%s3 + $0x338] sm:$0xff]
          %v3297 = vld [vmem:[%s3 + $0x340] sm:$0xff]
          %v3298 = vld [vmem:[%s3 + $0x348] sm:$0xff]
          %v3299 = vld [vmem:[%s3 + $0x350] sm:$0xff]
          %v3300 = vld [vmem:[%s3 + $0x358] sm:$0xff]
          %v3301 = vld [vmem:[%s3 + $0x360] sm:$0xff]
          %v3302 = vld [vmem:[%s3 + $0x368] sm:$0xff]
          %v3303 = vld [vmem:[%s3 + $0x370] sm:$0xff]
          %v3304 = vld [vmem:[%s3 + $0x378] sm:$0xff]
          %v3305 = vld [vmem:[%s3 + $0x380] sm:$0xff]
          %v3306 = vld [vmem:[%s3 + $0x388] sm:$0xff]
          %v3307 = vld [vmem:[%s3 + $0x390] sm:$0xff]
          %v3308 = vld [vmem:[%s3 + $0x398] sm:$0xff]
          %v3309 = vld [vmem:[%s3 + $0x3a0] sm:$0xff]
          %v3310 = vld [vmem:[%s3 + $0x3a8] sm:$0xff]
          %v3311 = vld [vmem:[%s3 + $0x3b0] sm:$0xff]
          %v3312 = vld [vmem:[%s3 + $0x3b8] sm:$0xff]
          %v3313 = vld [vmem:[%s3 + $0x3c0] sm:$0xff]
          %v3314 = vld [vmem:[%s3 + $0x3c8] sm:$0xff]
          %v3315 = vld [vmem:[%s3 + $0x3d0] sm:$0xff]
          %v3316 = vld [vmem:[%s3 + $0x3d8] sm:$0xff]
          %v3317 = vld [vmem:[%s3 + $0x3e0] sm:$0xff]
          %v3318 = vld [vmem:[%s3 + $0x3e8] sm:$0xff]
          %v3319 = vld [vmem:[%s3 + $0x3f0] sm:$0xff]
          %v3320 = vld [vmem:[%s3 + $0x3f8] sm:$0xff]
          %3321 = vmatprep.subr.mxu0 %v3254
          %3322 = vmatpush1.msra.mxu0 %v3253
          %3323 = vmatprep.subr.mxu0 %v3250
          %3324 = vmatpush1.msra.mxu0 %v3249
          %3325 = vmatprep.subr.mxu0 %v3246
          %3326 = vmatpush1.msra.mxu0 %v3245
          %3327 = vmatprep.subr.mxu0 %v3242
          %3328 = vmatpush1.msra.mxu0 %v3241
          %3329 = vmatprep.subr.mxu0 %v3238
          %3330 = vmatpush1.msra.mxu0 %v3237
          %3331 = vmatprep.subr.mxu0 %v3234
          %3332 = vmatpush1.msra.mxu0 %v3233
          %3333 = vmatprep.subr.mxu0 %v3230
          %3334 = vmatpush1.msra.mxu0 %v3229
          %3335 = vmatprep.subr.mxu0 %v3226
          %3336 = vmatpush1.msra.mxu0 %v3225
          %3337 = vmatprep.subr.mxu0 %v3222
          %3338 = vmatpush1.msra.mxu0 %v3221
          %3339 = vmatprep.subr.mxu0 %v3218
          %3340 = vmatpush1.msra.mxu0 %v3217
          %3341 = vmatprep.subr.mxu0 %v3214
          %3342 = vmatpush1.msra.mxu0 %v3213
          %3343 = vmatprep.subr.mxu0 %v3210
          %3344 = vmatpush1.msra.mxu0 %v3209
          %3345 = vmatprep.subr.mxu0 %v3206
          %3346 = vmatpush1.msra.mxu0 %v3205
          %3347 = vmatprep.subr.mxu0 %v3202
          %3348 = vmatpush1.msra.mxu0 %v3201
          %3349 = vmatprep.subr.mxu0 %v3198
          %3350 = vmatpush1.msra.mxu0 %v3197
          %3351 = vmatprep.subr.mxu0 %v3194
          %3352 = vmatpush1.msra.mxu0 %v3193
          %3353 = vmatprep.subr.mxu0 %v3318
          %3354 = vmatpush2.msra.mxu0 %v3317
          %3355 = vmatprep.subr.mxu0 %v3314
          %3356 = vmatpush2.msra.mxu0 %v3313
          %3357 = vmatprep.subr.mxu0 %v3310
          %3358 = vmatpush2.msra.mxu0 %v3309
          %3359 = vmatprep.subr.mxu0 %v3306
          %3360 = vmatpush2.msra.mxu0 %v3305
          %3361 = vmatprep.subr.mxu0 %v3302
          %3362 = vmatpush2.msra.mxu0 %v3301
          %3363 = vmatprep.subr.mxu0 %v3298
          %3364 = vmatpush2.msra.mxu0 %v3297
          %3365 = vmatprep.subr.mxu0 %v3294
          %3366 = vmatpush2.msra.mxu0 %v3293
          %3367 = vmatprep.subr.mxu0 %v3290
          %3368 = vmatpush2.msra.mxu0 %v3289
          %3369 = vmatprep.subr.mxu0 %v3286
          %3370 = vmatpush2.msra.mxu0 %v3285
          %3371 = vmatprep.subr.mxu0 %v3282
          %3372 = vmatpush2.msra.mxu0 %v3281
          %3373 = vmatprep.subr.mxu0 %v3278
          %3374 = vmatpush2.msra.mxu0 %v3277
          %3375 = vmatprep.subr.mxu0 %v3274
          %3376 = vmatpush2.msra.mxu0 %v3273
          %3377 = vmatprep.subr.mxu0 %v3270
          %3378 = vmatpush2.msra.mxu0 %v3269
          %3379 = vmatprep.subr.mxu0 %v3266
          %3380 = vmatpush2.msra.mxu0 %v3265
          %3381 = vmatprep.subr.mxu0 %v3262
          %3382 = vmatpush2.msra.mxu0 %v3261
          %3383 = vmatprep.subr.mxu0 %v3258
          %3384 = vmatpush2.msra.mxu0 %v3257
          %3385 = vmatprep.mubr.f32.mxu0 %v3186
          %3386 = vmatmul.mubr.f32.gmra.mxu0 %v3185
          %v3387 = vpop.f32.mrf.mxu0
          %v3388 = vadd.f32 0.0, %v3387
          %v3389 = vpop.f32.mrf.mxu0
          %v3390 = vadd.f32 0.0, %v3389
          %3391 = vmatprep.mubr.f32.mxu0 %v3188
          %3392 = vmatmul.mubr.f32.gmra.mxu0 %v3187
          %v3393 = vpop.f32.mrf.mxu0
          %v3394 = vadd.f32 0.0, %v3393
          %v3395 = vpop.f32.mrf.mxu0
          %v3396 = vadd.f32 0.0, %v3395
          %3397 = vmatprep.mubr.f32.mxu0 %v3190
          %3398 = vmatmul.mubr.f32.gmra.mxu0 %v3189
          %v3399 = vpop.f32.mrf.mxu0
          %v3400 = vadd.f32 0.0, %v3399
          %v3401 = vpop.f32.mrf.mxu0
          %v3402 = vadd.f32 0.0, %v3401
          %3403 = vmatprep.mubr.f32.mxu0 %v3192
          %3404 = vmatmul.mubr.f32.gmra.mxu0 %v3191
          %v3405 = vpop.f32.mrf.mxu0
          %v3406 = vadd.f32 0.0, %v3405
          %v3407 = vpop.f32.mrf.mxu0
          %v3408 = vadd.f32 0.0, %v3407
          %3409 = vdwg.mxu0
          %3410 = vmatprep.subr.mxu0 %v3256
          %3411 = vmatpush1.msra.mxu0 %v3255
          %3412 = vmatprep.subr.mxu0 %v3252
          %3413 = vmatpush1.msra.mxu0 %v3251
          %3414 = vmatprep.subr.mxu0 %v3248
          %3415 = vmatpush1.msra.mxu0 %v3247
          %3416 = vmatprep.subr.mxu0 %v3244
          %3417 = vmatpush1.msra.mxu0 %v3243
          %3418 = vmatprep.subr.mxu0 %v3240
          %3419 = vmatpush1.msra.mxu0 %v3239
          %3420 = vmatprep.subr.mxu0 %v3236
          %3421 = vmatpush1.msra.mxu0 %v3235
          %3422 = vmatprep.subr.mxu0 %v3232
          %3423 = vmatpush1.msra.mxu0 %v3231
          %3424 = vmatprep.subr.mxu0 %v3228
          %3425 = vmatpush1.msra.mxu0 %v3227
          %3426 = vmatprep.subr.mxu0 %v3224
          %3427 = vmatpush1.msra.mxu0 %v3223
          %3428 = vmatprep.subr.mxu0 %v3220
          %3429 = vmatpush1.msra.mxu0 %v3219
          %3430 = vmatprep.subr.mxu0 %v3216
          %3431 = vmatpush1.msra.mxu0 %v3215
          %3432 = vmatprep.subr.mxu0 %v3212
          %3433 = vmatpush1.msra.mxu0 %v3211
          %3434 = vmatprep.subr.mxu0 %v3208
          %3435 = vmatpush1.msra.mxu0 %v3207
          %3436 = vmatprep.subr.mxu0 %v3204
          %3437 = vmatpush1.msra.mxu0 %v3203
          %3438 = vmatprep.subr.mxu0 %v3200
          %3439 = vmatpush1.msra.mxu0 %v3199
          %3440 = vmatprep.subr.mxu0 %v3196
          %3441 = vmatpush1.msra.mxu0 %v3195
          %3442 = vmatprep.subr.mxu0 %v3320
          %3443 = vmatpush2.msra.mxu0 %v3319
          %3444 = vmatprep.subr.mxu0 %v3316
          %3445 = vmatpush2.msra.mxu0 %v3315
          %3446 = vmatprep.subr.mxu0 %v3312
          %3447 = vmatpush2.msra.mxu0 %v3311
          %3448 = vmatprep.subr.mxu0 %v3308
          %3449 = vmatpush2.msra.mxu0 %v3307
          %3450 = vmatprep.subr.mxu0 %v3304
          %3451 = vmatpush2.msra.mxu0 %v3303
          %3452 = vmatprep.subr.mxu0 %v3300
          %3453 = vmatpush2.msra.mxu0 %v3299
          %3454 = vmatprep.subr.mxu0 %v3296
          %3455 = vmatpush2.msra.mxu0 %v3295
          %3456 = vmatprep.subr.mxu0 %v3292
          %3457 = vmatpush2.msra.mxu0 %v3291
          %3458 = vmatprep.subr.mxu0 %v3288
          %3459 = vmatpush2.msra.mxu0 %v3287
          %3460 = vmatprep.subr.mxu0 %v3284
          %3461 = vmatpush2.msra.mxu0 %v3283
          %3462 = vmatprep.subr.mxu0 %v3280
          %3463 = vmatpush2.msra.mxu0 %v3279
          %3464 = vmatprep.subr.mxu0 %v3276
          %3465 = vmatpush2.msra.mxu0 %v3275
          %3466 = vmatprep.subr.mxu0 %v3272
          %3467 = vmatpush2.msra.mxu0 %v3271
          %3468 = vmatprep.subr.mxu0 %v3268
          %3469 = vmatpush2.msra.mxu0 %v3267
          %3470 = vmatprep.subr.mxu0 %v3264
          %3471 = vmatpush2.msra.mxu0 %v3263
          %3472 = vmatprep.subr.mxu0 %v3260
          %3473 = vmatpush2.msra.mxu0 %v3259
          %3474 = vmatprep.mubr.f32.mxu0 %v3186
          %3475 = vmatmul.mubr.f32.gmra.mxu0 %v3185
          %v3476 = vpop.f32.mrf.mxu0
          %v3477 = vadd.f32 0.0, %v3476
          %v3478 = vpop.f32.mrf.mxu0
          %v3479 = vadd.f32 0.0, %v3478
          %3480 = vmatprep.mubr.f32.mxu0 %v3188
          %3481 = vmatmul.mubr.f32.gmra.mxu0 %v3187
          %v3482 = vpop.f32.mrf.mxu0
          %v3483 = vadd.f32 0.0, %v3482
          %v3484 = vpop.f32.mrf.mxu0
          %v3485 = vadd.f32 0.0, %v3484
          %3486 = vmatprep.mubr.f32.mxu0 %v3190
          %3487 = vmatmul.mubr.f32.gmra.mxu0 %v3189
          %v3488 = vpop.f32.mrf.mxu0
          %v3489 = vadd.f32 0.0, %v3488
          %v3490 = vpop.f32.mrf.mxu0
          %v3491 = vadd.f32 0.0, %v3490
          %3492 = vmatprep.mubr.f32.mxu0 %v3192
          %3493 = vmatmul.mubr.f32.gmra.mxu0 %v3191
          %v3494 = vpop.f32.mrf.mxu0
          %v3495 = vadd.f32 0.0, %v3494
          %v3496 = vpop.f32.mrf.mxu0
          %v3497 = vadd.f32 0.0, %v3496
          %3498 = vdwg.mxu0
          %v3499 = vld [vmem:[%s4] sm:$0xf]
          %v3501 = vlaneseq
          %v3502 = vshrl.u32 %v3501, 7
          %v3503 = vsub.s32 0, %v3502
          %v3504 = vrot.slane %v3499, %v3503
          %v3505 = vlaneseq
          %v3506 = vshrl.u32 %v3505, 7
          %v3507 = vsub.s32 1, %v3506
          %v3508 = vrot.slane %v3499, %v3507
          %v3509 = vlaneseq
          %v3510 = vshrl.u32 %v3509, 7
          %v3511 = vsub.s32 2, %v3510
          %v3512 = vrot.slane %v3499, %v3511
          %v3513 = vlaneseq
          %v3514 = vshrl.u32 %v3513, 7
          %v3515 = vsub.s32 3, %v3514
          %v3516 = vrot.slane %v3499, %v3515
          %v3521 = vadd.f32 %v3388, %v3504
          %v3522 = vadd.f32 %v3390, %v3508
          %v3523 = vadd.f32 %v3477, %v3512
          %v3524 = vadd.f32 %v3479, %v3516
          %v3525 = vadd.f32 %v3394, %v3504
          %v3526 = vadd.f32 %v3396, %v3508
          %v3527 = vadd.f32 %v3483, %v3512
          %v3528 = vadd.f32 %v3485, %v3516
          %v3529 = vadd.f32 %v3400, %v3504
          %v3530 = vadd.f32 %v3402, %v3508
          %v3531 = vadd.f32 %v3489, %v3512
          %v3532 = vadd.f32 %v3491, %v3516
          %v3533 = vadd.f32 %v3406, %v3504
          %v3534 = vadd.f32 %v3408, %v3508
          %v3535 = vadd.f32 %v3495, %v3512
          %v3536 = vadd.f32 %v3497, %v3516
          %3537 = vst [vmem:[#allocation4] sm:$0xff] %v3521
          %3538 = vst [vmem:[#allocation4 + $0x8] sm:$0xff] %v3522
          %3539 = vst [vmem:[#allocation4 + $0x10] sm:$0xff] %v3523
          %3540 = vst [vmem:[#allocation4 + $0x18] sm:$0xff] %v3524
          %3541 = vst [vmem:[#allocation4 + $0x20] sm:$0xff] %v3525
          %3542 = vst [vmem:[#allocation4 + $0x28] sm:$0xff] %v3526
          %3543 = vst [vmem:[#allocation4 + $0x30] sm:$0xff] %v3527
          %3544 = vst [vmem:[#allocation4 + $0x38] sm:$0xff] %v3528
          %3545 = vst [vmem:[#allocation4 + $0x40] sm:$0xff] %v3529
          %3546 = vst [vmem:[#allocation4 + $0x48] sm:$0xff] %v3530
          %3547 = vst [vmem:[#allocation4 + $0x50] sm:$0xff] %v3531
          %3548 = vst [vmem:[#allocation4 + $0x58] sm:$0xff] %v3532
          %3549 = vst [vmem:[#allocation4 + $0x60] sm:$0xff] %v3533
          %3550 = vst [vmem:[#allocation4 + $0x68] sm:$0xff] %v3534
          %3551 = vst [vmem:[#allocation4 + $0x70] sm:$0xff] %v3535
          %3552 = vst [vmem:[#allocation4 + $0x78] sm:$0xff] %v3536
        $region86: #{tpu_custom_call.1} parent=73 // pred_fallthru
          _
        // Predicated region
        $region87: #{tpu_custom_call.1} parent=73 // pred_check
          %p3553 = pneg %p170
        $region88: #{tpu_custom_call.1} parent=73 // pred_check_branch
          %3555 = sbr.rel (%p3553) target = $region90
        $region89: #{tpu_custom_call.1} parent=73 // pred_region
          %s3556 = smul.u32 4, %s22
          %s3558 = ssub.s32 2048, 2048
          %3559 = vsyncadd [#allocation5], %s3558
          %s3560 = smul.addr %s23, 4
          %s3561 = smul.addr %s3556, 4
          %s3562 = sadd.s32 %s3560, %s3561
          %s3563 = smul.addr %s3562, 128
          %s3564 = scalar_lea.hbm %s5, %s3563
          %s3565 = sshll.u32 [#allocation4], 4
          %s3566 = int_to_ptr.vmem [resolvable:$true] %s3565
          %3571 = dma.vmem_to_hbm [thread:$0]  %s3566, 2048, %s3564, [#allocation5], 512, 512, 32
        $region90: #{tpu_custom_call.1} parent=73 // pred_fallthru
          _
        // Predicated region
        $region91: #{tpu_custom_call.1} parent=73 // pred_check
          %p3572 = pneg %p170
        $region92: #{tpu_custom_call.1} parent=73 // pred_check_branch
          %3574 = sbr.rel (%p3572) target = $region94
        $region93: #{tpu_custom_call.1} parent=73 // pred_region
          %3575 = dma.done [#allocation5], 2048
        $region94: #{tpu_custom_call.1} parent=73 // pred_fallthru
          _
      $region74: #{tpu_custom_call.1} parent=5 // pred_fallthru
        _
      %p3576 = scmp.le.s32.totalorder 2, %s12
      // Predicated region
      $region95: #{tpu_custom_call.1} parent=5 // pred_check
        %p3577 = pneg %p3576
      $region96: #{tpu_custom_call.1} parent=5 // pred_check_branch
        %3579 = sbr.rel (%p3577) target = $region98
      $region97: #{tpu_custom_call.1} parent=5 // pred_region
        %s3580 = ssub.s32 %s12, 2
      $region98: #{tpu_custom_call.1} parent=5 // pred_fallthru
        _
    $region6: #{tpu_custom_call.1} parent=1 // loop_footer
      %s16 = sadd.s32 1, %s12
    $region7: #{tpu_custom_call.1} parent=1 // loop_footer_branch
      %11 = sbr.rel target = $region3
    $region8: #{tpu_custom_call.1} parent=1 // loop_exit
      _
    %3581 = vsyncpa [#allocation5], 1
    %s3582 = scalar_lea.sflag [#allocation5], 1
    %3583 = vsyncpa %s3582, 1

</llo_original>
